<compile_context>
chip_gen: v5e
topology: v5e:2x2
jax: 0.10.0
libtpu: 0.0.40
codegen_flags: <defaults>
</compile_context>

<pallas_src>
import jax
import jax.numpy as jnp
from jax.experimental import pallas as pl
from jax.experimental.pallas import tpu as pltpu


def _conv_add_relu_kernel(w_ref, p_ref, b_ref, o_ref):
    # w_ref: (TC, 9)   block of stacked conv weights (Cout-major)
    # p_ref: (9, HW)   im2col patches (constant block, resident across steps)
    # b_ref: (TC, HW)  block of the additive tensor
    # o_ref: (TC, HW)  output block
    acc = jnp.dot(w_ref[...], p_ref[...], preferred_element_type=jnp.float32)
    o_ref[...] = jnp.maximum(acc + b_ref[...], 0.0).astype(o_ref.dtype)


def _im2col_3x3_rows(x2d):
    """x2d: (H, W) -> (9, OH*OW) patches, ky-major then kx (matches
    weights.reshape(Cout, 9) flattening order).  ~105 KB; one XLA fusion of
    9 strided slices + stack."""
    H, W = x2d.shape
    OH, OW = H - 2, W - 2
    rows = [
        x2d[ky:ky + OH, kx:kx + OW].reshape(OH * OW)
        for ky in range(3)
        for kx in range(3)
    ]
    return jnp.stack(rows, axis=0)  # (9, OH*OW)


def _grid_dimension_semantics():
    """CORE_PARALLEL only on v7x (2 TensorCores/chip); PARALLEL elsewhere."""
    try:
        kind = jax.devices()[0].device_kind.lower()
    except Exception:  # pragma: no cover - defensive fallback
        kind = ""
    if "v7" in kind:
        return (pltpu.CORE_PARALLEL,)
    return (pltpu.PARALLEL,)


_DIM_SEMANTICS = _grid_dimension_semantics()


@jax.jit
def model_forward(x, weights, add_tensor):
    """
    x:          (1, 1, 56, 56)    NCHW input
    weights:    (18, 16, 1, 3, 3) 18 stacked conv filters
    add_tensor: (1, 288, 54, 54)  additive tensor
    returns:    (1, 288, 54, 54)  NCHW output
    """
    N, Cin, H, W = x.shape
    assert N == 1 and Cin == 1
    OH, OW = H - 2, W - 2
    HW = OH * OW                                 # 2916
    Cout = weights.shape[0] * weights.shape[1]   # 18 * 16 = 288

    # --- glue (plain JAX, tiny tensors / free reshapes) ---
    patches = _im2col_3x3_rows(x[0, 0])          # (9, HW)     ~105 KB
    w_mat = weights.reshape(Cout, 9)             # (288, 9)    ~10 KB
    b_mat = add_tensor.reshape(Cout, HW)         # (288, HW)   free reshape

    # Tile the Cout (sublane) axis; HW stays the full, lane-dense last dim.
    # TC=144 -> grid of 2 independent blocks: 1 block per TensorCore on v7x,
    # minimal per-step overhead on v5e/v6e; ~7.3 MB double-buffered VMEM.
    TC = 144
    assert Cout % TC == 0
    grid = (Cout // TC,)

    flops = 2 * Cout * 9 * HW
    bytes_accessed = 4 * (Cout * 9 + 9 * HW + 2 * Cout * HW)

    out_flat = pl.pallas_call(
        _conv_add_relu_kernel,
        out_shape=jax.ShapeDtypeStruct((Cout, HW), jnp.float32),
        grid=grid,
        in_specs=[
            pl.BlockSpec((TC, 9), lambda i: (i, 0)),      # weights block
            pl.BlockSpec((9, HW), lambda i: (0, 0)),      # patches (resident)
            pl.BlockSpec((TC, HW), lambda i: (i, 0)),     # add tensor block
        ],
        out_specs=pl.BlockSpec((TC, HW), lambda i: (i, 0)),
        compiler_params=pltpu.CompilerParams(
            dimension_semantics=_DIM_SEMANTICS,
        ),
        cost_estimate=pl.CostEstimate(
            flops=flops, transcendentals=0, bytes_accessed=bytes_accessed),
    )(w_mat, patches, b_mat)

    # (Cout, HW) -> (1, Cout, OH, OW): contiguous, no transpose needed.
    return out_flat.reshape(1, Cout, OH, OW)


def reference_forward(x, weights, add_tensor):
    """Pure-JAX reference (lax conv) for a correctness check."""
    Cout = weights.shape[0] * weights.shape[1]
    w = weights.reshape(Cout, 1, 3, 3)
    y = jax.lax.conv_general_dilated(
        x, w, window_strides=(1, 1), padding="VALID",
        dimension_numbers=("NCHW", "OIHW", "NCHW"))
    return jnp.maximum(y + add_tensor, 0.0)


if __name__ == "__main__":
    key = jax.random.PRNGKey(0)
    kx, kw, kb = jax.random.split(key, 3)

    x1 = jax.random.normal(kx, (1, 1, 56, 56), dtype=jnp.float32)
    weights = jax.random.normal(kw, (18, 16, 1, 3, 3), dtype=jnp.float32)
    add_tensor = jax.random.normal(kb, (1, 288, 54, 54), dtype=jnp.float32)

    out = model_forward(x1, weights, add_tensor)
    out = jax.block_until_ready(out)

    ref = reference_forward(x1, weights, add_tensor)
    ref = jax.block_until_ready(ref)

    assert out.shape == (1, 288, 54, 54), out.shape
    assert jnp.allclose(out, ref, atol=1e-3, rtol=1e-3), (
        float(jnp.max(jnp.abs(out - ref))))

    print("KERNEL_OK")
</pallas_src>

<mosaic_0001>
module attributes {stable_mosaic.version = 11 : i64} {
  func.func @_conv_add_relu_kernel(%arg0: i32, %arg1: memref<144x9xf32, #tpu.memory_space<vmem>>, %arg2: memref<9x2916xf32, #tpu.memory_space<vmem>>, %arg3: memref<144x2916xf32, #tpu.memory_space<vmem>>, %arg4: memref<144x2916xf32, #tpu.memory_space<vmem>>) attributes {dimension_semantics = [#tpu.dimension_semantics<parallel>], iteration_bounds = array<i64: 2>, scalar_prefetch = 0 : i64, scratch_operands = 0 : i64, tpu.core_type = #tpu.core_type<tc>, window_params = [{transform_indices = @transform_0, window_bounds = array<i64: 144, 9>}, {pipeline_mode = #tpu.pipeline_mode<synchronous>, transform_indices = @transform_1, window_bounds = array<i64: 9, 2916>}, {transform_indices = @transform_2, window_bounds = array<i64: 144, 2916>}, {transform_indices = @transform_3, window_bounds = array<i64: 144, 2916>}]} {
    %c0 = arith.constant 0 : index
    %c0_0 = arith.constant 0 : index
    %0 = vector.load %arg1[%c0, %c0_0] : memref<144x9xf32, #tpu.memory_space<vmem>>, vector<144x9xf32>
    %c0_1 = arith.constant 0 : index
    %c0_2 = arith.constant 0 : index
    %1 = vector.load %arg2[%c0_1, %c0_2] : memref<9x2916xf32, #tpu.memory_space<vmem>>, vector<9x2916xf32>
    %cst = arith.constant dense<0.000000e+00> : vector<144x2916xf32>
    %2 = tpu.matmul %0, %1, %cst {dimension_numbers = #tpu.dot_dimension_numbers<[1], [0], [0], [1], [0, 0, 1, 1], [], []>} : vector<144x9xf32>, vector<9x2916xf32>, vector<144x2916xf32> -> vector<144x2916xf32>
    %c0_3 = arith.constant 0 : index
    %c0_4 = arith.constant 0 : index
    %3 = vector.load %arg3[%c0_3, %c0_4] : memref<144x2916xf32, #tpu.memory_space<vmem>>, vector<144x2916xf32>
    %4 = arith.addf %2, %3 : vector<144x2916xf32>
    %cst_5 = arith.constant 0.000000e+00 : f32
    %5 = vector.broadcast %cst_5 : f32 to vector<144x2916xf32>
    %6 = arith.maximumf %4, %5 : vector<144x2916xf32>
    %c0_6 = arith.constant 0 : index
    %c0_7 = arith.constant 0 : index
    %7 = vector.load %arg4[%c0_6, %c0_7] : memref<144x2916xf32, #tpu.memory_space<vmem>>, vector<144x2916xf32>
    tpu.vector_store %arg4[%c0_6, %c0_7], %6 {strides = array<i32>} : memref<144x2916xf32, #tpu.memory_space<vmem>>, vector<144x2916xf32>,
    return
  }
  func.func @transform_0(%arg0: i32) -> (i32, i32) {
    %c0_i32 = arith.constant 0 : i32
    %c0_i32_0 = arith.constant 0 : i32
    return %arg0, %c0_i32 : i32, i32
  }
  func.func @transform_1(%arg0: i32) -> (i32, i32) {
    %c0_i32 = arith.constant 0 : i32
    %c0_i32_0 = arith.constant 0 : i32
    %c0_i32_1 = arith.constant 0 : i32
    return %c0_i32, %c0_i32_0 : i32, i32
  }
  func.func @transform_2(%arg0: i32) -> (i32, i32) {
    %c0_i32 = arith.constant 0 : i32
    %c0_i32_0 = arith.constant 0 : i32
    return %arg0, %c0_i32 : i32, i32
  }
  func.func @transform_3(%arg0: i32) -> (i32, i32) {
    %c0_i32 = arith.constant 0 : i32
    %c0_i32_0 = arith.constant 0 : i32
    return %arg0, %c0_i32 : i32, i32
  }
}

</mosaic_0001>

<llo_original>
// kernel: model_forward.1
$region0: #{model_forward.1}
  #allocation0 [shape = 'u32[]', space=smem, size = 0x4, offset = 0x4, fixed_abs, tag = 'smem constant byte address 0x4 - core index']
  #allocation1 [shape = 'u32[72,128]{1,0:T(1,128)}', space=vmem, size = 0x9000, scoped, tag = 'internal scratch']
  %s0 = inlined_call_operand.vmem [shape: f32[288,9], index: 0, kind: input, shape index: {}]
  %s1 = inlined_call_operand.vmem [shape: f32[9,2916], index: 1, kind: input, shape index: {}]
  %s2 = inlined_call_operand.vmem [shape: f32[288,2916], index: 2, kind: input, shape index: {}]
  %s3 = inlined_call_operand.vmem [shape: f32[288,2916], index: 3, kind: output, shape index: {}]
  %s4 = sld [smem:[#allocation0]]
  $region45: #{model_forward.1} parent=0
    _
  %s6 = ssub.s32 1, %s4
  %s7 = scalar_select 0, %s6, %s4
  loop: start=0, step=1, limit=4
  $region2: #{model_forward.1} parent=0 // loop_pre_header
    _
  $region3: #{model_forward.1} parent=0 // loop_header
    %s9 = sphi 0, %s13
    %p10 = scmp.ge.s32.totalorder %s9, 4
    %s19 = sphi 0, %s21
    %s22 = sphi 0, %s19
    %s23 = sphi 0, %s22
    %s39 = sphi 0, %s23
    %s43 = sphi 0, %s43
    %s45 = sphi 0, %s43
    %s46 = sphi 0, %s45
    %s60 = sphi 0, %s46
    %s66 = sphi 0, %s68
    %s69 = sphi 0, %s66
    %s70 = sphi 0, %s69
    %s86 = sphi 0, %s70
    %s92 = sphi 0, %s94
    %s95 = sphi 0, %s92
    %s96 = sphi 0, %s95
    %s112 = sphi 0, %s96
  $region4: #{model_forward.1} parent=0 // loop_header_branch
    %12 = sbr.rel (%p10) target = $region8
  $region5: #{model_forward.1} parent=0 // loop_body
    %s14 = ssub.s32 %s9, 1
    %s15 = ssub.s32 %s9, 2
    %s16 = sadd.s32 %s9, 1
    %s17 = ssub.s32 %s9, %s16
    %p18 = scmp.eq.s32.totalorder %s17, 0
    %s20 = sadd.s32 %s19, 1
    %s21 = scalar_select %p18, %s19, %s20
    %p24 = pneg %p18
    %p25 = scmp.eq.s32.totalorder %s9, 1
    %p26 = por %p24, %p25
    %p27 = scmp.ne.s32.totalorder %s19, %s22
    %p28 = scmp.eq.s32.totalorder %s9, 0
    %p29 = por %p27, %p28
    %p30 = scmp.ne.s32.totalorder %s19, %s22
    %p31 = scmp.eq.s32.totalorder %s14, 1
    %p32 = por %p30, %p31
    %p33 = scmp.ne.s32.totalorder %s22, %s23
    %p34 = scmp.eq.s32.totalorder %s14, 0
    %p35 = por %p33, %p34
    %p36 = scmp.ne.s32.totalorder %s22, %s23
    %p37 = scmp.eq.s32.totalorder %s15, 1
    %p38 = por %p36, %p37
    %p40 = scmp.ne.s32.totalorder %s23, %s39
    %p41 = scmp.eq.s32.totalorder %s15, 0
    %p42 = por %p40, %p41
    %s44 = sadd.s32 %s43, 1
    %p47 = scmp.eq.s32.totalorder %s9, 1
    %p48 = scmp.ne.s32.totalorder %s43, %s45
    %p49 = scmp.eq.s32.totalorder %s9, 0
    %p50 = por %p48, %p49
    %p51 = scmp.ne.s32.totalorder %s43, %s45
    %p52 = scmp.eq.s32.totalorder %s14, 1
    %p53 = por %p51, %p52
    %p54 = scmp.ne.s32.totalorder %s45, %s46
    %p55 = scmp.eq.s32.totalorder %s14, 0
    %p56 = por %p54, %p55
    %p57 = scmp.ne.s32.totalorder %s45, %s46
    %p58 = scmp.eq.s32.totalorder %s15, 1
    %p59 = por %p57, %p58
    %p61 = scmp.ne.s32.totalorder %s46, %s60
    %p62 = scmp.eq.s32.totalorder %s15, 0
    %p63 = por %p61, %p62
    %s64 = ssub.s32 %s9, %s16
    %p65 = scmp.eq.s32.totalorder %s64, 0
    %s67 = sadd.s32 %s66, 1
    %s68 = scalar_select %p65, %s66, %s67
    %p71 = pneg %p65
    %p72 = scmp.eq.s32.totalorder %s9, 1
    %p73 = por %p71, %p72
    %p74 = scmp.ne.s32.totalorder %s66, %s69
    %p75 = scmp.eq.s32.totalorder %s9, 0
    %p76 = por %p74, %p75
    %p77 = scmp.ne.s32.totalorder %s66, %s69
    %p78 = scmp.eq.s32.totalorder %s14, 1
    %p79 = por %p77, %p78
    %p80 = scmp.ne.s32.totalorder %s69, %s70
    %p81 = scmp.eq.s32.totalorder %s14, 0
    %p82 = por %p80, %p81
    %p83 = scmp.ne.s32.totalorder %s69, %s70
    %p84 = scmp.eq.s32.totalorder %s15, 1
    %p85 = por %p83, %p84
    %p87 = scmp.ne.s32.totalorder %s70, %s86
    %p88 = scmp.eq.s32.totalorder %s15, 0
    %p89 = por %p87, %p88
    %s90 = ssub.s32 %s9, %s16
    %p91 = scmp.eq.s32.totalorder %s90, 0
    %s93 = sadd.s32 %s92, 1
    %s94 = scalar_select %p91, %s92, %s93
    %p97 = pneg %p91
    %p98 = scmp.eq.s32.totalorder %s9, 1
    %p99 = por %p97, %p98
    %p100 = scmp.ne.s32.totalorder %s92, %s95
    %p101 = scmp.eq.s32.totalorder %s9, 0
    %p102 = por %p100, %p101
    %p103 = scmp.ne.s32.totalorder %s92, %s95
    %p104 = scmp.eq.s32.totalorder %s14, 1
    %p105 = por %p103, %p104
    %p106 = scmp.ne.s32.totalorder %s95, %s96
    %p107 = scmp.eq.s32.totalorder %s14, 0
    %p108 = por %p106, %p107
    %p109 = scmp.ne.s32.totalorder %s95, %s96
    %p110 = scmp.eq.s32.totalorder %s15, 1
    %p111 = por %p109, %p110
    %p113 = scmp.ne.s32.totalorder %s96, %s112
    %p114 = scmp.eq.s32.totalorder %s15, 0
    %p115 = por %p113, %p114
    %p116 = scmp.le.s32.totalorder 1, %s9
    %p117 = scmp.lt.s32.totalorder %s9, 3
    %p118 = pnand %p116, %p117
    %p119 = pneg %p118
    // Predicated region
    $region9: #{model_forward.1} parent=5 // pred_check
      _
    $region10: #{model_forward.1} parent=5 // pred_check_branch
      %121 = sbr.rel (%p118) target = $region12
    $region11: #{model_forward.1} parent=5 // pred_region
      %s122 = ssub.s32 %s9, 1
      // Predicated region
      $region13: #{model_forward.1} parent=11 // pred_check
        %p123 = pneg %p56
      $region14: #{model_forward.1} parent=11 // pred_check_branch
        %125 = sbr.rel (%p123) target = $region16
      $region15: #{model_forward.1} parent=11 // pred_region
        _
      $region16: #{model_forward.1} parent=11 // pred_fallthru
        _
    $region12: #{model_forward.1} parent=5 // pred_fallthru
      _
    %p126 = scmp.lt.s32.totalorder %s9, 2
    // Predicated region
    $region17: #{model_forward.1} parent=5 // pred_check
      %p127 = pneg %p126
    $region18: #{model_forward.1} parent=5 // pred_check_branch
      %129 = sbr.rel (%p127) target = $region20
    $region19: #{model_forward.1} parent=5 // pred_region
      // Predicated region
      $region21: #{model_forward.1} parent=19 // pred_check
        %p130 = pneg %p29
      $region22: #{model_forward.1} parent=19 // pred_check_branch
        %132 = sbr.rel (%p130) target = $region24
      $region23: #{model_forward.1} parent=19 // pred_region
        %s133 = smul.u32 18, %s9
        %p134 = scmp.lt.s32.totalorder %s133, 35
        %s135 = scalar_select %p134, %s133, 35
        %s136 = smul.addr %s135, 8
        %s137 = scalar_lea.vmem %s0, %s136
        %s138 = smul.u32 18, %s9
      $region24: #{model_forward.1} parent=19 // pred_fallthru
        _
      // Predicated region
      $region25: #{model_forward.1} parent=19 // pred_check
        %p139 = pneg %p76
      $region26: #{model_forward.1} parent=19 // pred_check_branch
        %141 = sbr.rel (%p139) target = $region28
      $region27: #{model_forward.1} parent=19 // pred_region
        %s142 = smul.u32 18, %s9
        %p143 = scmp.lt.s32.totalorder %s142, 35
        %s144 = scalar_select %p143, %s142, 35
        %s145 = smul.addr %s144, 23
        %s146 = smul.addr %s145, 8
        %s147 = scalar_lea.vmem %s2, %s146
        %s148 = smul.u32 18, %s9
      $region28: #{model_forward.1} parent=19 // pred_fallthru
        _
    $region20: #{model_forward.1} parent=5 // pred_fallthru
      _
    %p149 = scmp.le.s32.totalorder 1, %s9
    %p150 = scmp.lt.s32.totalorder %s9, 3
    %p151 = pnand %p149, %p150
    %p152 = pneg %p151
    // Predicated region
    $region29: #{model_forward.1} parent=5 // pred_check
      _
    $region30: #{model_forward.1} parent=5 // pred_check_branch
      %154 = sbr.rel (%p151) target = $region32
    $region31: #{model_forward.1} parent=5 // pred_region
      %s155 = ssub.s32 %s9, 1
      %s156 = smul.u32 18, %s14
      %p157 = scmp.lt.s32.totalorder %s156, 35
      %s158 = scalar_select %p157, %s156, 35
      %s159 = smul.addr %s158, 8
      %s160 = scalar_lea.vmem %s0, %s159
      %p161 = pneg %p35
      %p162 = pneg %p32
      %p163 = pneg %p56
      %p164 = pneg %p53
      %s165 = smul.u32 18, %s14
      %p166 = scmp.lt.s32.totalorder %s165, 35
      %s167 = scalar_select %p166, %s165, 35
      %s168 = smul.addr %s167, 23
      %s169 = smul.addr %s168, 8
      %s170 = scalar_lea.vmem %s2, %s169
      %p171 = pneg %p82
      %p172 = pneg %p79
      %p173 = pneg %p108
      %p174 = pneg %p105
      %s175 = smul.u32 18, %s14
      %p176 = scmp.lt.s32.totalorder %s175, 35
      %s177 = scalar_select %p176, %s175, 35
      %s178 = smul.addr %s177, 23
      %s179 = smul.addr %s178, 8
      %s180 = scalar_lea.vmem %s3, %s179
      %s181 = smul.u32 18, %s14
      %p182 = scmp.lt.s32.totalorder %s181, 35
      %s183 = scalar_select %p182, %s181, 35
      %s184 = smul.addr %s183, 8
      %s185 = scalar_lea.vmem %s0, %s184
      %s186 = smul.u32 18, %s14
      %s187 = smul.u32 18, %s14
      %p188 = scmp.lt.s32.totalorder %s187, 35
      %s189 = scalar_select %p188, %s187, 35
      %s190 = smul.addr %s189, 23
      %s191 = smul.addr %s190, 8
      %s192 = scalar_lea.vmem %s2, %s191
      %s193 = smul.u32 18, %s14
      %s194 = smul.u32 18, %s14
      %p195 = scmp.lt.s32.totalorder %s194, 35
      %s196 = scalar_select %p195, %s194, 35
      %s197 = smul.addr %s196, 23
      %s198 = smul.addr %s197, 8
      %s199 = scalar_lea.vmem %s3, %s198
      %s200 = smul.u32 18, %s14
      %v201 = vld [vmem:[%s185] sm:$0xff]
      %v202 = vld [vmem:[%s185 + $0x8] sm:$0xff]
      %v203 = vld [vmem:[%s185 + $0x10] sm:$0xff]
      %v204 = vld [vmem:[%s185 + $0x18] sm:$0xff]
      %v205 = vld [vmem:[%s185 + $0x20] sm:$0xff]
      %v206 = vld [vmem:[%s185 + $0x28] sm:$0xff]
      %v207 = vld [vmem:[%s185 + $0x30] sm:$0xff]
      %v208 = vld [vmem:[%s185 + $0x38] sm:$0xff]
      %v209 = vld [vmem:[%s185 + $0x40] sm:$0xff]
      %v210 = vld [vmem:[%s185 + $0x48] sm:$0xff]
      %v211 = vld [vmem:[%s185 + $0x50] sm:$0xff]
      %v212 = vld [vmem:[%s185 + $0x58] sm:$0xff]
      %v213 = vld [vmem:[%s185 + $0x60] sm:$0xff]
      %v214 = vld [vmem:[%s185 + $0x68] sm:$0xff]
      %v215 = vld [vmem:[%s185 + $0x70] sm:$0xff]
      %v216 = vld [vmem:[%s185 + $0x78] sm:$0xff]
      %v217 = vld [vmem:[%s185 + $0x80] sm:$0xff]
      %v218 = vld [vmem:[%s185 + $0x88] sm:$0xff]
      %v219 = vld [vmem:[%s1] sm:$0xff]
      %v220 = vld [vmem:[%s1 + $0x8] sm:$0xff]
      %v221 = vld [vmem:[%s1 + $0x10] sm:$0xff]
      %v222 = vld [vmem:[%s1 + $0x18] sm:$0xff]
      %v223 = vld [vmem:[%s1 + $0x20] sm:$0xff]
      %v224 = vld [vmem:[%s1 + $0x28] sm:$0xff]
      %v225 = vld [vmem:[%s1 + $0x30] sm:$0xff]
      %v226 = vld [vmem:[%s1 + $0x38] sm:$0xff]
      %v227 = vld [vmem:[%s1 + $0x40] sm:$0xff]
      %v228 = vld [vmem:[%s1 + $0x48] sm:$0xff]
      %v229 = vld [vmem:[%s1 + $0x50] sm:$0xff]
      %v230 = vld [vmem:[%s1 + $0x58] sm:$0xff]
      %v231 = vld [vmem:[%s1 + $0x60] sm:$0xff]
      %v232 = vld [vmem:[%s1 + $0x68] sm:$0xff]
      %v233 = vld [vmem:[%s1 + $0x70] sm:$0xff]
      %v234 = vld [vmem:[%s1 + $0x78] sm:$0xff]
      %v235 = vld [vmem:[%s1 + $0x80] sm:$0xff]
      %v236 = vld [vmem:[%s1 + $0x88] sm:$0xff]
      %v237 = vld [vmem:[%s1 + $0x90] sm:$0xff]
      %v238 = vld [vmem:[%s1 + $0x98] sm:$0xff]
      %v239 = vld [vmem:[%s1 + $0xa0] sm:$0xff]
      %v240 = vld [vmem:[%s1 + $0xa8] sm:$0xff]
      %v241 = vld [vmem:[%s1 + $0xb0] sm:$0xff]
      %v242 = vld [vmem:[%s1 + $0xb8] sm:$0x1]
      %v243 = vld [vmem:[%s1 + $0xc0] sm:$0x1]
      %v244 = vld [vmem:[%s1 + $0xc8] sm:$0x1]
      %v245 = vld [vmem:[%s1 + $0xd0] sm:$0x1]
      %v246 = vld [vmem:[%s1 + $0xd8] sm:$0x1]
      %v247 = vld [vmem:[%s1 + $0xe0] sm:$0x1]
      %v248 = vld [vmem:[%s1 + $0xe8] sm:$0x1]
      %v249 = vld [vmem:[%s1 + $0xf0] sm:$0x1]
      %v250 = vld [vmem:[%s1 + $0xf8] sm:$0x1]
      %v251 = vld [vmem:[%s1 + $0x100] sm:$0x1]
      %v252 = vld [vmem:[%s1 + $0x108] sm:$0x1]
      %v253 = vld [vmem:[%s1 + $0x110] sm:$0x1]
      %v254 = vld [vmem:[%s1 + $0x118] sm:$0x1]
      %v255 = vld [vmem:[%s1 + $0x120] sm:$0x1]
      %v256 = vld [vmem:[%s1 + $0x128] sm:$0x1]
      %v257 = vld [vmem:[%s1 + $0x130] sm:$0x1]
      %v258 = vld [vmem:[%s1 + $0x138] sm:$0x1]
      %v259 = vld [vmem:[%s1 + $0x140] sm:$0x1]
      %v260 = vld [vmem:[%s1 + $0x148] sm:$0x1]
      %v261 = vld [vmem:[%s1 + $0x150] sm:$0x1]
      %v262 = vld [vmem:[%s1 + $0x158] sm:$0x1]
      %v263 = vld [vmem:[%s1 + $0x160] sm:$0x1]
      %v264 = vld [vmem:[%s1 + $0x168] sm:$0x1]
      %v265 = vld [vmem:[%s192] sm:$0xff]
      %v266 = vld [vmem:[%s192 + $0x8] sm:$0xff]
      %v267 = vld [vmem:[%s192 + $0x10] sm:$0xff]
      %v268 = vld [vmem:[%s192 + $0x18] sm:$0xff]
      %v269 = vld [vmem:[%s192 + $0x20] sm:$0xff]
      %v270 = vld [vmem:[%s192 + $0x28] sm:$0xff]
      %v271 = vld [vmem:[%s192 + $0x30] sm:$0xff]
      %v272 = vld [vmem:[%s192 + $0x38] sm:$0xff]
      %v273 = vld [vmem:[%s192 + $0x40] sm:$0xff]
      %v274 = vld [vmem:[%s192 + $0x48] sm:$0xff]
      %v275 = vld [vmem:[%s192 + $0x50] sm:$0xff]
      %v276 = vld [vmem:[%s192 + $0x58] sm:$0xff]
      %v277 = vld [vmem:[%s192 + $0x60] sm:$0xff]
      %v278 = vld [vmem:[%s192 + $0x68] sm:$0xff]
      %v279 = vld [vmem:[%s192 + $0x70] sm:$0xff]
      %v280 = vld [vmem:[%s192 + $0x78] sm:$0xff]
      %v281 = vld [vmem:[%s192 + $0x80] sm:$0xff]
      %v282 = vld [vmem:[%s192 + $0x88] sm:$0xff]
      %v283 = vld [vmem:[%s192 + $0x90] sm:$0xff]
      %v284 = vld [vmem:[%s192 + $0x98] sm:$0xff]
      %v285 = vld [vmem:[%s192 + $0xa0] sm:$0xff]
      %v286 = vld [vmem:[%s192 + $0xa8] sm:$0xff]
      %v287 = vld [vmem:[%s192 + $0xb0] sm:$0xff]
      %v288 = vld [vmem:[%s192 + $0xb8] sm:$0xff]
      %v289 = vld [vmem:[%s192 + $0xc0] sm:$0xff]
      %v290 = vld [vmem:[%s192 + $0xc8] sm:$0xff]
      %v291 = vld [vmem:[%s192 + $0xd0] sm:$0xff]
      %v292 = vld [vmem:[%s192 + $0xd8] sm:$0xff]
      %v293 = vld [vmem:[%s192 + $0xe0] sm:$0xff]
      %v294 = vld [vmem:[%s192 + $0xe8] sm:$0xff]
      %v295 = vld [vmem:[%s192 + $0xf0] sm:$0xff]
      %v296 = vld [vmem:[%s192 + $0xf8] sm:$0xff]
      %v297 = vld [vmem:[%s192 + $0x100] sm:$0xff]
      %v298 = vld [vmem:[%s192 + $0x108] sm:$0xff]
      %v299 = vld [vmem:[%s192 + $0x110] sm:$0xff]
      %v300 = vld [vmem:[%s192 + $0x118] sm:$0xff]
      %v301 = vld [vmem:[%s192 + $0x120] sm:$0xff]
      %v302 = vld [vmem:[%s192 + $0x128] sm:$0xff]
      %v303 = vld [vmem:[%s192 + $0x130] sm:$0xff]
      %v304 = vld [vmem:[%s192 + $0x138] sm:$0xff]
      %v305 = vld [vmem:[%s192 + $0x140] sm:$0xff]
      %v306 = vld [vmem:[%s192 + $0x148] sm:$0xff]
      %v307 = vld [vmem:[%s192 + $0x150] sm:$0xff]
      %v308 = vld [vmem:[%s192 + $0x158] sm:$0xff]
      %v309 = vld [vmem:[%s192 + $0x160] sm:$0xff]
      %v310 = vld [vmem:[%s192 + $0x168] sm:$0xff]
      %v311 = vld [vmem:[%s192 + $0x170] sm:$0xff]
      %v312 = vld [vmem:[%s192 + $0x178] sm:$0xff]
      %v313 = vld [vmem:[%s192 + $0x180] sm:$0xff]
      %v314 = vld [vmem:[%s192 + $0x188] sm:$0xff]
      %v315 = vld [vmem:[%s192 + $0x190] sm:$0xff]
      %v316 = vld [vmem:[%s192 + $0x198] sm:$0xff]
      %v317 = vld [vmem:[%s192 + $0x1a0] sm:$0xff]
      %v318 = vld [vmem:[%s192 + $0x1a8] sm:$0xff]
      %v319 = vld [vmem:[%s192 + $0x1b0] sm:$0xff]
      %v320 = vld [vmem:[%s192 + $0x1b8] sm:$0xff]
      %v321 = vld [vmem:[%s192 + $0x1c0] sm:$0xff]
      %v322 = vld [vmem:[%s192 + $0x1c8] sm:$0xff]
      %v323 = vld [vmem:[%s192 + $0x1d0] sm:$0xff]
      %v324 = vld [vmem:[%s192 + $0x1d8] sm:$0xff]
      %v325 = vld [vmem:[%s192 + $0x1e0] sm:$0xff]
      %v326 = vld [vmem:[%s192 + $0x1e8] sm:$0xff]
      %v327 = vld [vmem:[%s192 + $0x1f0] sm:$0xff]
      %v328 = vld [vmem:[%s192 + $0x1f8] sm:$0xff]
      %v329 = vld [vmem:[%s192 + $0x200] sm:$0xff]
      %v330 = vld [vmem:[%s192 + $0x208] sm:$0xff]
      %v331 = vld [vmem:[%s192 + $0x210] sm:$0xff]
      %v332 = vld [vmem:[%s192 + $0x218] sm:$0xff]
      %v333 = vld [vmem:[%s192 + $0x220] sm:$0xff]
      %v334 = vld [vmem:[%s192 + $0x228] sm:$0xff]
      %v335 = vld [vmem:[%s192 + $0x230] sm:$0xff]
      %v336 = vld [vmem:[%s192 + $0x238] sm:$0xff]
      %v337 = vld [vmem:[%s192 + $0x240] sm:$0xff]
      %v338 = vld [vmem:[%s192 + $0x248] sm:$0xff]
      %v339 = vld [vmem:[%s192 + $0x250] sm:$0xff]
      %v340 = vld [vmem:[%s192 + $0x258] sm:$0xff]
      %v341 = vld [vmem:[%s192 + $0x260] sm:$0xff]
      %v342 = vld [vmem:[%s192 + $0x268] sm:$0xff]
      %v343 = vld [vmem:[%s192 + $0x270] sm:$0xff]
      %v344 = vld [vmem:[%s192 + $0x278] sm:$0xff]
      %v345 = vld [vmem:[%s192 + $0x280] sm:$0xff]
      %v346 = vld [vmem:[%s192 + $0x288] sm:$0xff]
      %v347 = vld [vmem:[%s192 + $0x290] sm:$0xff]
      %v348 = vld [vmem:[%s192 + $0x298] sm:$0xff]
      %v349 = vld [vmem:[%s192 + $0x2a0] sm:$0xff]
      %v350 = vld [vmem:[%s192 + $0x2a8] sm:$0xff]
      %v351 = vld [vmem:[%s192 + $0x2b0] sm:$0xff]
      %v352 = vld [vmem:[%s192 + $0x2b8] sm:$0xff]
      %v353 = vld [vmem:[%s192 + $0x2c0] sm:$0xff]
      %v354 = vld [vmem:[%s192 + $0x2c8] sm:$0xff]
      %v355 = vld [vmem:[%s192 + $0x2d0] sm:$0xff]
      %v356 = vld [vmem:[%s192 + $0x2d8] sm:$0xff]
      %v357 = vld [vmem:[%s192 + $0x2e0] sm:$0xff]
      %v358 = vld [vmem:[%s192 + $0x2e8] sm:$0xff]
      %v359 = vld [vmem:[%s192 + $0x2f0] sm:$0xff]
      %v360 = vld [vmem:[%s192 + $0x2f8] sm:$0xff]
      %v361 = vld [vmem:[%s192 + $0x300] sm:$0xff]
      %v362 = vld [vmem:[%s192 + $0x308] sm:$0xff]
      %v363 = vld [vmem:[%s192 + $0x310] sm:$0xff]
      %v364 = vld [vmem:[%s192 + $0x318] sm:$0xff]
      %v365 = vld [vmem:[%s192 + $0x320] sm:$0xff]
      %v366 = vld [vmem:[%s192 + $0x328] sm:$0xff]
      %v367 = vld [vmem:[%s192 + $0x330] sm:$0xff]
      %v368 = vld [vmem:[%s192 + $0x338] sm:$0xff]
      %v369 = vld [vmem:[%s192 + $0x340] sm:$0xff]
      %v370 = vld [vmem:[%s192 + $0x348] sm:$0xff]
      %v371 = vld [vmem:[%s192 + $0x350] sm:$0xff]
      %v372 = vld [vmem:[%s192 + $0x358] sm:$0xff]
      %v373 = vld [vmem:[%s192 + $0x360] sm:$0xff]
      %v374 = vld [vmem:[%s192 + $0x368] sm:$0xff]
      %v375 = vld [vmem:[%s192 + $0x370] sm:$0xff]
      %v376 = vld [vmem:[%s192 + $0x378] sm:$0xff]
      %v377 = vld [vmem:[%s192 + $0x380] sm:$0xff]
      %v378 = vld [vmem:[%s192 + $0x388] sm:$0xff]
      %v379 = vld [vmem:[%s192 + $0x390] sm:$0xff]
      %v380 = vld [vmem:[%s192 + $0x398] sm:$0xff]
      %v381 = vld [vmem:[%s192 + $0x3a0] sm:$0xff]
      %v382 = vld [vmem:[%s192 + $0x3a8] sm:$0xff]
      %v383 = vld [vmem:[%s192 + $0x3b0] sm:$0xff]
      %v384 = vld [vmem:[%s192 + $0x3b8] sm:$0xff]
      %v385 = vld [vmem:[%s192 + $0x3c0] sm:$0xff]
      %v386 = vld [vmem:[%s192 + $0x3c8] sm:$0xff]
      %v387 = vld [vmem:[%s192 + $0x3d0] sm:$0xff]
      %v388 = vld [vmem:[%s192 + $0x3d8] sm:$0xff]
      %v389 = vld [vmem:[%s192 + $0x3e0] sm:$0xff]
      %v390 = vld [vmem:[%s192 + $0x3e8] sm:$0xff]
      %v391 = vld [vmem:[%s192 + $0x3f0] sm:$0xff]
      %v392 = vld [vmem:[%s192 + $0x3f8] sm:$0xff]
      %v393 = vld [vmem:[%s192 + $0x400] sm:$0xff]
      %v394 = vld [vmem:[%s192 + $0x408] sm:$0xff]
      %v395 = vld [vmem:[%s192 + $0x410] sm:$0xff]
      %v396 = vld [vmem:[%s192 + $0x418] sm:$0xff]
      %v397 = vld [vmem:[%s192 + $0x420] sm:$0xff]
      %v398 = vld [vmem:[%s192 + $0x428] sm:$0xff]
      %v399 = vld [vmem:[%s192 + $0x430] sm:$0xff]
      %v400 = vld [vmem:[%s192 + $0x438] sm:$0xff]
      %v401 = vld [vmem:[%s192 + $0x440] sm:$0xff]
      %v402 = vld [vmem:[%s192 + $0x448] sm:$0xff]
      %v403 = vld [vmem:[%s192 + $0x450] sm:$0xff]
      %v404 = vld [vmem:[%s192 + $0x458] sm:$0xff]
      %v405 = vld [vmem:[%s192 + $0x460] sm:$0xff]
      %v406 = vld [vmem:[%s192 + $0x468] sm:$0xff]
      %v407 = vld [vmem:[%s192 + $0x470] sm:$0xff]
      %v408 = vld [vmem:[%s192 + $0x478] sm:$0xff]
      %v409 = vld [vmem:[%s192 + $0x480] sm:$0xff]
      %v410 = vld [vmem:[%s192 + $0x488] sm:$0xff]
      %v411 = vld [vmem:[%s192 + $0x490] sm:$0xff]
      %v412 = vld [vmem:[%s192 + $0x498] sm:$0xff]
      %v413 = vld [vmem:[%s192 + $0x4a0] sm:$0xff]
      %v414 = vld [vmem:[%s192 + $0x4a8] sm:$0xff]
      %v415 = vld [vmem:[%s192 + $0x4b0] sm:$0xff]
      %v416 = vld [vmem:[%s192 + $0x4b8] sm:$0xff]
      %v417 = vld [vmem:[%s192 + $0x4c0] sm:$0xff]
      %v418 = vld [vmem:[%s192 + $0x4c8] sm:$0xff]
      %v419 = vld [vmem:[%s192 + $0x4d0] sm:$0xff]
      %v420 = vld [vmem:[%s192 + $0x4d8] sm:$0xff]
      %v421 = vld [vmem:[%s192 + $0x4e0] sm:$0xff]
      %v422 = vld [vmem:[%s192 + $0x4e8] sm:$0xff]
      %v423 = vld [vmem:[%s192 + $0x4f0] sm:$0xff]
      %v424 = vld [vmem:[%s192 + $0x4f8] sm:$0xff]
      %v425 = vld [vmem:[%s192 + $0x500] sm:$0xff]
      %v426 = vld [vmem:[%s192 + $0x508] sm:$0xff]
      %v427 = vld [vmem:[%s192 + $0x510] sm:$0xff]
      %v428 = vld [vmem:[%s192 + $0x518] sm:$0xff]
      %v429 = vld [vmem:[%s192 + $0x520] sm:$0xff]
      %v430 = vld [vmem:[%s192 + $0x528] sm:$0xff]
      %v431 = vld [vmem:[%s192 + $0x530] sm:$0xff]
      %v432 = vld [vmem:[%s192 + $0x538] sm:$0xff]
      %v433 = vld [vmem:[%s192 + $0x540] sm:$0xff]
      %v434 = vld [vmem:[%s192 + $0x548] sm:$0xff]
      %v435 = vld [vmem:[%s192 + $0x550] sm:$0xff]
      %v436 = vld [vmem:[%s192 + $0x558] sm:$0xff]
      %v437 = vld [vmem:[%s192 + $0x560] sm:$0xff]
      %v438 = vld [vmem:[%s192 + $0x568] sm:$0xff]
      %v439 = vld [vmem:[%s192 + $0x570] sm:$0xff]
      %v440 = vld [vmem:[%s192 + $0x578] sm:$0xff]
      %v441 = vld [vmem:[%s192 + $0x580] sm:$0xff]
      %v442 = vld [vmem:[%s192 + $0x588] sm:$0xff]
      %v443 = vld [vmem:[%s192 + $0x590] sm:$0xff]
      %v444 = vld [vmem:[%s192 + $0x598] sm:$0xff]
      %v445 = vld [vmem:[%s192 + $0x5a0] sm:$0xff]
      %v446 = vld [vmem:[%s192 + $0x5a8] sm:$0xff]
      %v447 = vld [vmem:[%s192 + $0x5b0] sm:$0xff]
      %v448 = vld [vmem:[%s192 + $0x5b8] sm:$0xff]
      %v449 = vld [vmem:[%s192 + $0x5c0] sm:$0xff]
      %v450 = vld [vmem:[%s192 + $0x5c8] sm:$0xff]
      %v451 = vld [vmem:[%s192 + $0x5d0] sm:$0xff]
      %v452 = vld [vmem:[%s192 + $0x5d8] sm:$0xff]
      %v453 = vld [vmem:[%s192 + $0x5e0] sm:$0xff]
      %v454 = vld [vmem:[%s192 + $0x5e8] sm:$0xff]
      %v455 = vld [vmem:[%s192 + $0x5f0] sm:$0xff]
      %v456 = vld [vmem:[%s192 + $0x5f8] sm:$0xff]
      %v457 = vld [vmem:[%s192 + $0x600] sm:$0xff]
      %v458 = vld [vmem:[%s192 + $0x608] sm:$0xff]
      %v459 = vld [vmem:[%s192 + $0x610] sm:$0xff]
      %v460 = vld [vmem:[%s192 + $0x618] sm:$0xff]
      %v461 = vld [vmem:[%s192 + $0x620] sm:$0xff]
      %v462 = vld [vmem:[%s192 + $0x628] sm:$0xff]
      %v463 = vld [vmem:[%s192 + $0x630] sm:$0xff]
      %v464 = vld [vmem:[%s192 + $0x638] sm:$0xff]
      %v465 = vld [vmem:[%s192 + $0x640] sm:$0xff]
      %v466 = vld [vmem:[%s192 + $0x648] sm:$0xff]
      %v467 = vld [vmem:[%s192 + $0x650] sm:$0xff]
      %v468 = vld [vmem:[%s192 + $0x658] sm:$0xff]
      %v469 = vld [vmem:[%s192 + $0x660] sm:$0xff]
      %v470 = vld [vmem:[%s192 + $0x668] sm:$0xff]
      %v471 = vld [vmem:[%s192 + $0x670] sm:$0xff]
      %v472 = vld [vmem:[%s192 + $0x678] sm:$0xff]
      %v473 = vld [vmem:[%s192 + $0x680] sm:$0xff]
      %v474 = vld [vmem:[%s192 + $0x688] sm:$0xff]
      %v475 = vld [vmem:[%s192 + $0x690] sm:$0xff]
      %v476 = vld [vmem:[%s192 + $0x698] sm:$0xff]
      %v477 = vld [vmem:[%s192 + $0x6a0] sm:$0xff]
      %v478 = vld [vmem:[%s192 + $0x6a8] sm:$0xff]
      %v479 = vld [vmem:[%s192 + $0x6b0] sm:$0xff]
      %v480 = vld [vmem:[%s192 + $0x6b8] sm:$0xff]
      %v481 = vld [vmem:[%s192 + $0x6c0] sm:$0xff]
      %v482 = vld [vmem:[%s192 + $0x6c8] sm:$0xff]
      %v483 = vld [vmem:[%s192 + $0x6d0] sm:$0xff]
      %v484 = vld [vmem:[%s192 + $0x6d8] sm:$0xff]
      %v485 = vld [vmem:[%s192 + $0x6e0] sm:$0xff]
      %v486 = vld [vmem:[%s192 + $0x6e8] sm:$0xff]
      %v487 = vld [vmem:[%s192 + $0x6f0] sm:$0xff]
      %v488 = vld [vmem:[%s192 + $0x6f8] sm:$0xff]
      %v489 = vld [vmem:[%s192 + $0x700] sm:$0xff]
      %v490 = vld [vmem:[%s192 + $0x708] sm:$0xff]
      %v491 = vld [vmem:[%s192 + $0x710] sm:$0xff]
      %v492 = vld [vmem:[%s192 + $0x718] sm:$0xff]
      %v493 = vld [vmem:[%s192 + $0x720] sm:$0xff]
      %v494 = vld [vmem:[%s192 + $0x728] sm:$0xff]
      %v495 = vld [vmem:[%s192 + $0x730] sm:$0xff]
      %v496 = vld [vmem:[%s192 + $0x738] sm:$0xff]
      %v497 = vld [vmem:[%s192 + $0x740] sm:$0xff]
      %v498 = vld [vmem:[%s192 + $0x748] sm:$0xff]
      %v499 = vld [vmem:[%s192 + $0x750] sm:$0xff]
      %v500 = vld [vmem:[%s192 + $0x758] sm:$0xff]
      %v501 = vld [vmem:[%s192 + $0x760] sm:$0xff]
      %v502 = vld [vmem:[%s192 + $0x768] sm:$0xff]
      %v503 = vld [vmem:[%s192 + $0x770] sm:$0xff]
      %v504 = vld [vmem:[%s192 + $0x778] sm:$0xff]
      %v505 = vld [vmem:[%s192 + $0x780] sm:$0xff]
      %v506 = vld [vmem:[%s192 + $0x788] sm:$0xff]
      %v507 = vld [vmem:[%s192 + $0x790] sm:$0xff]
      %v508 = vld [vmem:[%s192 + $0x798] sm:$0xff]
      %v509 = vld [vmem:[%s192 + $0x7a0] sm:$0xff]
      %v510 = vld [vmem:[%s192 + $0x7a8] sm:$0xff]
      %v511 = vld [vmem:[%s192 + $0x7b0] sm:$0xff]
      %v512 = vld [vmem:[%s192 + $0x7b8] sm:$0xff]
      %v513 = vld [vmem:[%s192 + $0x7c0] sm:$0xff]
      %v514 = vld [vmem:[%s192 + $0x7c8] sm:$0xff]
      %v515 = vld [vmem:[%s192 + $0x7d0] sm:$0xff]
      %v516 = vld [vmem:[%s192 + $0x7d8] sm:$0xff]
      %v517 = vld [vmem:[%s192 + $0x7e0] sm:$0xff]
      %v518 = vld [vmem:[%s192 + $0x7e8] sm:$0xff]
      %v519 = vld [vmem:[%s192 + $0x7f0] sm:$0xff]
      %v520 = vld [vmem:[%s192 + $0x7f8] sm:$0xff]
      %v521 = vld [vmem:[%s192 + $0x800] sm:$0xff]
      %v522 = vld [vmem:[%s192 + $0x808] sm:$0xff]
      %v523 = vld [vmem:[%s192 + $0x810] sm:$0xff]
      %v524 = vld [vmem:[%s192 + $0x818] sm:$0xff]
      %v525 = vld [vmem:[%s192 + $0x820] sm:$0xff]
      %v526 = vld [vmem:[%s192 + $0x828] sm:$0xff]
      %v527 = vld [vmem:[%s192 + $0x830] sm:$0xff]
      %v528 = vld [vmem:[%s192 + $0x838] sm:$0xff]
      %v529 = vld [vmem:[%s192 + $0x840] sm:$0xff]
      %v530 = vld [vmem:[%s192 + $0x848] sm:$0xff]
      %v531 = vld [vmem:[%s192 + $0x850] sm:$0xff]
      %v532 = vld [vmem:[%s192 + $0x858] sm:$0xff]
      %v533 = vld [vmem:[%s192 + $0x860] sm:$0xff]
      %v534 = vld [vmem:[%s192 + $0x868] sm:$0xff]
      %v535 = vld [vmem:[%s192 + $0x870] sm:$0xff]
      %v536 = vld [vmem:[%s192 + $0x878] sm:$0xff]
      %v537 = vld [vmem:[%s192 + $0x880] sm:$0xff]
      %v538 = vld [vmem:[%s192 + $0x888] sm:$0xff]
      %v539 = vld [vmem:[%s192 + $0x890] sm:$0xff]
      %v540 = vld [vmem:[%s192 + $0x898] sm:$0xff]
      %v541 = vld [vmem:[%s192 + $0x8a0] sm:$0xff]
      %v542 = vld [vmem:[%s192 + $0x8a8] sm:$0xff]
      %v543 = vld [vmem:[%s192 + $0x8b0] sm:$0xff]
      %v544 = vld [vmem:[%s192 + $0x8b8] sm:$0xff]
      %v545 = vld [vmem:[%s192 + $0x8c0] sm:$0xff]
      %v546 = vld [vmem:[%s192 + $0x8c8] sm:$0xff]
      %v547 = vld [vmem:[%s192 + $0x8d0] sm:$0xff]
      %v548 = vld [vmem:[%s192 + $0x8d8] sm:$0xff]
      %v549 = vld [vmem:[%s192 + $0x8e0] sm:$0xff]
      %v550 = vld [vmem:[%s192 + $0x8e8] sm:$0xff]
      %v551 = vld [vmem:[%s192 + $0x8f0] sm:$0xff]
      %v552 = vld [vmem:[%s192 + $0x8f8] sm:$0xff]
      %v553 = vld [vmem:[%s192 + $0x900] sm:$0xff]
      %v554 = vld [vmem:[%s192 + $0x908] sm:$0xff]
      %v555 = vld [vmem:[%s192 + $0x910] sm:$0xff]
      %v556 = vld [vmem:[%s192 + $0x918] sm:$0xff]
      %v557 = vld [vmem:[%s192 + $0x920] sm:$0xff]
      %v558 = vld [vmem:[%s192 + $0x928] sm:$0xff]
      %v559 = vld [vmem:[%s192 + $0x930] sm:$0xff]
      %v560 = vld [vmem:[%s192 + $0x938] sm:$0xff]
      %v561 = vld [vmem:[%s192 + $0x940] sm:$0xff]
      %v562 = vld [vmem:[%s192 + $0x948] sm:$0xff]
      %v563 = vld [vmem:[%s192 + $0x950] sm:$0xff]
      %v564 = vld [vmem:[%s192 + $0x958] sm:$0xff]
      %v565 = vld [vmem:[%s192 + $0x960] sm:$0xff]
      %v566 = vld [vmem:[%s192 + $0x968] sm:$0xff]
      %v567 = vld [vmem:[%s192 + $0x970] sm:$0xff]
      %v568 = vld [vmem:[%s192 + $0x978] sm:$0xff]
      %v569 = vld [vmem:[%s192 + $0x980] sm:$0xff]
      %v570 = vld [vmem:[%s192 + $0x988] sm:$0xff]
      %v571 = vld [vmem:[%s192 + $0x990] sm:$0xff]
      %v572 = vld [vmem:[%s192 + $0x998] sm:$0xff]
      %v573 = vld [vmem:[%s192 + $0x9a0] sm:$0xff]
      %v574 = vld [vmem:[%s192 + $0x9a8] sm:$0xff]
      %v575 = vld [vmem:[%s192 + $0x9b0] sm:$0xff]
      %v576 = vld [vmem:[%s192 + $0x9b8] sm:$0xff]
      %v577 = vld [vmem:[%s192 + $0x9c0] sm:$0xff]
      %v578 = vld [vmem:[%s192 + $0x9c8] sm:$0xff]
      %v579 = vld [vmem:[%s192 + $0x9d0] sm:$0xff]
      %v580 = vld [vmem:[%s192 + $0x9d8] sm:$0xff]
      %v581 = vld [vmem:[%s192 + $0x9e0] sm:$0xff]
      %v582 = vld [vmem:[%s192 + $0x9e8] sm:$0xff]
      %v583 = vld [vmem:[%s192 + $0x9f0] sm:$0xff]
      %v584 = vld [vmem:[%s192 + $0x9f8] sm:$0xff]
      %v585 = vld [vmem:[%s192 + $0xa00] sm:$0xff]
      %v586 = vld [vmem:[%s192 + $0xa08] sm:$0xff]
      %v587 = vld [vmem:[%s192 + $0xa10] sm:$0xff]
      %v588 = vld [vmem:[%s192 + $0xa18] sm:$0xff]
      %v589 = vld [vmem:[%s192 + $0xa20] sm:$0xff]
      %v590 = vld [vmem:[%s192 + $0xa28] sm:$0xff]
      %v591 = vld [vmem:[%s192 + $0xa30] sm:$0xff]
      %v592 = vld [vmem:[%s192 + $0xa38] sm:$0xff]
      %v593 = vld [vmem:[%s192 + $0xa40] sm:$0xff]
      %v594 = vld [vmem:[%s192 + $0xa48] sm:$0xff]
      %v595 = vld [vmem:[%s192 + $0xa50] sm:$0xff]
      %v596 = vld [vmem:[%s192 + $0xa58] sm:$0xff]
      %v597 = vld [vmem:[%s192 + $0xa60] sm:$0xff]
      %v598 = vld [vmem:[%s192 + $0xa68] sm:$0xff]
      %v599 = vld [vmem:[%s192 + $0xa70] sm:$0xff]
      %v600 = vld [vmem:[%s192 + $0xa78] sm:$0xff]
      %v601 = vld [vmem:[%s192 + $0xa80] sm:$0xff]
      %v602 = vld [vmem:[%s192 + $0xa88] sm:$0xff]
      %v603 = vld [vmem:[%s192 + $0xa90] sm:$0xff]
      %v604 = vld [vmem:[%s192 + $0xa98] sm:$0xff]
      %v605 = vld [vmem:[%s192 + $0xaa0] sm:$0xff]
      %v606 = vld [vmem:[%s192 + $0xaa8] sm:$0xff]
      %v607 = vld [vmem:[%s192 + $0xab0] sm:$0xff]
      %v608 = vld [vmem:[%s192 + $0xab8] sm:$0xff]
      %v609 = vld [vmem:[%s192 + $0xac0] sm:$0xff]
      %v610 = vld [vmem:[%s192 + $0xac8] sm:$0xff]
      %v611 = vld [vmem:[%s192 + $0xad0] sm:$0xff]
      %v612 = vld [vmem:[%s192 + $0xad8] sm:$0xff]
      %v613 = vld [vmem:[%s192 + $0xae0] sm:$0xff]
      %v614 = vld [vmem:[%s192 + $0xae8] sm:$0xff]
      %v615 = vld [vmem:[%s192 + $0xaf0] sm:$0xff]
      %v616 = vld [vmem:[%s192 + $0xaf8] sm:$0xff]
      %v617 = vld [vmem:[%s192 + $0xb00] sm:$0xff]
      %v618 = vld [vmem:[%s192 + $0xb08] sm:$0xff]
      %v619 = vld [vmem:[%s192 + $0xb10] sm:$0xff]
      %v620 = vld [vmem:[%s192 + $0xb18] sm:$0xff]
      %v621 = vld [vmem:[%s192 + $0xb20] sm:$0xff]
      %v622 = vld [vmem:[%s192 + $0xb28] sm:$0xff]
      %v623 = vld [vmem:[%s192 + $0xb30] sm:$0xff]
      %v624 = vld [vmem:[%s192 + $0xb38] sm:$0xff]
      %v625 = vld [vmem:[%s192 + $0xb40] sm:$0xff]
      %v626 = vld [vmem:[%s192 + $0xb48] sm:$0xff]
      %v627 = vld [vmem:[%s192 + $0xb50] sm:$0xff]
      %v628 = vld [vmem:[%s192 + $0xb58] sm:$0xff]
      %v629 = vld [vmem:[%s192 + $0xb60] sm:$0xff]
      %v630 = vld [vmem:[%s192 + $0xb68] sm:$0xff]
      %v631 = vld [vmem:[%s192 + $0xb70] sm:$0xff]
      %v632 = vld [vmem:[%s192 + $0xb78] sm:$0xff]
      %v633 = vld [vmem:[%s192 + $0xb80] sm:$0xff]
      %v634 = vld [vmem:[%s192 + $0xb88] sm:$0xff]
      %v635 = vld [vmem:[%s192 + $0xb90] sm:$0xff]
      %v636 = vld [vmem:[%s192 + $0xb98] sm:$0xff]
      %v637 = vld [vmem:[%s192 + $0xba0] sm:$0xff]
      %v638 = vld [vmem:[%s192 + $0xba8] sm:$0xff]
      %v639 = vld [vmem:[%s192 + $0xbb0] sm:$0xff]
      %v640 = vld [vmem:[%s192 + $0xbb8] sm:$0xff]
      %v641 = vld [vmem:[%s192 + $0xbc0] sm:$0xff]
      %v642 = vld [vmem:[%s192 + $0xbc8] sm:$0xff]
      %v643 = vld [vmem:[%s192 + $0xbd0] sm:$0xff]
      %v644 = vld [vmem:[%s192 + $0xbd8] sm:$0xff]
      %v645 = vld [vmem:[%s192 + $0xbe0] sm:$0xff]
      %v646 = vld [vmem:[%s192 + $0xbe8] sm:$0xff]
      %v647 = vld [vmem:[%s192 + $0xbf0] sm:$0xff]
      %v648 = vld [vmem:[%s192 + $0xbf8] sm:$0xff]
      %v649 = vld [vmem:[%s192 + $0xc00] sm:$0xff]
      %v650 = vld [vmem:[%s192 + $0xc08] sm:$0xff]
      %v651 = vld [vmem:[%s192 + $0xc10] sm:$0xff]
      %v652 = vld [vmem:[%s192 + $0xc18] sm:$0xff]
      %v653 = vld [vmem:[%s192 + $0xc20] sm:$0xff]
      %v654 = vld [vmem:[%s192 + $0xc28] sm:$0xff]
      %v655 = vld [vmem:[%s192 + $0xc30] sm:$0xff]
      %v656 = vld [vmem:[%s192 + $0xc38] sm:$0xff]
      %v657 = vld [vmem:[%s192 + $0xc40] sm:$0xff]
      %v658 = vld [vmem:[%s192 + $0xc48] sm:$0xff]
      %v659 = vld [vmem:[%s192 + $0xc50] sm:$0xff]
      %v660 = vld [vmem:[%s192 + $0xc58] sm:$0xff]
      %v661 = vld [vmem:[%s192 + $0xc60] sm:$0xff]
      %v662 = vld [vmem:[%s192 + $0xc68] sm:$0xff]
      %v663 = vld [vmem:[%s192 + $0xc70] sm:$0xff]
      %v664 = vld [vmem:[%s192 + $0xc78] sm:$0xff]
      %v665 = vld [vmem:[%s192 + $0xc80] sm:$0xff]
      %v666 = vld [vmem:[%s192 + $0xc88] sm:$0xff]
      %v667 = vld [vmem:[%s192 + $0xc90] sm:$0xff]
      %v668 = vld [vmem:[%s192 + $0xc98] sm:$0xff]
      %v669 = vld [vmem:[%s192 + $0xca0] sm:$0xff]
      %v670 = vld [vmem:[%s192 + $0xca8] sm:$0xff]
      %v671 = vld [vmem:[%s192 + $0xcb0] sm:$0xff]
      %v672 = vld [vmem:[%s192 + $0xcb8] sm:$0xff]
      %v673 = vld [vmem:[%s192 + $0xcc0] sm:$0xff]
      %v674 = vld [vmem:[%s192 + $0xcc8] sm:$0xff]
      %v675 = vld [vmem:[%s192 + $0xcd0] sm:$0xff]
      %v676 = vld [vmem:[%s192 + $0xcd8] sm:$0xff]
      %v677 = vld [vmem:[%s192 + $0xce0] sm:$0xff]
      %v678 = vld [vmem:[%s192 + $0xce8] sm:$0xff]
      %vm679 = vcmask 72704
      %v681 = vsel %vm679, %v201, 0
      %v684 = vsel %vm679, %v202, 0
      %v687 = vsel %vm679, %v203, 0
      %v690 = vsel %vm679, %v204, 0
      %v693 = vsel %vm679, %v205, 0
      %v696 = vsel %vm679, %v206, 0
      %v699 = vsel %vm679, %v207, 0
      %v702 = vsel %vm679, %v208, 0
      %v705 = vsel %vm679, %v209, 0
      %v708 = vsel %vm679, %v210, 0
      %v711 = vsel %vm679, %v211, 0
      %v714 = vsel %vm679, %v212, 0
      %v717 = vsel %vm679, %v213, 0
      %v720 = vsel %vm679, %v214, 0
      %v723 = vsel %vm679, %v215, 0
      %v726 = vsel %vm679, %v216, 0
      %v729 = vsel %vm679, %v217, 0
      %v732 = vsel %vm679, %v218, 0
      %vm734 = vcmask 1040384
      %v736 = vsel %vm734, %v242, 0
      %v739 = vsel %vm734, %v243, 0
      %v742 = vsel %vm734, %v244, 0
      %v745 = vsel %vm734, %v245, 0
      %v748 = vsel %vm734, %v246, 0
      %v751 = vsel %vm734, %v247, 0
      %v754 = vsel %vm734, %v248, 0
      %v757 = vsel %vm734, %v249, 0
      %v760 = vsel %vm734, %v250, 0
      %v763 = vsel %vm734, %v251, 0
      %v766 = vsel %vm734, %v252, 0
      %v769 = vsel %vm734, %v253, 0
      %v772 = vsel %vm734, %v254, 0
      %v775 = vsel %vm734, %v255, 0
      %v778 = vsel %vm734, %v256, 0
      %v781 = vsel %vm734, %v257, 0
      %v784 = vsel %vm734, %v258, 0
      %v787 = vsel %vm734, %v259, 0
      %v790 = vsel %vm734, %v260, 0
      %v793 = vsel %vm734, %v261, 0
      %v796 = vsel %vm734, %v262, 0
      %v799 = vsel %vm734, %v263, 0
      %v802 = vsel %vm734, %v264, 0
      %804 = vmatpush.msra.mxu0 0.0
      %805 = vmatpush.msra.mxu0 0.0
      %806 = vmatpush.msra.mxu0 0.0
      %807 = vmatpush.msra.mxu0 0.0
      %808 = vmatpush.msra.mxu0 0.0
      %809 = vmatpush.msra.mxu0 0.0
      %810 = vmatpush.msra.mxu0 0.0
      %811 = vmatpush.msra.mxu0 0.0
      %812 = vmatpush.msra.mxu0 0.0
      %813 = vmatpush.msra.mxu0 0.0
      %814 = vmatpush.msra.mxu0 0.0
      %815 = vmatpush.msra.mxu0 0.0
      %816 = vmatpush.msra.mxu0 0.0
      %817 = vmatpush.msra.mxu0 0.0
      %818 = vmatpush.msra.mxu0 %v736
      %819 = vmatpush.msra.mxu0 %v219
      %820 = vmatmul.f32.gmra.mxu0 %v681
      %v821 = vpop.f32.mrf.mxu0
      %v822 = vadd.f32 %v265, %v821
      %823 = vmatmul.f32.gmra.mxu0 %v684
      %v824 = vpop.f32.mrf.mxu0
      %v825 = vadd.f32 %v288, %v824
      %826 = vmatmul.f32.gmra.mxu0 %v687
      %v827 = vpop.f32.mrf.mxu0
      %v828 = vadd.f32 %v311, %v827
      %829 = vmatmul.f32.gmra.mxu0 %v690
      %v830 = vpop.f32.mrf.mxu0
      %v831 = vadd.f32 %v334, %v830
      %832 = vmatmul.f32.gmra.mxu0 %v693
      %v833 = vpop.f32.mrf.mxu0
      %v834 = vadd.f32 %v357, %v833
      %835 = vmatmul.f32.gmra.mxu0 %v696
      %v836 = vpop.f32.mrf.mxu0
      %v837 = vadd.f32 %v380, %v836
      %838 = vmatmul.f32.gmra.mxu0 %v699
      %v839 = vpop.f32.mrf.mxu0
      %v840 = vadd.f32 %v403, %v839
      %841 = vmatmul.f32.gmra.mxu0 %v702
      %v842 = vpop.f32.mrf.mxu0
      %v843 = vadd.f32 %v426, %v842
      %844 = vmatmul.f32.gmra.mxu0 %v705
      %v845 = vpop.f32.mrf.mxu0
      %v846 = vadd.f32 %v449, %v845
      %847 = vmatmul.f32.gmra.mxu0 %v708
      %v848 = vpop.f32.mrf.mxu0
      %v849 = vadd.f32 %v472, %v848
      %850 = vmatmul.f32.gmra.mxu0 %v711
      %v851 = vpop.f32.mrf.mxu0
      %v852 = vadd.f32 %v495, %v851
      %853 = vmatmul.f32.gmra.mxu0 %v714
      %v854 = vpop.f32.mrf.mxu0
      %v855 = vadd.f32 %v518, %v854
      %856 = vmatmul.f32.gmra.mxu0 %v717
      %v857 = vpop.f32.mrf.mxu0
      %v858 = vadd.f32 %v541, %v857
      %859 = vmatmul.f32.gmra.mxu0 %v720
      %v860 = vpop.f32.mrf.mxu0
      %v861 = vadd.f32 %v564, %v860
      %862 = vmatmul.f32.gmra.mxu0 %v723
      %v863 = vpop.f32.mrf.mxu0
      %v864 = vadd.f32 %v587, %v863
      %865 = vmatmul.f32.gmra.mxu0 %v726
      %v866 = vpop.f32.mrf.mxu0
      %v867 = vadd.f32 %v610, %v866
      %868 = vmatmul.f32.gmra.mxu0 %v729
      %v869 = vpop.f32.mrf.mxu0
      %v870 = vadd.f32 %v633, %v869
      %871 = vmatmul.f32.gmra.mxu0 %v732
      %v872 = vpop.f32.mrf.mxu0
      %v873 = vadd.f32 %v656, %v872
      %874 = vdwg.mxu0
      %875 = vmatpush.msra.mxu0 0.0
      %876 = vmatpush.msra.mxu0 0.0
      %877 = vmatpush.msra.mxu0 0.0
      %878 = vmatpush.msra.mxu0 0.0
      %879 = vmatpush.msra.mxu0 0.0
      %880 = vmatpush.msra.mxu0 0.0
      %881 = vmatpush.msra.mxu0 0.0
      %882 = vmatpush.msra.mxu0 0.0
      %883 = vmatpush.msra.mxu0 0.0
      %884 = vmatpush.msra.mxu0 0.0
      %885 = vmatpush.msra.mxu0 0.0
      %886 = vmatpush.msra.mxu0 0.0
      %887 = vmatpush.msra.mxu0 0.0
      %888 = vmatpush.msra.mxu0 0.0
      %889 = vmatpush.msra.mxu0 %v739
      %890 = vmatpush.msra.mxu0 %v220
      %891 = vmatmul.f32.gmra.mxu0 %v681
      %v892 = vpop.f32.mrf.mxu0
      %v893 = vadd.f32 %v266, %v892
      %894 = vmatmul.f32.gmra.mxu0 %v684
      %v895 = vpop.f32.mrf.mxu0
      %v896 = vadd.f32 %v289, %v895
      %897 = vmatmul.f32.gmra.mxu0 %v687
      %v898 = vpop.f32.mrf.mxu0
      %v899 = vadd.f32 %v312, %v898
      %900 = vmatmul.f32.gmra.mxu0 %v690
      %v901 = vpop.f32.mrf.mxu0
      %v902 = vadd.f32 %v335, %v901
      %903 = vmatmul.f32.gmra.mxu0 %v693
      %v904 = vpop.f32.mrf.mxu0
      %v905 = vadd.f32 %v358, %v904
      %906 = vmatmul.f32.gmra.mxu0 %v696
      %v907 = vpop.f32.mrf.mxu0
      %v908 = vadd.f32 %v381, %v907
      %909 = vmatmul.f32.gmra.mxu0 %v699
      %v910 = vpop.f32.mrf.mxu0
      %v911 = vadd.f32 %v404, %v910
      %912 = vmatmul.f32.gmra.mxu0 %v702
      %v913 = vpop.f32.mrf.mxu0
      %v914 = vadd.f32 %v427, %v913
      %915 = vmatmul.f32.gmra.mxu0 %v705
      %v916 = vpop.f32.mrf.mxu0
      %v917 = vadd.f32 %v450, %v916
      %918 = vmatmul.f32.gmra.mxu0 %v708
      %v919 = vpop.f32.mrf.mxu0
      %v920 = vadd.f32 %v473, %v919
      %921 = vmatmul.f32.gmra.mxu0 %v711
      %v922 = vpop.f32.mrf.mxu0
      %v923 = vadd.f32 %v496, %v922
      %924 = vmatmul.f32.gmra.mxu0 %v714
      %v925 = vpop.f32.mrf.mxu0
      %v926 = vadd.f32 %v519, %v925
      %927 = vmatmul.f32.gmra.mxu0 %v717
      %v928 = vpop.f32.mrf.mxu0
      %v929 = vadd.f32 %v542, %v928
      %930 = vmatmul.f32.gmra.mxu0 %v720
      %v931 = vpop.f32.mrf.mxu0
      %v932 = vadd.f32 %v565, %v931
      %933 = vmatmul.f32.gmra.mxu0 %v723
      %v934 = vpop.f32.mrf.mxu0
      %v935 = vadd.f32 %v588, %v934
      %936 = vmatmul.f32.gmra.mxu0 %v726
      %v937 = vpop.f32.mrf.mxu0
      %v938 = vadd.f32 %v611, %v937
      %939 = vmatmul.f32.gmra.mxu0 %v729
      %v940 = vpop.f32.mrf.mxu0
      %v941 = vadd.f32 %v634, %v940
      %942 = vmatmul.f32.gmra.mxu0 %v732
      %v943 = vpop.f32.mrf.mxu0
      %v944 = vadd.f32 %v657, %v943
      %945 = vdwg.mxu0
      %946 = vmatpush.msra.mxu0 0.0
      %947 = vmatpush.msra.mxu0 0.0
      %948 = vmatpush.msra.mxu0 0.0
      %949 = vmatpush.msra.mxu0 0.0
      %950 = vmatpush.msra.mxu0 0.0
      %951 = vmatpush.msra.mxu0 0.0
      %952 = vmatpush.msra.mxu0 0.0
      %953 = vmatpush.msra.mxu0 0.0
      %954 = vmatpush.msra.mxu0 0.0
      %955 = vmatpush.msra.mxu0 0.0
      %956 = vmatpush.msra.mxu0 0.0
      %957 = vmatpush.msra.mxu0 0.0
      %958 = vmatpush.msra.mxu0 0.0
      %959 = vmatpush.msra.mxu0 0.0
      %960 = vmatpush.msra.mxu0 %v742
      %961 = vmatpush.msra.mxu0 %v221
      %962 = vmatmul.f32.gmra.mxu0 %v681
      %v963 = vpop.f32.mrf.mxu0
      %v964 = vadd.f32 %v267, %v963
      %965 = vmatmul.f32.gmra.mxu0 %v684
      %v966 = vpop.f32.mrf.mxu0
      %v967 = vadd.f32 %v290, %v966
      %968 = vmatmul.f32.gmra.mxu0 %v687
      %v969 = vpop.f32.mrf.mxu0
      %v970 = vadd.f32 %v313, %v969
      %971 = vmatmul.f32.gmra.mxu0 %v690
      %v972 = vpop.f32.mrf.mxu0
      %v973 = vadd.f32 %v336, %v972
      %974 = vmatmul.f32.gmra.mxu0 %v693
      %v975 = vpop.f32.mrf.mxu0
      %v976 = vadd.f32 %v359, %v975
      %977 = vmatmul.f32.gmra.mxu0 %v696
      %v978 = vpop.f32.mrf.mxu0
      %v979 = vadd.f32 %v382, %v978
      %980 = vmatmul.f32.gmra.mxu0 %v699
      %v981 = vpop.f32.mrf.mxu0
      %v982 = vadd.f32 %v405, %v981
      %983 = vmatmul.f32.gmra.mxu0 %v702
      %v984 = vpop.f32.mrf.mxu0
      %v985 = vadd.f32 %v428, %v984
      %986 = vmatmul.f32.gmra.mxu0 %v705
      %v987 = vpop.f32.mrf.mxu0
      %v988 = vadd.f32 %v451, %v987
      %989 = vmatmul.f32.gmra.mxu0 %v708
      %v990 = vpop.f32.mrf.mxu0
      %v991 = vadd.f32 %v474, %v990
      %992 = vmatmul.f32.gmra.mxu0 %v711
      %v993 = vpop.f32.mrf.mxu0
      %v994 = vadd.f32 %v497, %v993
      %995 = vmatmul.f32.gmra.mxu0 %v714
      %v996 = vpop.f32.mrf.mxu0
      %v997 = vadd.f32 %v520, %v996
      %998 = vmatmul.f32.gmra.mxu0 %v717
      %v999 = vpop.f32.mrf.mxu0
      %v1000 = vadd.f32 %v543, %v999
      %1001 = vmatmul.f32.gmra.mxu0 %v720
      %v1002 = vpop.f32.mrf.mxu0
      %v1003 = vadd.f32 %v566, %v1002
      %1004 = vmatmul.f32.gmra.mxu0 %v723
      %v1005 = vpop.f32.mrf.mxu0
      %v1006 = vadd.f32 %v589, %v1005
      %1007 = vmatmul.f32.gmra.mxu0 %v726
      %v1008 = vpop.f32.mrf.mxu0
      %v1009 = vadd.f32 %v612, %v1008
      %1010 = vmatmul.f32.gmra.mxu0 %v729
      %v1011 = vpop.f32.mrf.mxu0
      %v1012 = vadd.f32 %v635, %v1011
      %1013 = vmatmul.f32.gmra.mxu0 %v732
      %v1014 = vpop.f32.mrf.mxu0
      %v1015 = vadd.f32 %v658, %v1014
      %1016 = vdwg.mxu0
      %1017 = vmatpush.msra.mxu0 0.0
      %1018 = vmatpush.msra.mxu0 0.0
      %1019 = vmatpush.msra.mxu0 0.0
      %1020 = vmatpush.msra.mxu0 0.0
      %1021 = vmatpush.msra.mxu0 0.0
      %1022 = vmatpush.msra.mxu0 0.0
      %1023 = vmatpush.msra.mxu0 0.0
      %1024 = vmatpush.msra.mxu0 0.0
      %1025 = vmatpush.msra.mxu0 0.0
      %1026 = vmatpush.msra.mxu0 0.0
      %1027 = vmatpush.msra.mxu0 0.0
      %1028 = vmatpush.msra.mxu0 0.0
      %1029 = vmatpush.msra.mxu0 0.0
      %1030 = vmatpush.msra.mxu0 0.0
      %1031 = vmatpush.msra.mxu0 %v745
      %1032 = vmatpush.msra.mxu0 %v222
      %1033 = vmatmul.f32.gmra.mxu0 %v681
      %v1034 = vpop.f32.mrf.mxu0
      %v1035 = vadd.f32 %v268, %v1034
      %1036 = vmatmul.f32.gmra.mxu0 %v684
      %v1037 = vpop.f32.mrf.mxu0
      %v1038 = vadd.f32 %v291, %v1037
      %1039 = vmatmul.f32.gmra.mxu0 %v687
      %v1040 = vpop.f32.mrf.mxu0
      %v1041 = vadd.f32 %v314, %v1040
      %1042 = vmatmul.f32.gmra.mxu0 %v690
      %v1043 = vpop.f32.mrf.mxu0
      %v1044 = vadd.f32 %v337, %v1043
      %1045 = vmatmul.f32.gmra.mxu0 %v693
      %v1046 = vpop.f32.mrf.mxu0
      %v1047 = vadd.f32 %v360, %v1046
      %1048 = vmatmul.f32.gmra.mxu0 %v696
      %v1049 = vpop.f32.mrf.mxu0
      %v1050 = vadd.f32 %v383, %v1049
      %1051 = vmatmul.f32.gmra.mxu0 %v699
      %v1052 = vpop.f32.mrf.mxu0
      %v1053 = vadd.f32 %v406, %v1052
      %1054 = vmatmul.f32.gmra.mxu0 %v702
      %v1055 = vpop.f32.mrf.mxu0
      %v1056 = vadd.f32 %v429, %v1055
      %1057 = vmatmul.f32.gmra.mxu0 %v705
      %v1058 = vpop.f32.mrf.mxu0
      %v1059 = vadd.f32 %v452, %v1058
      %1060 = vmatmul.f32.gmra.mxu0 %v708
      %v1061 = vpop.f32.mrf.mxu0
      %v1062 = vadd.f32 %v475, %v1061
      %1063 = vmatmul.f32.gmra.mxu0 %v711
      %v1064 = vpop.f32.mrf.mxu0
      %v1065 = vadd.f32 %v498, %v1064
      %1066 = vmatmul.f32.gmra.mxu0 %v714
      %v1067 = vpop.f32.mrf.mxu0
      %v1068 = vadd.f32 %v521, %v1067
      %1069 = vmatmul.f32.gmra.mxu0 %v717
      %v1070 = vpop.f32.mrf.mxu0
      %v1071 = vadd.f32 %v544, %v1070
      %1072 = vmatmul.f32.gmra.mxu0 %v720
      %v1073 = vpop.f32.mrf.mxu0
      %v1074 = vadd.f32 %v567, %v1073
      %1075 = vmatmul.f32.gmra.mxu0 %v723
      %v1076 = vpop.f32.mrf.mxu0
      %v1077 = vadd.f32 %v590, %v1076
      %1078 = vmatmul.f32.gmra.mxu0 %v726
      %v1079 = vpop.f32.mrf.mxu0
      %v1080 = vadd.f32 %v613, %v1079
      %1081 = vmatmul.f32.gmra.mxu0 %v729
      %v1082 = vpop.f32.mrf.mxu0
      %v1083 = vadd.f32 %v636, %v1082
      %1084 = vmatmul.f32.gmra.mxu0 %v732
      %v1085 = vpop.f32.mrf.mxu0
      %v1086 = vadd.f32 %v659, %v1085
      %1087 = vdwg.mxu0
      %1088 = vmatpush.msra.mxu0 0.0
      %1089 = vmatpush.msra.mxu0 0.0
      %1090 = vmatpush.msra.mxu0 0.0
      %1091 = vmatpush.msra.mxu0 0.0
      %1092 = vmatpush.msra.mxu0 0.0
      %1093 = vmatpush.msra.mxu0 0.0
      %1094 = vmatpush.msra.mxu0 0.0
      %1095 = vmatpush.msra.mxu0 0.0
      %1096 = vmatpush.msra.mxu0 0.0
      %1097 = vmatpush.msra.mxu0 0.0
      %1098 = vmatpush.msra.mxu0 0.0
      %1099 = vmatpush.msra.mxu0 0.0
      %1100 = vmatpush.msra.mxu0 0.0
      %1101 = vmatpush.msra.mxu0 0.0
      %1102 = vmatpush.msra.mxu0 %v748
      %1103 = vmatpush.msra.mxu0 %v223
      %1104 = vmatmul.f32.gmra.mxu0 %v681
      %v1105 = vpop.f32.mrf.mxu0
      %v1106 = vadd.f32 %v269, %v1105
      %1107 = vmatmul.f32.gmra.mxu0 %v684
      %v1108 = vpop.f32.mrf.mxu0
      %v1109 = vadd.f32 %v292, %v1108
      %1110 = vmatmul.f32.gmra.mxu0 %v687
      %v1111 = vpop.f32.mrf.mxu0
      %v1112 = vadd.f32 %v315, %v1111
      %1113 = vmatmul.f32.gmra.mxu0 %v690
      %v1114 = vpop.f32.mrf.mxu0
      %v1115 = vadd.f32 %v338, %v1114
      %1116 = vmatmul.f32.gmra.mxu0 %v693
      %v1117 = vpop.f32.mrf.mxu0
      %v1118 = vadd.f32 %v361, %v1117
      %1119 = vmatmul.f32.gmra.mxu0 %v696
      %v1120 = vpop.f32.mrf.mxu0
      %v1121 = vadd.f32 %v384, %v1120
      %1122 = vmatmul.f32.gmra.mxu0 %v699
      %v1123 = vpop.f32.mrf.mxu0
      %v1124 = vadd.f32 %v407, %v1123
      %1125 = vmatmul.f32.gmra.mxu0 %v702
      %v1126 = vpop.f32.mrf.mxu0
      %v1127 = vadd.f32 %v430, %v1126
      %1128 = vmatmul.f32.gmra.mxu0 %v705
      %v1129 = vpop.f32.mrf.mxu0
      %v1130 = vadd.f32 %v453, %v1129
      %1131 = vmatmul.f32.gmra.mxu0 %v708
      %v1132 = vpop.f32.mrf.mxu0
      %v1133 = vadd.f32 %v476, %v1132
      %1134 = vmatmul.f32.gmra.mxu0 %v711
      %v1135 = vpop.f32.mrf.mxu0
      %v1136 = vadd.f32 %v499, %v1135
      %1137 = vmatmul.f32.gmra.mxu0 %v714
      %v1138 = vpop.f32.mrf.mxu0
      %v1139 = vadd.f32 %v522, %v1138
      %1140 = vmatmul.f32.gmra.mxu0 %v717
      %v1141 = vpop.f32.mrf.mxu0
      %v1142 = vadd.f32 %v545, %v1141
      %1143 = vmatmul.f32.gmra.mxu0 %v720
      %v1144 = vpop.f32.mrf.mxu0
      %v1145 = vadd.f32 %v568, %v1144
      %1146 = vmatmul.f32.gmra.mxu0 %v723
      %v1147 = vpop.f32.mrf.mxu0
      %v1148 = vadd.f32 %v591, %v1147
      %1149 = vmatmul.f32.gmra.mxu0 %v726
      %v1150 = vpop.f32.mrf.mxu0
      %v1151 = vadd.f32 %v614, %v1150
      %1152 = vmatmul.f32.gmra.mxu0 %v729
      %v1153 = vpop.f32.mrf.mxu0
      %v1154 = vadd.f32 %v637, %v1153
      %1155 = vmatmul.f32.gmra.mxu0 %v732
      %v1156 = vpop.f32.mrf.mxu0
      %v1157 = vadd.f32 %v660, %v1156
      %1158 = vdwg.mxu0
      %1159 = vmatpush.msra.mxu0 0.0
      %1160 = vmatpush.msra.mxu0 0.0
      %1161 = vmatpush.msra.mxu0 0.0
      %1162 = vmatpush.msra.mxu0 0.0
      %1163 = vmatpush.msra.mxu0 0.0
      %1164 = vmatpush.msra.mxu0 0.0
      %1165 = vmatpush.msra.mxu0 0.0
      %1166 = vmatpush.msra.mxu0 0.0
      %1167 = vmatpush.msra.mxu0 0.0
      %1168 = vmatpush.msra.mxu0 0.0
      %1169 = vmatpush.msra.mxu0 0.0
      %1170 = vmatpush.msra.mxu0 0.0
      %1171 = vmatpush.msra.mxu0 0.0
      %1172 = vmatpush.msra.mxu0 0.0
      %1173 = vmatpush.msra.mxu0 %v751
      %1174 = vmatpush.msra.mxu0 %v224
      %1175 = vmatmul.f32.gmra.mxu0 %v681
      %v1176 = vpop.f32.mrf.mxu0
      %v1177 = vadd.f32 %v270, %v1176
      %1178 = vmatmul.f32.gmra.mxu0 %v684
      %v1179 = vpop.f32.mrf.mxu0
      %v1180 = vadd.f32 %v293, %v1179
      %1181 = vmatmul.f32.gmra.mxu0 %v687
      %v1182 = vpop.f32.mrf.mxu0
      %v1183 = vadd.f32 %v316, %v1182
      %1184 = vmatmul.f32.gmra.mxu0 %v690
      %v1185 = vpop.f32.mrf.mxu0
      %v1186 = vadd.f32 %v339, %v1185
      %1187 = vmatmul.f32.gmra.mxu0 %v693
      %v1188 = vpop.f32.mrf.mxu0
      %v1189 = vadd.f32 %v362, %v1188
      %1190 = vmatmul.f32.gmra.mxu0 %v696
      %v1191 = vpop.f32.mrf.mxu0
      %v1192 = vadd.f32 %v385, %v1191
      %1193 = vmatmul.f32.gmra.mxu0 %v699
      %v1194 = vpop.f32.mrf.mxu0
      %v1195 = vadd.f32 %v408, %v1194
      %1196 = vmatmul.f32.gmra.mxu0 %v702
      %v1197 = vpop.f32.mrf.mxu0
      %v1198 = vadd.f32 %v431, %v1197
      %1199 = vmatmul.f32.gmra.mxu0 %v705
      %v1200 = vpop.f32.mrf.mxu0
      %v1201 = vadd.f32 %v454, %v1200
      %1202 = vmatmul.f32.gmra.mxu0 %v708
      %v1203 = vpop.f32.mrf.mxu0
      %v1204 = vadd.f32 %v477, %v1203
      %1205 = vmatmul.f32.gmra.mxu0 %v711
      %v1206 = vpop.f32.mrf.mxu0
      %v1207 = vadd.f32 %v500, %v1206
      %1208 = vmatmul.f32.gmra.mxu0 %v714
      %v1209 = vpop.f32.mrf.mxu0
      %v1210 = vadd.f32 %v523, %v1209
      %1211 = vmatmul.f32.gmra.mxu0 %v717
      %v1212 = vpop.f32.mrf.mxu0
      %v1213 = vadd.f32 %v546, %v1212
      %1214 = vmatmul.f32.gmra.mxu0 %v720
      %v1215 = vpop.f32.mrf.mxu0
      %v1216 = vadd.f32 %v569, %v1215
      %1217 = vmatmul.f32.gmra.mxu0 %v723
      %v1218 = vpop.f32.mrf.mxu0
      %v1219 = vadd.f32 %v592, %v1218
      %1220 = vmatmul.f32.gmra.mxu0 %v726
      %v1221 = vpop.f32.mrf.mxu0
      %v1222 = vadd.f32 %v615, %v1221
      %1223 = vmatmul.f32.gmra.mxu0 %v729
      %v1224 = vpop.f32.mrf.mxu0
      %v1225 = vadd.f32 %v638, %v1224
      %1226 = vmatmul.f32.gmra.mxu0 %v732
      %v1227 = vpop.f32.mrf.mxu0
      %v1228 = vadd.f32 %v661, %v1227
      %1229 = vdwg.mxu0
      %1230 = vmatpush.msra.mxu0 0.0
      %1231 = vmatpush.msra.mxu0 0.0
      %1232 = vmatpush.msra.mxu0 0.0
      %1233 = vmatpush.msra.mxu0 0.0
      %1234 = vmatpush.msra.mxu0 0.0
      %1235 = vmatpush.msra.mxu0 0.0
      %1236 = vmatpush.msra.mxu0 0.0
      %1237 = vmatpush.msra.mxu0 0.0
      %1238 = vmatpush.msra.mxu0 0.0
      %1239 = vmatpush.msra.mxu0 0.0
      %1240 = vmatpush.msra.mxu0 0.0
      %1241 = vmatpush.msra.mxu0 0.0
      %1242 = vmatpush.msra.mxu0 0.0
      %1243 = vmatpush.msra.mxu0 0.0
      %1244 = vmatpush.msra.mxu0 %v754
      %1245 = vmatpush.msra.mxu0 %v225
      %1246 = vmatmul.f32.gmra.mxu0 %v681
      %v1247 = vpop.f32.mrf.mxu0
      %v1248 = vadd.f32 %v271, %v1247
      %1249 = vmatmul.f32.gmra.mxu0 %v684
      %v1250 = vpop.f32.mrf.mxu0
      %v1251 = vadd.f32 %v294, %v1250
      %1252 = vmatmul.f32.gmra.mxu0 %v687
      %v1253 = vpop.f32.mrf.mxu0
      %v1254 = vadd.f32 %v317, %v1253
      %1255 = vmatmul.f32.gmra.mxu0 %v690
      %v1256 = vpop.f32.mrf.mxu0
      %v1257 = vadd.f32 %v340, %v1256
      %1258 = vmatmul.f32.gmra.mxu0 %v693
      %v1259 = vpop.f32.mrf.mxu0
      %v1260 = vadd.f32 %v363, %v1259
      %1261 = vmatmul.f32.gmra.mxu0 %v696
      %v1262 = vpop.f32.mrf.mxu0
      %v1263 = vadd.f32 %v386, %v1262
      %1264 = vmatmul.f32.gmra.mxu0 %v699
      %v1265 = vpop.f32.mrf.mxu0
      %v1266 = vadd.f32 %v409, %v1265
      %1267 = vmatmul.f32.gmra.mxu0 %v702
      %v1268 = vpop.f32.mrf.mxu0
      %v1269 = vadd.f32 %v432, %v1268
      %1270 = vmatmul.f32.gmra.mxu0 %v705
      %v1271 = vpop.f32.mrf.mxu0
      %v1272 = vadd.f32 %v455, %v1271
      %1273 = vmatmul.f32.gmra.mxu0 %v708
      %v1274 = vpop.f32.mrf.mxu0
      %v1275 = vadd.f32 %v478, %v1274
      %1276 = vmatmul.f32.gmra.mxu0 %v711
      %v1277 = vpop.f32.mrf.mxu0
      %v1278 = vadd.f32 %v501, %v1277
      %1279 = vmatmul.f32.gmra.mxu0 %v714
      %v1280 = vpop.f32.mrf.mxu0
      %v1281 = vadd.f32 %v524, %v1280
      %1282 = vmatmul.f32.gmra.mxu0 %v717
      %v1283 = vpop.f32.mrf.mxu0
      %v1284 = vadd.f32 %v547, %v1283
      %1285 = vmatmul.f32.gmra.mxu0 %v720
      %v1286 = vpop.f32.mrf.mxu0
      %v1287 = vadd.f32 %v570, %v1286
      %1288 = vmatmul.f32.gmra.mxu0 %v723
      %v1289 = vpop.f32.mrf.mxu0
      %v1290 = vadd.f32 %v593, %v1289
      %1291 = vmatmul.f32.gmra.mxu0 %v726
      %v1292 = vpop.f32.mrf.mxu0
      %v1293 = vadd.f32 %v616, %v1292
      %1294 = vmatmul.f32.gmra.mxu0 %v729
      %v1295 = vpop.f32.mrf.mxu0
      %v1296 = vadd.f32 %v639, %v1295
      %1297 = vmatmul.f32.gmra.mxu0 %v732
      %v1298 = vpop.f32.mrf.mxu0
      %v1299 = vadd.f32 %v662, %v1298
      %1300 = vdwg.mxu0
      %1301 = vmatpush.msra.mxu0 0.0
      %1302 = vmatpush.msra.mxu0 0.0
      %1303 = vmatpush.msra.mxu0 0.0
      %1304 = vmatpush.msra.mxu0 0.0
      %1305 = vmatpush.msra.mxu0 0.0
      %1306 = vmatpush.msra.mxu0 0.0
      %1307 = vmatpush.msra.mxu0 0.0
      %1308 = vmatpush.msra.mxu0 0.0
      %1309 = vmatpush.msra.mxu0 0.0
      %1310 = vmatpush.msra.mxu0 0.0
      %1311 = vmatpush.msra.mxu0 0.0
      %1312 = vmatpush.msra.mxu0 0.0
      %1313 = vmatpush.msra.mxu0 0.0
      %1314 = vmatpush.msra.mxu0 0.0
      %1315 = vmatpush.msra.mxu0 %v757
      %1316 = vmatpush.msra.mxu0 %v226
      %1317 = vmatmul.f32.gmra.mxu0 %v681
      %v1318 = vpop.f32.mrf.mxu0
      %v1319 = vadd.f32 %v272, %v1318
      %1320 = vmatmul.f32.gmra.mxu0 %v684
      %v1321 = vpop.f32.mrf.mxu0
      %v1322 = vadd.f32 %v295, %v1321
      %1323 = vmatmul.f32.gmra.mxu0 %v687
      %v1324 = vpop.f32.mrf.mxu0
      %v1325 = vadd.f32 %v318, %v1324
      %1326 = vmatmul.f32.gmra.mxu0 %v690
      %v1327 = vpop.f32.mrf.mxu0
      %v1328 = vadd.f32 %v341, %v1327
      %1329 = vmatmul.f32.gmra.mxu0 %v693
      %v1330 = vpop.f32.mrf.mxu0
      %v1331 = vadd.f32 %v364, %v1330
      %1332 = vmatmul.f32.gmra.mxu0 %v696
      %v1333 = vpop.f32.mrf.mxu0
      %v1334 = vadd.f32 %v387, %v1333
      %1335 = vmatmul.f32.gmra.mxu0 %v699
      %v1336 = vpop.f32.mrf.mxu0
      %v1337 = vadd.f32 %v410, %v1336
      %1338 = vmatmul.f32.gmra.mxu0 %v702
      %v1339 = vpop.f32.mrf.mxu0
      %v1340 = vadd.f32 %v433, %v1339
      %1341 = vmatmul.f32.gmra.mxu0 %v705
      %v1342 = vpop.f32.mrf.mxu0
      %v1343 = vadd.f32 %v456, %v1342
      %1344 = vmatmul.f32.gmra.mxu0 %v708
      %v1345 = vpop.f32.mrf.mxu0
      %v1346 = vadd.f32 %v479, %v1345
      %1347 = vmatmul.f32.gmra.mxu0 %v711
      %v1348 = vpop.f32.mrf.mxu0
      %v1349 = vadd.f32 %v502, %v1348
      %1350 = vmatmul.f32.gmra.mxu0 %v714
      %v1351 = vpop.f32.mrf.mxu0
      %v1352 = vadd.f32 %v525, %v1351
      %1353 = vmatmul.f32.gmra.mxu0 %v717
      %v1354 = vpop.f32.mrf.mxu0
      %v1355 = vadd.f32 %v548, %v1354
      %1356 = vmatmul.f32.gmra.mxu0 %v720
      %v1357 = vpop.f32.mrf.mxu0
      %v1358 = vadd.f32 %v571, %v1357
      %1359 = vmatmul.f32.gmra.mxu0 %v723
      %v1360 = vpop.f32.mrf.mxu0
      %v1361 = vadd.f32 %v594, %v1360
      %1362 = vmatmul.f32.gmra.mxu0 %v726
      %v1363 = vpop.f32.mrf.mxu0
      %v1364 = vadd.f32 %v617, %v1363
      %1365 = vmatmul.f32.gmra.mxu0 %v729
      %v1366 = vpop.f32.mrf.mxu0
      %v1367 = vadd.f32 %v640, %v1366
      %1368 = vmatmul.f32.gmra.mxu0 %v732
      %v1369 = vpop.f32.mrf.mxu0
      %v1370 = vadd.f32 %v663, %v1369
      %1371 = vdwg.mxu0
      %1372 = vmatpush.msra.mxu0 0.0
      %1373 = vmatpush.msra.mxu0 0.0
      %1374 = vmatpush.msra.mxu0 0.0
      %1375 = vmatpush.msra.mxu0 0.0
      %1376 = vmatpush.msra.mxu0 0.0
      %1377 = vmatpush.msra.mxu0 0.0
      %1378 = vmatpush.msra.mxu0 0.0
      %1379 = vmatpush.msra.mxu0 0.0
      %1380 = vmatpush.msra.mxu0 0.0
      %1381 = vmatpush.msra.mxu0 0.0
      %1382 = vmatpush.msra.mxu0 0.0
      %1383 = vmatpush.msra.mxu0 0.0
      %1384 = vmatpush.msra.mxu0 0.0
      %1385 = vmatpush.msra.mxu0 0.0
      %1386 = vmatpush.msra.mxu0 %v760
      %1387 = vmatpush.msra.mxu0 %v227
      %1388 = vmatmul.f32.gmra.mxu0 %v681
      %v1389 = vpop.f32.mrf.mxu0
      %v1390 = vadd.f32 %v273, %v1389
      %1391 = vmatmul.f32.gmra.mxu0 %v684
      %v1392 = vpop.f32.mrf.mxu0
      %v1393 = vadd.f32 %v296, %v1392
      %1394 = vmatmul.f32.gmra.mxu0 %v687
      %v1395 = vpop.f32.mrf.mxu0
      %v1396 = vadd.f32 %v319, %v1395
      %1397 = vmatmul.f32.gmra.mxu0 %v690
      %v1398 = vpop.f32.mrf.mxu0
      %v1399 = vadd.f32 %v342, %v1398
      %1400 = vmatmul.f32.gmra.mxu0 %v693
      %v1401 = vpop.f32.mrf.mxu0
      %v1402 = vadd.f32 %v365, %v1401
      %1403 = vmatmul.f32.gmra.mxu0 %v696
      %v1404 = vpop.f32.mrf.mxu0
      %v1405 = vadd.f32 %v388, %v1404
      %1406 = vmatmul.f32.gmra.mxu0 %v699
      %v1407 = vpop.f32.mrf.mxu0
      %v1408 = vadd.f32 %v411, %v1407
      %1409 = vmatmul.f32.gmra.mxu0 %v702
      %v1410 = vpop.f32.mrf.mxu0
      %v1411 = vadd.f32 %v434, %v1410
      %1412 = vmatmul.f32.gmra.mxu0 %v705
      %v1413 = vpop.f32.mrf.mxu0
      %v1414 = vadd.f32 %v457, %v1413
      %1415 = vmatmul.f32.gmra.mxu0 %v708
      %v1416 = vpop.f32.mrf.mxu0
      %v1417 = vadd.f32 %v480, %v1416
      %1418 = vmatmul.f32.gmra.mxu0 %v711
      %v1419 = vpop.f32.mrf.mxu0
      %v1420 = vadd.f32 %v503, %v1419
      %1421 = vmatmul.f32.gmra.mxu0 %v714
      %v1422 = vpop.f32.mrf.mxu0
      %v1423 = vadd.f32 %v526, %v1422
      %1424 = vmatmul.f32.gmra.mxu0 %v717
      %v1425 = vpop.f32.mrf.mxu0
      %v1426 = vadd.f32 %v549, %v1425
      %1427 = vmatmul.f32.gmra.mxu0 %v720
      %v1428 = vpop.f32.mrf.mxu0
      %v1429 = vadd.f32 %v572, %v1428
      %1430 = vmatmul.f32.gmra.mxu0 %v723
      %v1431 = vpop.f32.mrf.mxu0
      %v1432 = vadd.f32 %v595, %v1431
      %1433 = vmatmul.f32.gmra.mxu0 %v726
      %v1434 = vpop.f32.mrf.mxu0
      %v1435 = vadd.f32 %v618, %v1434
      %1436 = vmatmul.f32.gmra.mxu0 %v729
      %v1437 = vpop.f32.mrf.mxu0
      %v1438 = vadd.f32 %v641, %v1437
      %1439 = vmatmul.f32.gmra.mxu0 %v732
      %v1440 = vpop.f32.mrf.mxu0
      %v1441 = vadd.f32 %v664, %v1440
      %1442 = vdwg.mxu0
      %1443 = vmatpush.msra.mxu0 0.0
      %1444 = vmatpush.msra.mxu0 0.0
      %1445 = vmatpush.msra.mxu0 0.0
      %1446 = vmatpush.msra.mxu0 0.0
      %1447 = vmatpush.msra.mxu0 0.0
      %1448 = vmatpush.msra.mxu0 0.0
      %1449 = vmatpush.msra.mxu0 0.0
      %1450 = vmatpush.msra.mxu0 0.0
      %1451 = vmatpush.msra.mxu0 0.0
      %1452 = vmatpush.msra.mxu0 0.0
      %1453 = vmatpush.msra.mxu0 0.0
      %1454 = vmatpush.msra.mxu0 0.0
      %1455 = vmatpush.msra.mxu0 0.0
      %1456 = vmatpush.msra.mxu0 0.0
      %1457 = vmatpush.msra.mxu0 %v763
      %1458 = vmatpush.msra.mxu0 %v228
      %1459 = vmatmul.f32.gmra.mxu0 %v681
      %v1460 = vpop.f32.mrf.mxu0
      %v1461 = vadd.f32 %v274, %v1460
      %1462 = vmatmul.f32.gmra.mxu0 %v684
      %v1463 = vpop.f32.mrf.mxu0
      %v1464 = vadd.f32 %v297, %v1463
      %1465 = vmatmul.f32.gmra.mxu0 %v687
      %v1466 = vpop.f32.mrf.mxu0
      %v1467 = vadd.f32 %v320, %v1466
      %1468 = vmatmul.f32.gmra.mxu0 %v690
      %v1469 = vpop.f32.mrf.mxu0
      %v1470 = vadd.f32 %v343, %v1469
      %1471 = vmatmul.f32.gmra.mxu0 %v693
      %v1472 = vpop.f32.mrf.mxu0
      %v1473 = vadd.f32 %v366, %v1472
      %1474 = vmatmul.f32.gmra.mxu0 %v696
      %v1475 = vpop.f32.mrf.mxu0
      %v1476 = vadd.f32 %v389, %v1475
      %1477 = vmatmul.f32.gmra.mxu0 %v699
      %v1478 = vpop.f32.mrf.mxu0
      %v1479 = vadd.f32 %v412, %v1478
      %1480 = vmatmul.f32.gmra.mxu0 %v702
      %v1481 = vpop.f32.mrf.mxu0
      %v1482 = vadd.f32 %v435, %v1481
      %1483 = vmatmul.f32.gmra.mxu0 %v705
      %v1484 = vpop.f32.mrf.mxu0
      %v1485 = vadd.f32 %v458, %v1484
      %1486 = vmatmul.f32.gmra.mxu0 %v708
      %v1487 = vpop.f32.mrf.mxu0
      %v1488 = vadd.f32 %v481, %v1487
      %1489 = vmatmul.f32.gmra.mxu0 %v711
      %v1490 = vpop.f32.mrf.mxu0
      %v1491 = vadd.f32 %v504, %v1490
      %1492 = vmatmul.f32.gmra.mxu0 %v714
      %v1493 = vpop.f32.mrf.mxu0
      %v1494 = vadd.f32 %v527, %v1493
      %1495 = vmatmul.f32.gmra.mxu0 %v717
      %v1496 = vpop.f32.mrf.mxu0
      %v1497 = vadd.f32 %v550, %v1496
      %1498 = vmatmul.f32.gmra.mxu0 %v720
      %v1499 = vpop.f32.mrf.mxu0
      %v1500 = vadd.f32 %v573, %v1499
      %1501 = vmatmul.f32.gmra.mxu0 %v723
      %v1502 = vpop.f32.mrf.mxu0
      %v1503 = vadd.f32 %v596, %v1502
      %1504 = vmatmul.f32.gmra.mxu0 %v726
      %v1505 = vpop.f32.mrf.mxu0
      %v1506 = vadd.f32 %v619, %v1505
      %1507 = vmatmul.f32.gmra.mxu0 %v729
      %v1508 = vpop.f32.mrf.mxu0
      %v1509 = vadd.f32 %v642, %v1508
      %1510 = vmatmul.f32.gmra.mxu0 %v732
      %v1511 = vpop.f32.mrf.mxu0
      %v1512 = vadd.f32 %v665, %v1511
      %1513 = vdwg.mxu0
      %1514 = vmatpush.msra.mxu0 0.0
      %1515 = vmatpush.msra.mxu0 0.0
      %1516 = vmatpush.msra.mxu0 0.0
      %1517 = vmatpush.msra.mxu0 0.0
      %1518 = vmatpush.msra.mxu0 0.0
      %1519 = vmatpush.msra.mxu0 0.0
      %1520 = vmatpush.msra.mxu0 0.0
      %1521 = vmatpush.msra.mxu0 0.0
      %1522 = vmatpush.msra.mxu0 0.0
      %1523 = vmatpush.msra.mxu0 0.0
      %1524 = vmatpush.msra.mxu0 0.0
      %1525 = vmatpush.msra.mxu0 0.0
      %1526 = vmatpush.msra.mxu0 0.0
      %1527 = vmatpush.msra.mxu0 0.0
      %1528 = vmatpush.msra.mxu0 %v766
      %1529 = vmatpush.msra.mxu0 %v229
      %1530 = vmatmul.f32.gmra.mxu0 %v681
      %v1531 = vpop.f32.mrf.mxu0
      %v1532 = vadd.f32 %v275, %v1531
      %1533 = vmatmul.f32.gmra.mxu0 %v684
      %v1534 = vpop.f32.mrf.mxu0
      %v1535 = vadd.f32 %v298, %v1534
      %1536 = vmatmul.f32.gmra.mxu0 %v687
      %v1537 = vpop.f32.mrf.mxu0
      %v1538 = vadd.f32 %v321, %v1537
      %1539 = vmatmul.f32.gmra.mxu0 %v690
      %v1540 = vpop.f32.mrf.mxu0
      %v1541 = vadd.f32 %v344, %v1540
      %1542 = vmatmul.f32.gmra.mxu0 %v693
      %v1543 = vpop.f32.mrf.mxu0
      %v1544 = vadd.f32 %v367, %v1543
      %1545 = vmatmul.f32.gmra.mxu0 %v696
      %v1546 = vpop.f32.mrf.mxu0
      %v1547 = vadd.f32 %v390, %v1546
      %1548 = vmatmul.f32.gmra.mxu0 %v699
      %v1549 = vpop.f32.mrf.mxu0
      %v1550 = vadd.f32 %v413, %v1549
      %1551 = vmatmul.f32.gmra.mxu0 %v702
      %v1552 = vpop.f32.mrf.mxu0
      %v1553 = vadd.f32 %v436, %v1552
      %1554 = vmatmul.f32.gmra.mxu0 %v705
      %v1555 = vpop.f32.mrf.mxu0
      %v1556 = vadd.f32 %v459, %v1555
      %1557 = vmatmul.f32.gmra.mxu0 %v708
      %v1558 = vpop.f32.mrf.mxu0
      %v1559 = vadd.f32 %v482, %v1558
      %1560 = vmatmul.f32.gmra.mxu0 %v711
      %v1561 = vpop.f32.mrf.mxu0
      %v1562 = vadd.f32 %v505, %v1561
      %1563 = vmatmul.f32.gmra.mxu0 %v714
      %v1564 = vpop.f32.mrf.mxu0
      %v1565 = vadd.f32 %v528, %v1564
      %1566 = vmatmul.f32.gmra.mxu0 %v717
      %v1567 = vpop.f32.mrf.mxu0
      %v1568 = vadd.f32 %v551, %v1567
      %1569 = vmatmul.f32.gmra.mxu0 %v720
      %v1570 = vpop.f32.mrf.mxu0
      %v1571 = vadd.f32 %v574, %v1570
      %1572 = vmatmul.f32.gmra.mxu0 %v723
      %v1573 = vpop.f32.mrf.mxu0
      %v1574 = vadd.f32 %v597, %v1573
      %1575 = vmatmul.f32.gmra.mxu0 %v726
      %v1576 = vpop.f32.mrf.mxu0
      %v1577 = vadd.f32 %v620, %v1576
      %1578 = vmatmul.f32.gmra.mxu0 %v729
      %v1579 = vpop.f32.mrf.mxu0
      %v1580 = vadd.f32 %v643, %v1579
      %1581 = vmatmul.f32.gmra.mxu0 %v732
      %v1582 = vpop.f32.mrf.mxu0
      %v1583 = vadd.f32 %v666, %v1582
      %1584 = vdwg.mxu0
      %1585 = vmatpush.msra.mxu0 0.0
      %1586 = vmatpush.msra.mxu0 0.0
      %1587 = vmatpush.msra.mxu0 0.0
      %1588 = vmatpush.msra.mxu0 0.0
      %1589 = vmatpush.msra.mxu0 0.0
      %1590 = vmatpush.msra.mxu0 0.0
      %1591 = vmatpush.msra.mxu0 0.0
      %1592 = vmatpush.msra.mxu0 0.0
      %1593 = vmatpush.msra.mxu0 0.0
      %1594 = vmatpush.msra.mxu0 0.0
      %1595 = vmatpush.msra.mxu0 0.0
      %1596 = vmatpush.msra.mxu0 0.0
      %1597 = vmatpush.msra.mxu0 0.0
      %1598 = vmatpush.msra.mxu0 0.0
      %1599 = vmatpush.msra.mxu0 %v769
      %1600 = vmatpush.msra.mxu0 %v230
      %1601 = vmatmul.f32.gmra.mxu0 %v681
      %v1602 = vpop.f32.mrf.mxu0
      %v1603 = vadd.f32 %v276, %v1602
      %1604 = vmatmul.f32.gmra.mxu0 %v684
      %v1605 = vpop.f32.mrf.mxu0
      %v1606 = vadd.f32 %v299, %v1605
      %1607 = vmatmul.f32.gmra.mxu0 %v687
      %v1608 = vpop.f32.mrf.mxu0
      %v1609 = vadd.f32 %v322, %v1608
      %1610 = vmatmul.f32.gmra.mxu0 %v690
      %v1611 = vpop.f32.mrf.mxu0
      %v1612 = vadd.f32 %v345, %v1611
      %1613 = vmatmul.f32.gmra.mxu0 %v693
      %v1614 = vpop.f32.mrf.mxu0
      %v1615 = vadd.f32 %v368, %v1614
      %1616 = vmatmul.f32.gmra.mxu0 %v696
      %v1617 = vpop.f32.mrf.mxu0
      %v1618 = vadd.f32 %v391, %v1617
      %1619 = vmatmul.f32.gmra.mxu0 %v699
      %v1620 = vpop.f32.mrf.mxu0
      %v1621 = vadd.f32 %v414, %v1620
      %1622 = vmatmul.f32.gmra.mxu0 %v702
      %v1623 = vpop.f32.mrf.mxu0
      %v1624 = vadd.f32 %v437, %v1623
      %1625 = vmatmul.f32.gmra.mxu0 %v705
      %v1626 = vpop.f32.mrf.mxu0
      %v1627 = vadd.f32 %v460, %v1626
      %1628 = vmatmul.f32.gmra.mxu0 %v708
      %v1629 = vpop.f32.mrf.mxu0
      %v1630 = vadd.f32 %v483, %v1629
      %1631 = vmatmul.f32.gmra.mxu0 %v711
      %v1632 = vpop.f32.mrf.mxu0
      %v1633 = vadd.f32 %v506, %v1632
      %1634 = vmatmul.f32.gmra.mxu0 %v714
      %v1635 = vpop.f32.mrf.mxu0
      %v1636 = vadd.f32 %v529, %v1635
      %1637 = vmatmul.f32.gmra.mxu0 %v717
      %v1638 = vpop.f32.mrf.mxu0
      %v1639 = vadd.f32 %v552, %v1638
      %1640 = vmatmul.f32.gmra.mxu0 %v720
      %v1641 = vpop.f32.mrf.mxu0
      %v1642 = vadd.f32 %v575, %v1641
      %1643 = vmatmul.f32.gmra.mxu0 %v723
      %v1644 = vpop.f32.mrf.mxu0
      %v1645 = vadd.f32 %v598, %v1644
      %1646 = vmatmul.f32.gmra.mxu0 %v726
      %v1647 = vpop.f32.mrf.mxu0
      %v1648 = vadd.f32 %v621, %v1647
      %1649 = vmatmul.f32.gmra.mxu0 %v729
      %v1650 = vpop.f32.mrf.mxu0
      %v1651 = vadd.f32 %v644, %v1650
      %1652 = vmatmul.f32.gmra.mxu0 %v732
      %v1653 = vpop.f32.mrf.mxu0
      %v1654 = vadd.f32 %v667, %v1653
      %1655 = vdwg.mxu0
      %1656 = vmatpush.msra.mxu0 0.0
      %1657 = vmatpush.msra.mxu0 0.0
      %1658 = vmatpush.msra.mxu0 0.0
      %1659 = vmatpush.msra.mxu0 0.0
      %1660 = vmatpush.msra.mxu0 0.0
      %1661 = vmatpush.msra.mxu0 0.0
      %1662 = vmatpush.msra.mxu0 0.0
      %1663 = vmatpush.msra.mxu0 0.0
      %1664 = vmatpush.msra.mxu0 0.0
      %1665 = vmatpush.msra.mxu0 0.0
      %1666 = vmatpush.msra.mxu0 0.0
      %1667 = vmatpush.msra.mxu0 0.0
      %1668 = vmatpush.msra.mxu0 0.0
      %1669 = vmatpush.msra.mxu0 0.0
      %1670 = vmatpush.msra.mxu0 %v772
      %1671 = vmatpush.msra.mxu0 %v231
      %1672 = vmatmul.f32.gmra.mxu0 %v681
      %v1673 = vpop.f32.mrf.mxu0
      %v1674 = vadd.f32 %v277, %v1673
      %1675 = vmatmul.f32.gmra.mxu0 %v684
      %v1676 = vpop.f32.mrf.mxu0
      %v1677 = vadd.f32 %v300, %v1676
      %1678 = vmatmul.f32.gmra.mxu0 %v687
      %v1679 = vpop.f32.mrf.mxu0
      %v1680 = vadd.f32 %v323, %v1679
      %1681 = vmatmul.f32.gmra.mxu0 %v690
      %v1682 = vpop.f32.mrf.mxu0
      %v1683 = vadd.f32 %v346, %v1682
      %1684 = vmatmul.f32.gmra.mxu0 %v693
      %v1685 = vpop.f32.mrf.mxu0
      %v1686 = vadd.f32 %v369, %v1685
      %1687 = vmatmul.f32.gmra.mxu0 %v696
      %v1688 = vpop.f32.mrf.mxu0
      %v1689 = vadd.f32 %v392, %v1688
      %1690 = vmatmul.f32.gmra.mxu0 %v699
      %v1691 = vpop.f32.mrf.mxu0
      %v1692 = vadd.f32 %v415, %v1691
      %1693 = vmatmul.f32.gmra.mxu0 %v702
      %v1694 = vpop.f32.mrf.mxu0
      %v1695 = vadd.f32 %v438, %v1694
      %1696 = vmatmul.f32.gmra.mxu0 %v705
      %v1697 = vpop.f32.mrf.mxu0
      %v1698 = vadd.f32 %v461, %v1697
      %1699 = vmatmul.f32.gmra.mxu0 %v708
      %v1700 = vpop.f32.mrf.mxu0
      %v1701 = vadd.f32 %v484, %v1700
      %1702 = vmatmul.f32.gmra.mxu0 %v711
      %v1703 = vpop.f32.mrf.mxu0
      %v1704 = vadd.f32 %v507, %v1703
      %1705 = vmatmul.f32.gmra.mxu0 %v714
      %v1706 = vpop.f32.mrf.mxu0
      %v1707 = vadd.f32 %v530, %v1706
      %1708 = vmatmul.f32.gmra.mxu0 %v717
      %v1709 = vpop.f32.mrf.mxu0
      %v1710 = vadd.f32 %v553, %v1709
      %1711 = vmatmul.f32.gmra.mxu0 %v720
      %v1712 = vpop.f32.mrf.mxu0
      %v1713 = vadd.f32 %v576, %v1712
      %1714 = vmatmul.f32.gmra.mxu0 %v723
      %v1715 = vpop.f32.mrf.mxu0
      %v1716 = vadd.f32 %v599, %v1715
      %1717 = vmatmul.f32.gmra.mxu0 %v726
      %v1718 = vpop.f32.mrf.mxu0
      %v1719 = vadd.f32 %v622, %v1718
      %1720 = vmatmul.f32.gmra.mxu0 %v729
      %v1721 = vpop.f32.mrf.mxu0
      %v1722 = vadd.f32 %v645, %v1721
      %1723 = vmatmul.f32.gmra.mxu0 %v732
      %v1724 = vpop.f32.mrf.mxu0
      %v1725 = vadd.f32 %v668, %v1724
      %1726 = vdwg.mxu0
      %1727 = vmatpush.msra.mxu0 0.0
      %1728 = vmatpush.msra.mxu0 0.0
      %1729 = vmatpush.msra.mxu0 0.0
      %1730 = vmatpush.msra.mxu0 0.0
      %1731 = vmatpush.msra.mxu0 0.0
      %1732 = vmatpush.msra.mxu0 0.0
      %1733 = vmatpush.msra.mxu0 0.0
      %1734 = vmatpush.msra.mxu0 0.0
      %1735 = vmatpush.msra.mxu0 0.0
      %1736 = vmatpush.msra.mxu0 0.0
      %1737 = vmatpush.msra.mxu0 0.0
      %1738 = vmatpush.msra.mxu0 0.0
      %1739 = vmatpush.msra.mxu0 0.0
      %1740 = vmatpush.msra.mxu0 0.0
      %1741 = vmatpush.msra.mxu0 %v775
      %1742 = vmatpush.msra.mxu0 %v232
      %1743 = vmatmul.f32.gmra.mxu0 %v681
      %v1744 = vpop.f32.mrf.mxu0
      %v1745 = vadd.f32 %v278, %v1744
      %1746 = vmatmul.f32.gmra.mxu0 %v684
      %v1747 = vpop.f32.mrf.mxu0
      %v1748 = vadd.f32 %v301, %v1747
      %1749 = vmatmul.f32.gmra.mxu0 %v687
      %v1750 = vpop.f32.mrf.mxu0
      %v1751 = vadd.f32 %v324, %v1750
      %1752 = vmatmul.f32.gmra.mxu0 %v690
      %v1753 = vpop.f32.mrf.mxu0
      %v1754 = vadd.f32 %v347, %v1753
      %1755 = vmatmul.f32.gmra.mxu0 %v693
      %v1756 = vpop.f32.mrf.mxu0
      %v1757 = vadd.f32 %v370, %v1756
      %1758 = vmatmul.f32.gmra.mxu0 %v696
      %v1759 = vpop.f32.mrf.mxu0
      %v1760 = vadd.f32 %v393, %v1759
      %1761 = vmatmul.f32.gmra.mxu0 %v699
      %v1762 = vpop.f32.mrf.mxu0
      %v1763 = vadd.f32 %v416, %v1762
      %1764 = vmatmul.f32.gmra.mxu0 %v702
      %v1765 = vpop.f32.mrf.mxu0
      %v1766 = vadd.f32 %v439, %v1765
      %1767 = vmatmul.f32.gmra.mxu0 %v705
      %v1768 = vpop.f32.mrf.mxu0
      %v1769 = vadd.f32 %v462, %v1768
      %1770 = vmatmul.f32.gmra.mxu0 %v708
      %v1771 = vpop.f32.mrf.mxu0
      %v1772 = vadd.f32 %v485, %v1771
      %1773 = vmatmul.f32.gmra.mxu0 %v711
      %v1774 = vpop.f32.mrf.mxu0
      %v1775 = vadd.f32 %v508, %v1774
      %1776 = vmatmul.f32.gmra.mxu0 %v714
      %v1777 = vpop.f32.mrf.mxu0
      %v1778 = vadd.f32 %v531, %v1777
      %1779 = vmatmul.f32.gmra.mxu0 %v717
      %v1780 = vpop.f32.mrf.mxu0
      %v1781 = vadd.f32 %v554, %v1780
      %1782 = vmatmul.f32.gmra.mxu0 %v720
      %v1783 = vpop.f32.mrf.mxu0
      %v1784 = vadd.f32 %v577, %v1783
      %1785 = vmatmul.f32.gmra.mxu0 %v723
      %v1786 = vpop.f32.mrf.mxu0
      %v1787 = vadd.f32 %v600, %v1786
      %1788 = vmatmul.f32.gmra.mxu0 %v726
      %v1789 = vpop.f32.mrf.mxu0
      %v1790 = vadd.f32 %v623, %v1789
      %1791 = vmatmul.f32.gmra.mxu0 %v729
      %v1792 = vpop.f32.mrf.mxu0
      %v1793 = vadd.f32 %v646, %v1792
      %1794 = vmatmul.f32.gmra.mxu0 %v732
      %v1795 = vpop.f32.mrf.mxu0
      %v1796 = vadd.f32 %v669, %v1795
      %1797 = vdwg.mxu0
      %1798 = vmatpush.msra.mxu0 0.0
      %1799 = vmatpush.msra.mxu0 0.0
      %1800 = vmatpush.msra.mxu0 0.0
      %1801 = vmatpush.msra.mxu0 0.0
      %1802 = vmatpush.msra.mxu0 0.0
      %1803 = vmatpush.msra.mxu0 0.0
      %1804 = vmatpush.msra.mxu0 0.0
      %1805 = vmatpush.msra.mxu0 0.0
      %1806 = vmatpush.msra.mxu0 0.0
      %1807 = vmatpush.msra.mxu0 0.0
      %1808 = vmatpush.msra.mxu0 0.0
      %1809 = vmatpush.msra.mxu0 0.0
      %1810 = vmatpush.msra.mxu0 0.0
      %1811 = vmatpush.msra.mxu0 0.0
      %1812 = vmatpush.msra.mxu0 %v778
      %1813 = vmatpush.msra.mxu0 %v233
      %1814 = vmatmul.f32.gmra.mxu0 %v681
      %v1815 = vpop.f32.mrf.mxu0
      %v1816 = vadd.f32 %v279, %v1815
      %1817 = vmatmul.f32.gmra.mxu0 %v684
      %v1818 = vpop.f32.mrf.mxu0
      %v1819 = vadd.f32 %v302, %v1818
      %1820 = vmatmul.f32.gmra.mxu0 %v687
      %v1821 = vpop.f32.mrf.mxu0
      %v1822 = vadd.f32 %v325, %v1821
      %1823 = vmatmul.f32.gmra.mxu0 %v690
      %v1824 = vpop.f32.mrf.mxu0
      %v1825 = vadd.f32 %v348, %v1824
      %1826 = vmatmul.f32.gmra.mxu0 %v693
      %v1827 = vpop.f32.mrf.mxu0
      %v1828 = vadd.f32 %v371, %v1827
      %1829 = vmatmul.f32.gmra.mxu0 %v696
      %v1830 = vpop.f32.mrf.mxu0
      %v1831 = vadd.f32 %v394, %v1830
      %1832 = vmatmul.f32.gmra.mxu0 %v699
      %v1833 = vpop.f32.mrf.mxu0
      %v1834 = vadd.f32 %v417, %v1833
      %1835 = vmatmul.f32.gmra.mxu0 %v702
      %v1836 = vpop.f32.mrf.mxu0
      %v1837 = vadd.f32 %v440, %v1836
      %1838 = vmatmul.f32.gmra.mxu0 %v705
      %v1839 = vpop.f32.mrf.mxu0
      %v1840 = vadd.f32 %v463, %v1839
      %1841 = vmatmul.f32.gmra.mxu0 %v708
      %v1842 = vpop.f32.mrf.mxu0
      %v1843 = vadd.f32 %v486, %v1842
      %1844 = vmatmul.f32.gmra.mxu0 %v711
      %v1845 = vpop.f32.mrf.mxu0
      %v1846 = vadd.f32 %v509, %v1845
      %1847 = vmatmul.f32.gmra.mxu0 %v714
      %v1848 = vpop.f32.mrf.mxu0
      %v1849 = vadd.f32 %v532, %v1848
      %1850 = vmatmul.f32.gmra.mxu0 %v717
      %v1851 = vpop.f32.mrf.mxu0
      %v1852 = vadd.f32 %v555, %v1851
      %1853 = vmatmul.f32.gmra.mxu0 %v720
      %v1854 = vpop.f32.mrf.mxu0
      %v1855 = vadd.f32 %v578, %v1854
      %1856 = vmatmul.f32.gmra.mxu0 %v723
      %v1857 = vpop.f32.mrf.mxu0
      %v1858 = vadd.f32 %v601, %v1857
      %1859 = vmatmul.f32.gmra.mxu0 %v726
      %v1860 = vpop.f32.mrf.mxu0
      %v1861 = vadd.f32 %v624, %v1860
      %1862 = vmatmul.f32.gmra.mxu0 %v729
      %v1863 = vpop.f32.mrf.mxu0
      %v1864 = vadd.f32 %v647, %v1863
      %1865 = vmatmul.f32.gmra.mxu0 %v732
      %v1866 = vpop.f32.mrf.mxu0
      %v1867 = vadd.f32 %v670, %v1866
      %1868 = vdwg.mxu0
      %1869 = vmatpush.msra.mxu0 0.0
      %1870 = vmatpush.msra.mxu0 0.0
      %1871 = vmatpush.msra.mxu0 0.0
      %1872 = vmatpush.msra.mxu0 0.0
      %1873 = vmatpush.msra.mxu0 0.0
      %1874 = vmatpush.msra.mxu0 0.0
      %1875 = vmatpush.msra.mxu0 0.0
      %1876 = vmatpush.msra.mxu0 0.0
      %1877 = vmatpush.msra.mxu0 0.0
      %1878 = vmatpush.msra.mxu0 0.0
      %1879 = vmatpush.msra.mxu0 0.0
      %1880 = vmatpush.msra.mxu0 0.0
      %1881 = vmatpush.msra.mxu0 0.0
      %1882 = vmatpush.msra.mxu0 0.0
      %1883 = vmatpush.msra.mxu0 %v781
      %1884 = vmatpush.msra.mxu0 %v234
      %1885 = vmatmul.f32.gmra.mxu0 %v681
      %v1886 = vpop.f32.mrf.mxu0
      %v1887 = vadd.f32 %v280, %v1886
      %1888 = vmatmul.f32.gmra.mxu0 %v684
      %v1889 = vpop.f32.mrf.mxu0
      %v1890 = vadd.f32 %v303, %v1889
      %1891 = vmatmul.f32.gmra.mxu0 %v687
      %v1892 = vpop.f32.mrf.mxu0
      %v1893 = vadd.f32 %v326, %v1892
      %1894 = vmatmul.f32.gmra.mxu0 %v690
      %v1895 = vpop.f32.mrf.mxu0
      %v1896 = vadd.f32 %v349, %v1895
      %1897 = vmatmul.f32.gmra.mxu0 %v693
      %v1898 = vpop.f32.mrf.mxu0
      %v1899 = vadd.f32 %v372, %v1898
      %1900 = vmatmul.f32.gmra.mxu0 %v696
      %v1901 = vpop.f32.mrf.mxu0
      %v1902 = vadd.f32 %v395, %v1901
      %1903 = vmatmul.f32.gmra.mxu0 %v699
      %v1904 = vpop.f32.mrf.mxu0
      %v1905 = vadd.f32 %v418, %v1904
      %1906 = vmatmul.f32.gmra.mxu0 %v702
      %v1907 = vpop.f32.mrf.mxu0
      %v1908 = vadd.f32 %v441, %v1907
      %1909 = vmatmul.f32.gmra.mxu0 %v705
      %v1910 = vpop.f32.mrf.mxu0
      %v1911 = vadd.f32 %v464, %v1910
      %1912 = vmatmul.f32.gmra.mxu0 %v708
      %v1913 = vpop.f32.mrf.mxu0
      %v1914 = vadd.f32 %v487, %v1913
      %1915 = vmatmul.f32.gmra.mxu0 %v711
      %v1916 = vpop.f32.mrf.mxu0
      %v1917 = vadd.f32 %v510, %v1916
      %1918 = vmatmul.f32.gmra.mxu0 %v714
      %v1919 = vpop.f32.mrf.mxu0
      %v1920 = vadd.f32 %v533, %v1919
      %1921 = vmatmul.f32.gmra.mxu0 %v717
      %v1922 = vpop.f32.mrf.mxu0
      %v1923 = vadd.f32 %v556, %v1922
      %1924 = vmatmul.f32.gmra.mxu0 %v720
      %v1925 = vpop.f32.mrf.mxu0
      %v1926 = vadd.f32 %v579, %v1925
      %1927 = vmatmul.f32.gmra.mxu0 %v723
      %v1928 = vpop.f32.mrf.mxu0
      %v1929 = vadd.f32 %v602, %v1928
      %1930 = vmatmul.f32.gmra.mxu0 %v726
      %v1931 = vpop.f32.mrf.mxu0
      %v1932 = vadd.f32 %v625, %v1931
      %1933 = vmatmul.f32.gmra.mxu0 %v729
      %v1934 = vpop.f32.mrf.mxu0
      %v1935 = vadd.f32 %v648, %v1934
      %1936 = vmatmul.f32.gmra.mxu0 %v732
      %v1937 = vpop.f32.mrf.mxu0
      %v1938 = vadd.f32 %v671, %v1937
      %1939 = vdwg.mxu0
      %1940 = vmatpush.msra.mxu0 0.0
      %1941 = vmatpush.msra.mxu0 0.0
      %1942 = vmatpush.msra.mxu0 0.0
      %1943 = vmatpush.msra.mxu0 0.0
      %1944 = vmatpush.msra.mxu0 0.0
      %1945 = vmatpush.msra.mxu0 0.0
      %1946 = vmatpush.msra.mxu0 0.0
      %1947 = vmatpush.msra.mxu0 0.0
      %1948 = vmatpush.msra.mxu0 0.0
      %1949 = vmatpush.msra.mxu0 0.0
      %1950 = vmatpush.msra.mxu0 0.0
      %1951 = vmatpush.msra.mxu0 0.0
      %1952 = vmatpush.msra.mxu0 0.0
      %1953 = vmatpush.msra.mxu0 0.0
      %1954 = vmatpush.msra.mxu0 %v784
      %1955 = vmatpush.msra.mxu0 %v235
      %1956 = vmatmul.f32.gmra.mxu0 %v681
      %v1957 = vpop.f32.mrf.mxu0
      %v1958 = vadd.f32 %v281, %v1957
      %1959 = vmatmul.f32.gmra.mxu0 %v684
      %v1960 = vpop.f32.mrf.mxu0
      %v1961 = vadd.f32 %v304, %v1960
      %1962 = vmatmul.f32.gmra.mxu0 %v687
      %v1963 = vpop.f32.mrf.mxu0
      %v1964 = vadd.f32 %v327, %v1963
      %1965 = vmatmul.f32.gmra.mxu0 %v690
      %v1966 = vpop.f32.mrf.mxu0
      %v1967 = vadd.f32 %v350, %v1966
      %1968 = vmatmul.f32.gmra.mxu0 %v693
      %v1969 = vpop.f32.mrf.mxu0
      %v1970 = vadd.f32 %v373, %v1969
      %1971 = vmatmul.f32.gmra.mxu0 %v696
      %v1972 = vpop.f32.mrf.mxu0
      %v1973 = vadd.f32 %v396, %v1972
      %1974 = vmatmul.f32.gmra.mxu0 %v699
      %v1975 = vpop.f32.mrf.mxu0
      %v1976 = vadd.f32 %v419, %v1975
      %1977 = vmatmul.f32.gmra.mxu0 %v702
      %v1978 = vpop.f32.mrf.mxu0
      %v1979 = vadd.f32 %v442, %v1978
      %1980 = vmatmul.f32.gmra.mxu0 %v705
      %v1981 = vpop.f32.mrf.mxu0
      %v1982 = vadd.f32 %v465, %v1981
      %1983 = vmatmul.f32.gmra.mxu0 %v708
      %v1984 = vpop.f32.mrf.mxu0
      %v1985 = vadd.f32 %v488, %v1984
      %1986 = vmatmul.f32.gmra.mxu0 %v711
      %v1987 = vpop.f32.mrf.mxu0
      %v1988 = vadd.f32 %v511, %v1987
      %1989 = vmatmul.f32.gmra.mxu0 %v714
      %v1990 = vpop.f32.mrf.mxu0
      %v1991 = vadd.f32 %v534, %v1990
      %1992 = vmatmul.f32.gmra.mxu0 %v717
      %v1993 = vpop.f32.mrf.mxu0
      %v1994 = vadd.f32 %v557, %v1993
      %1995 = vmatmul.f32.gmra.mxu0 %v720
      %v1996 = vpop.f32.mrf.mxu0
      %v1997 = vadd.f32 %v580, %v1996
      %1998 = vmatmul.f32.gmra.mxu0 %v723
      %v1999 = vpop.f32.mrf.mxu0
      %v2000 = vadd.f32 %v603, %v1999
      %2001 = vmatmul.f32.gmra.mxu0 %v726
      %v2002 = vpop.f32.mrf.mxu0
      %v2003 = vadd.f32 %v626, %v2002
      %2004 = vmatmul.f32.gmra.mxu0 %v729
      %v2005 = vpop.f32.mrf.mxu0
      %v2006 = vadd.f32 %v649, %v2005
      %2007 = vmatmul.f32.gmra.mxu0 %v732
      %v2008 = vpop.f32.mrf.mxu0
      %v2009 = vadd.f32 %v672, %v2008
      %2010 = vdwg.mxu0
      %2011 = vmatpush.msra.mxu0 0.0
      %2012 = vmatpush.msra.mxu0 0.0
      %2013 = vmatpush.msra.mxu0 0.0
      %2014 = vmatpush.msra.mxu0 0.0
      %2015 = vmatpush.msra.mxu0 0.0
      %2016 = vmatpush.msra.mxu0 0.0
      %2017 = vmatpush.msra.mxu0 0.0
      %2018 = vmatpush.msra.mxu0 0.0
      %2019 = vmatpush.msra.mxu0 0.0
      %2020 = vmatpush.msra.mxu0 0.0
      %2021 = vmatpush.msra.mxu0 0.0
      %2022 = vmatpush.msra.mxu0 0.0
      %2023 = vmatpush.msra.mxu0 0.0
      %2024 = vmatpush.msra.mxu0 0.0
      %2025 = vmatpush.msra.mxu0 %v787
      %2026 = vmatpush.msra.mxu0 %v236
      %2027 = vmatmul.f32.gmra.mxu0 %v681
      %v2028 = vpop.f32.mrf.mxu0
      %v2029 = vadd.f32 %v282, %v2028
      %2030 = vmatmul.f32.gmra.mxu0 %v684
      %v2031 = vpop.f32.mrf.mxu0
      %v2032 = vadd.f32 %v305, %v2031
      %2033 = vmatmul.f32.gmra.mxu0 %v687
      %v2034 = vpop.f32.mrf.mxu0
      %v2035 = vadd.f32 %v328, %v2034
      %2036 = vmatmul.f32.gmra.mxu0 %v690
      %v2037 = vpop.f32.mrf.mxu0
      %v2038 = vadd.f32 %v351, %v2037
      %2039 = vmatmul.f32.gmra.mxu0 %v693
      %v2040 = vpop.f32.mrf.mxu0
      %v2041 = vadd.f32 %v374, %v2040
      %2042 = vmatmul.f32.gmra.mxu0 %v696
      %v2043 = vpop.f32.mrf.mxu0
      %v2044 = vadd.f32 %v397, %v2043
      %2045 = vmatmul.f32.gmra.mxu0 %v699
      %v2046 = vpop.f32.mrf.mxu0
      %v2047 = vadd.f32 %v420, %v2046
      %2048 = vmatmul.f32.gmra.mxu0 %v702
      %v2049 = vpop.f32.mrf.mxu0
      %v2050 = vadd.f32 %v443, %v2049
      %2051 = vmatmul.f32.gmra.mxu0 %v705
      %v2052 = vpop.f32.mrf.mxu0
      %v2053 = vadd.f32 %v466, %v2052
      %2054 = vmatmul.f32.gmra.mxu0 %v708
      %v2055 = vpop.f32.mrf.mxu0
      %v2056 = vadd.f32 %v489, %v2055
      %2057 = vmatmul.f32.gmra.mxu0 %v711
      %v2058 = vpop.f32.mrf.mxu0
      %v2059 = vadd.f32 %v512, %v2058
      %2060 = vmatmul.f32.gmra.mxu0 %v714
      %v2061 = vpop.f32.mrf.mxu0
      %v2062 = vadd.f32 %v535, %v2061
      %2063 = vmatmul.f32.gmra.mxu0 %v717
      %v2064 = vpop.f32.mrf.mxu0
      %v2065 = vadd.f32 %v558, %v2064
      %2066 = vmatmul.f32.gmra.mxu0 %v720
      %v2067 = vpop.f32.mrf.mxu0
      %v2068 = vadd.f32 %v581, %v2067
      %2069 = vmatmul.f32.gmra.mxu0 %v723
      %v2070 = vpop.f32.mrf.mxu0
      %v2071 = vadd.f32 %v604, %v2070
      %2072 = vmatmul.f32.gmra.mxu0 %v726
      %v2073 = vpop.f32.mrf.mxu0
      %v2074 = vadd.f32 %v627, %v2073
      %2075 = vmatmul.f32.gmra.mxu0 %v729
      %v2076 = vpop.f32.mrf.mxu0
      %v2077 = vadd.f32 %v650, %v2076
      %2078 = vmatmul.f32.gmra.mxu0 %v732
      %v2079 = vpop.f32.mrf.mxu0
      %v2080 = vadd.f32 %v673, %v2079
      %2081 = vdwg.mxu0
      %2082 = vmatpush.msra.mxu0 0.0
      %2083 = vmatpush.msra.mxu0 0.0
      %2084 = vmatpush.msra.mxu0 0.0
      %2085 = vmatpush.msra.mxu0 0.0
      %2086 = vmatpush.msra.mxu0 0.0
      %2087 = vmatpush.msra.mxu0 0.0
      %2088 = vmatpush.msra.mxu0 0.0
      %2089 = vmatpush.msra.mxu0 0.0
      %2090 = vmatpush.msra.mxu0 0.0
      %2091 = vmatpush.msra.mxu0 0.0
      %2092 = vmatpush.msra.mxu0 0.0
      %2093 = vmatpush.msra.mxu0 0.0
      %2094 = vmatpush.msra.mxu0 0.0
      %2095 = vmatpush.msra.mxu0 0.0
      %2096 = vmatpush.msra.mxu0 %v790
      %2097 = vmatpush.msra.mxu0 %v237
      %2098 = vmatmul.f32.gmra.mxu0 %v681
      %v2099 = vpop.f32.mrf.mxu0
      %v2100 = vadd.f32 %v283, %v2099
      %2101 = vmatmul.f32.gmra.mxu0 %v684
      %v2102 = vpop.f32.mrf.mxu0
      %v2103 = vadd.f32 %v306, %v2102
      %2104 = vmatmul.f32.gmra.mxu0 %v687
      %v2105 = vpop.f32.mrf.mxu0
      %v2106 = vadd.f32 %v329, %v2105
      %2107 = vmatmul.f32.gmra.mxu0 %v690
      %v2108 = vpop.f32.mrf.mxu0
      %v2109 = vadd.f32 %v352, %v2108
      %2110 = vmatmul.f32.gmra.mxu0 %v693
      %v2111 = vpop.f32.mrf.mxu0
      %v2112 = vadd.f32 %v375, %v2111
      %2113 = vmatmul.f32.gmra.mxu0 %v696
      %v2114 = vpop.f32.mrf.mxu0
      %v2115 = vadd.f32 %v398, %v2114
      %2116 = vmatmul.f32.gmra.mxu0 %v699
      %v2117 = vpop.f32.mrf.mxu0
      %v2118 = vadd.f32 %v421, %v2117
      %2119 = vmatmul.f32.gmra.mxu0 %v702
      %v2120 = vpop.f32.mrf.mxu0
      %v2121 = vadd.f32 %v444, %v2120
      %2122 = vmatmul.f32.gmra.mxu0 %v705
      %v2123 = vpop.f32.mrf.mxu0
      %v2124 = vadd.f32 %v467, %v2123
      %2125 = vmatmul.f32.gmra.mxu0 %v708
      %v2126 = vpop.f32.mrf.mxu0
      %v2127 = vadd.f32 %v490, %v2126
      %2128 = vmatmul.f32.gmra.mxu0 %v711
      %v2129 = vpop.f32.mrf.mxu0
      %v2130 = vadd.f32 %v513, %v2129
      %2131 = vmatmul.f32.gmra.mxu0 %v714
      %v2132 = vpop.f32.mrf.mxu0
      %v2133 = vadd.f32 %v536, %v2132
      %2134 = vmatmul.f32.gmra.mxu0 %v717
      %v2135 = vpop.f32.mrf.mxu0
      %v2136 = vadd.f32 %v559, %v2135
      %2137 = vmatmul.f32.gmra.mxu0 %v720
      %v2138 = vpop.f32.mrf.mxu0
      %v2139 = vadd.f32 %v582, %v2138
      %2140 = vmatmul.f32.gmra.mxu0 %v723
      %v2141 = vpop.f32.mrf.mxu0
      %v2142 = vadd.f32 %v605, %v2141
      %2143 = vmatmul.f32.gmra.mxu0 %v726
      %v2144 = vpop.f32.mrf.mxu0
      %v2145 = vadd.f32 %v628, %v2144
      %2146 = vmatmul.f32.gmra.mxu0 %v729
      %v2147 = vpop.f32.mrf.mxu0
      %v2148 = vadd.f32 %v651, %v2147
      %2149 = vmatmul.f32.gmra.mxu0 %v732
      %v2150 = vpop.f32.mrf.mxu0
      %v2151 = vadd.f32 %v674, %v2150
      %2152 = vdwg.mxu0
      %2153 = vmatpush.msra.mxu0 0.0
      %2154 = vmatpush.msra.mxu0 0.0
      %2155 = vmatpush.msra.mxu0 0.0
      %2156 = vmatpush.msra.mxu0 0.0
      %2157 = vmatpush.msra.mxu0 0.0
      %2158 = vmatpush.msra.mxu0 0.0
      %2159 = vmatpush.msra.mxu0 0.0
      %2160 = vmatpush.msra.mxu0 0.0
      %2161 = vmatpush.msra.mxu0 0.0
      %2162 = vmatpush.msra.mxu0 0.0
      %2163 = vmatpush.msra.mxu0 0.0
      %2164 = vmatpush.msra.mxu0 0.0
      %2165 = vmatpush.msra.mxu0 0.0
      %2166 = vmatpush.msra.mxu0 0.0
      %2167 = vmatpush.msra.mxu0 %v793
      %2168 = vmatpush.msra.mxu0 %v238
      %2169 = vmatmul.f32.gmra.mxu0 %v681
      %v2170 = vpop.f32.mrf.mxu0
      %v2171 = vadd.f32 %v284, %v2170
      %2172 = vmatmul.f32.gmra.mxu0 %v684
      %v2173 = vpop.f32.mrf.mxu0
      %v2174 = vadd.f32 %v307, %v2173
      %2175 = vmatmul.f32.gmra.mxu0 %v687
      %v2176 = vpop.f32.mrf.mxu0
      %v2177 = vadd.f32 %v330, %v2176
      %2178 = vmatmul.f32.gmra.mxu0 %v690
      %v2179 = vpop.f32.mrf.mxu0
      %v2180 = vadd.f32 %v353, %v2179
      %2181 = vmatmul.f32.gmra.mxu0 %v693
      %v2182 = vpop.f32.mrf.mxu0
      %v2183 = vadd.f32 %v376, %v2182
      %2184 = vmatmul.f32.gmra.mxu0 %v696
      %v2185 = vpop.f32.mrf.mxu0
      %v2186 = vadd.f32 %v399, %v2185
      %2187 = vmatmul.f32.gmra.mxu0 %v699
      %v2188 = vpop.f32.mrf.mxu0
      %v2189 = vadd.f32 %v422, %v2188
      %2190 = vmatmul.f32.gmra.mxu0 %v702
      %v2191 = vpop.f32.mrf.mxu0
      %v2192 = vadd.f32 %v445, %v2191
      %2193 = vmatmul.f32.gmra.mxu0 %v705
      %v2194 = vpop.f32.mrf.mxu0
      %v2195 = vadd.f32 %v468, %v2194
      %2196 = vmatmul.f32.gmra.mxu0 %v708
      %v2197 = vpop.f32.mrf.mxu0
      %v2198 = vadd.f32 %v491, %v2197
      %2199 = vmatmul.f32.gmra.mxu0 %v711
      %v2200 = vpop.f32.mrf.mxu0
      %v2201 = vadd.f32 %v514, %v2200
      %2202 = vmatmul.f32.gmra.mxu0 %v714
      %v2203 = vpop.f32.mrf.mxu0
      %v2204 = vadd.f32 %v537, %v2203
      %2205 = vmatmul.f32.gmra.mxu0 %v717
      %v2206 = vpop.f32.mrf.mxu0
      %v2207 = vadd.f32 %v560, %v2206
      %2208 = vmatmul.f32.gmra.mxu0 %v720
      %v2209 = vpop.f32.mrf.mxu0
      %v2210 = vadd.f32 %v583, %v2209
      %2211 = vmatmul.f32.gmra.mxu0 %v723
      %v2212 = vpop.f32.mrf.mxu0
      %v2213 = vadd.f32 %v606, %v2212
      %2214 = vmatmul.f32.gmra.mxu0 %v726
      %v2215 = vpop.f32.mrf.mxu0
      %v2216 = vadd.f32 %v629, %v2215
      %2217 = vmatmul.f32.gmra.mxu0 %v729
      %v2218 = vpop.f32.mrf.mxu0
      %v2219 = vadd.f32 %v652, %v2218
      %2220 = vmatmul.f32.gmra.mxu0 %v732
      %v2221 = vpop.f32.mrf.mxu0
      %v2222 = vadd.f32 %v675, %v2221
      %2223 = vdwg.mxu0
      %2224 = vmatpush.msra.mxu0 0.0
      %2225 = vmatpush.msra.mxu0 0.0
      %2226 = vmatpush.msra.mxu0 0.0
      %2227 = vmatpush.msra.mxu0 0.0
      %2228 = vmatpush.msra.mxu0 0.0
      %2229 = vmatpush.msra.mxu0 0.0
      %2230 = vmatpush.msra.mxu0 0.0
      %2231 = vmatpush.msra.mxu0 0.0
      %2232 = vmatpush.msra.mxu0 0.0
      %2233 = vmatpush.msra.mxu0 0.0
      %2234 = vmatpush.msra.mxu0 0.0
      %2235 = vmatpush.msra.mxu0 0.0
      %2236 = vmatpush.msra.mxu0 0.0
      %2237 = vmatpush.msra.mxu0 0.0
      %2238 = vmatpush.msra.mxu0 %v796
      %2239 = vmatpush.msra.mxu0 %v239
      %2240 = vmatmul.f32.gmra.mxu0 %v681
      %v2241 = vpop.f32.mrf.mxu0
      %v2242 = vadd.f32 %v285, %v2241
      %2243 = vmatmul.f32.gmra.mxu0 %v684
      %v2244 = vpop.f32.mrf.mxu0
      %v2245 = vadd.f32 %v308, %v2244
      %2246 = vmatmul.f32.gmra.mxu0 %v687
      %v2247 = vpop.f32.mrf.mxu0
      %v2248 = vadd.f32 %v331, %v2247
      %2249 = vmatmul.f32.gmra.mxu0 %v690
      %v2250 = vpop.f32.mrf.mxu0
      %v2251 = vadd.f32 %v354, %v2250
      %2252 = vmatmul.f32.gmra.mxu0 %v693
      %v2253 = vpop.f32.mrf.mxu0
      %v2254 = vadd.f32 %v377, %v2253
      %2255 = vmatmul.f32.gmra.mxu0 %v696
      %v2256 = vpop.f32.mrf.mxu0
      %v2257 = vadd.f32 %v400, %v2256
      %2258 = vmatmul.f32.gmra.mxu0 %v699
      %v2259 = vpop.f32.mrf.mxu0
      %v2260 = vadd.f32 %v423, %v2259
      %2261 = vmatmul.f32.gmra.mxu0 %v702
      %v2262 = vpop.f32.mrf.mxu0
      %v2263 = vadd.f32 %v446, %v2262
      %2264 = vmatmul.f32.gmra.mxu0 %v705
      %v2265 = vpop.f32.mrf.mxu0
      %v2266 = vadd.f32 %v469, %v2265
      %2267 = vmatmul.f32.gmra.mxu0 %v708
      %v2268 = vpop.f32.mrf.mxu0
      %v2269 = vadd.f32 %v492, %v2268
      %2270 = vmatmul.f32.gmra.mxu0 %v711
      %v2271 = vpop.f32.mrf.mxu0
      %v2272 = vadd.f32 %v515, %v2271
      %2273 = vmatmul.f32.gmra.mxu0 %v714
      %v2274 = vpop.f32.mrf.mxu0
      %v2275 = vadd.f32 %v538, %v2274
      %2276 = vmatmul.f32.gmra.mxu0 %v717
      %v2277 = vpop.f32.mrf.mxu0
      %v2278 = vadd.f32 %v561, %v2277
      %2279 = vmatmul.f32.gmra.mxu0 %v720
      %v2280 = vpop.f32.mrf.mxu0
      %v2281 = vadd.f32 %v584, %v2280
      %2282 = vmatmul.f32.gmra.mxu0 %v723
      %v2283 = vpop.f32.mrf.mxu0
      %v2284 = vadd.f32 %v607, %v2283
      %2285 = vmatmul.f32.gmra.mxu0 %v726
      %v2286 = vpop.f32.mrf.mxu0
      %v2287 = vadd.f32 %v630, %v2286
      %2288 = vmatmul.f32.gmra.mxu0 %v729
      %v2289 = vpop.f32.mrf.mxu0
      %v2290 = vadd.f32 %v653, %v2289
      %2291 = vmatmul.f32.gmra.mxu0 %v732
      %v2292 = vpop.f32.mrf.mxu0
      %v2293 = vadd.f32 %v676, %v2292
      %2294 = vdwg.mxu0
      %2295 = vmatpush.msra.mxu0 0.0
      %2296 = vmatpush.msra.mxu0 0.0
      %2297 = vmatpush.msra.mxu0 0.0
      %2298 = vmatpush.msra.mxu0 0.0
      %2299 = vmatpush.msra.mxu0 0.0
      %2300 = vmatpush.msra.mxu0 0.0
      %2301 = vmatpush.msra.mxu0 0.0
      %2302 = vmatpush.msra.mxu0 0.0
      %2303 = vmatpush.msra.mxu0 0.0
      %2304 = vmatpush.msra.mxu0 0.0
      %2305 = vmatpush.msra.mxu0 0.0
      %2306 = vmatpush.msra.mxu0 0.0
      %2307 = vmatpush.msra.mxu0 0.0
      %2308 = vmatpush.msra.mxu0 0.0
      %2309 = vmatpush.msra.mxu0 %v799
      %2310 = vmatpush.msra.mxu0 %v240
      %2311 = vmatmul.f32.gmra.mxu0 %v681
      %v2312 = vpop.f32.mrf.mxu0
      %v2313 = vadd.f32 %v286, %v2312
      %2314 = vmatmul.f32.gmra.mxu0 %v684
      %v2315 = vpop.f32.mrf.mxu0
      %v2316 = vadd.f32 %v309, %v2315
      %2317 = vmatmul.f32.gmra.mxu0 %v687
      %v2318 = vpop.f32.mrf.mxu0
      %v2319 = vadd.f32 %v332, %v2318
      %2320 = vmatmul.f32.gmra.mxu0 %v690
      %v2321 = vpop.f32.mrf.mxu0
      %v2322 = vadd.f32 %v355, %v2321
      %2323 = vmatmul.f32.gmra.mxu0 %v693
      %v2324 = vpop.f32.mrf.mxu0
      %v2325 = vadd.f32 %v378, %v2324
      %2326 = vmatmul.f32.gmra.mxu0 %v696
      %v2327 = vpop.f32.mrf.mxu0
      %v2328 = vadd.f32 %v401, %v2327
      %2329 = vmatmul.f32.gmra.mxu0 %v699
      %v2330 = vpop.f32.mrf.mxu0
      %v2331 = vadd.f32 %v424, %v2330
      %2332 = vmatmul.f32.gmra.mxu0 %v702
      %v2333 = vpop.f32.mrf.mxu0
      %v2334 = vadd.f32 %v447, %v2333
      %2335 = vmatmul.f32.gmra.mxu0 %v705
      %v2336 = vpop.f32.mrf.mxu0
      %v2337 = vadd.f32 %v470, %v2336
      %2338 = vmatmul.f32.gmra.mxu0 %v708
      %v2339 = vpop.f32.mrf.mxu0
      %v2340 = vadd.f32 %v493, %v2339
      %2341 = vmatmul.f32.gmra.mxu0 %v711
      %v2342 = vpop.f32.mrf.mxu0
      %v2343 = vadd.f32 %v516, %v2342
      %2344 = vmatmul.f32.gmra.mxu0 %v714
      %v2345 = vpop.f32.mrf.mxu0
      %v2346 = vadd.f32 %v539, %v2345
      %2347 = vmatmul.f32.gmra.mxu0 %v717
      %v2348 = vpop.f32.mrf.mxu0
      %v2349 = vadd.f32 %v562, %v2348
      %2350 = vmatmul.f32.gmra.mxu0 %v720
      %v2351 = vpop.f32.mrf.mxu0
      %v2352 = vadd.f32 %v585, %v2351
      %2353 = vmatmul.f32.gmra.mxu0 %v723
      %v2354 = vpop.f32.mrf.mxu0
      %v2355 = vadd.f32 %v608, %v2354
      %2356 = vmatmul.f32.gmra.mxu0 %v726
      %v2357 = vpop.f32.mrf.mxu0
      %v2358 = vadd.f32 %v631, %v2357
      %2359 = vmatmul.f32.gmra.mxu0 %v729
      %v2360 = vpop.f32.mrf.mxu0
      %v2361 = vadd.f32 %v654, %v2360
      %2362 = vmatmul.f32.gmra.mxu0 %v732
      %v2363 = vpop.f32.mrf.mxu0
      %v2364 = vadd.f32 %v677, %v2363
      %2365 = vdwg.mxu0
      %2366 = vmatpush.msra.mxu0 0.0
      %2367 = vmatpush.msra.mxu0 0.0
      %2368 = vmatpush.msra.mxu0 0.0
      %2369 = vmatpush.msra.mxu0 0.0
      %2370 = vmatpush.msra.mxu0 0.0
      %2371 = vmatpush.msra.mxu0 0.0
      %2372 = vmatpush.msra.mxu0 0.0
      %2373 = vmatpush.msra.mxu0 0.0
      %2374 = vmatpush.msra.mxu0 0.0
      %2375 = vmatpush.msra.mxu0 0.0
      %2376 = vmatpush.msra.mxu0 0.0
      %2377 = vmatpush.msra.mxu0 0.0
      %2378 = vmatpush.msra.mxu0 0.0
      %2379 = vmatpush.msra.mxu0 0.0
      %2380 = vmatpush.msra.mxu0 %v802
      %2381 = vmatpush.msra.mxu0 %v241
      %2382 = vmatmul.f32.gmra.mxu0 %v681
      %v2383 = vpop.f32.mrf.mxu0
      %v2384 = vadd.f32 %v287, %v2383
      %2385 = vmatmul.f32.gmra.mxu0 %v684
      %v2386 = vpop.f32.mrf.mxu0
      %v2387 = vadd.f32 %v310, %v2386
      %2388 = vmatmul.f32.gmra.mxu0 %v687
      %v2389 = vpop.f32.mrf.mxu0
      %v2390 = vadd.f32 %v333, %v2389
      %2391 = vmatmul.f32.gmra.mxu0 %v690
      %v2392 = vpop.f32.mrf.mxu0
      %v2393 = vadd.f32 %v356, %v2392
      %2394 = vmatmul.f32.gmra.mxu0 %v693
      %v2395 = vpop.f32.mrf.mxu0
      %v2396 = vadd.f32 %v379, %v2395
      %2397 = vmatmul.f32.gmra.mxu0 %v696
      %v2398 = vpop.f32.mrf.mxu0
      %v2399 = vadd.f32 %v402, %v2398
      %2400 = vmatmul.f32.gmra.mxu0 %v699
      %v2401 = vpop.f32.mrf.mxu0
      %v2402 = vadd.f32 %v425, %v2401
      %2403 = vmatmul.f32.gmra.mxu0 %v702
      %v2404 = vpop.f32.mrf.mxu0
      %v2405 = vadd.f32 %v448, %v2404
      %2406 = vmatmul.f32.gmra.mxu0 %v705
      %v2407 = vpop.f32.mrf.mxu0
      %v2408 = vadd.f32 %v471, %v2407
      %2409 = vmatmul.f32.gmra.mxu0 %v708
      %v2410 = vpop.f32.mrf.mxu0
      %v2411 = vadd.f32 %v494, %v2410
      %2412 = vmatmul.f32.gmra.mxu0 %v711
      %v2413 = vpop.f32.mrf.mxu0
      %v2414 = vadd.f32 %v517, %v2413
      %2415 = vmatmul.f32.gmra.mxu0 %v714
      %v2416 = vpop.f32.mrf.mxu0
      %v2417 = vadd.f32 %v540, %v2416
      %2418 = vmatmul.f32.gmra.mxu0 %v717
      %v2419 = vpop.f32.mrf.mxu0
      %v2420 = vadd.f32 %v563, %v2419
      %2421 = vmatmul.f32.gmra.mxu0 %v720
      %v2422 = vpop.f32.mrf.mxu0
      %v2423 = vadd.f32 %v586, %v2422
      %2424 = vmatmul.f32.gmra.mxu0 %v723
      %v2425 = vpop.f32.mrf.mxu0
      %v2426 = vadd.f32 %v609, %v2425
      %2427 = vmatmul.f32.gmra.mxu0 %v726
      %v2428 = vpop.f32.mrf.mxu0
      %v2429 = vadd.f32 %v632, %v2428
      %2430 = vmatmul.f32.gmra.mxu0 %v729
      %v2431 = vpop.f32.mrf.mxu0
      %v2432 = vadd.f32 %v655, %v2431
      %2433 = vmatmul.f32.gmra.mxu0 %v732
      %v2434 = vpop.f32.mrf.mxu0
      %v2435 = vadd.f32 %v678, %v2434
      %2436 = vdwg.mxu0
      %v2437 = vmax.f32 %v822, 0.0
      %v2438 = vmax.f32 %v893, 0.0
      %v2439 = vmax.f32 %v964, 0.0
      %v2440 = vmax.f32 %v1035, 0.0
      %v2441 = vmax.f32 %v1106, 0.0
      %v2442 = vmax.f32 %v1177, 0.0
      %v2443 = vmax.f32 %v1248, 0.0
      %v2444 = vmax.f32 %v1319, 0.0
      %v2445 = vmax.f32 %v1390, 0.0
      %v2446 = vmax.f32 %v1461, 0.0
      %v2447 = vmax.f32 %v1532, 0.0
      %v2448 = vmax.f32 %v1603, 0.0
      %v2449 = vmax.f32 %v1674, 0.0
      %v2450 = vmax.f32 %v1745, 0.0
      %v2451 = vmax.f32 %v1816, 0.0
      %v2452 = vmax.f32 %v1887, 0.0
      %v2453 = vmax.f32 %v1958, 0.0
      %v2454 = vmax.f32 %v2029, 0.0
      %v2455 = vmax.f32 %v2100, 0.0
      %v2456 = vmax.f32 %v2171, 0.0
      %v2457 = vmax.f32 %v2242, 0.0
      %v2458 = vmax.f32 %v2313, 0.0
      %v2459 = vmax.f32 %v2384, 0.0
      %v2460 = vmax.f32 %v825, 0.0
      %v2461 = vmax.f32 %v896, 0.0
      %v2462 = vmax.f32 %v967, 0.0
      %v2463 = vmax.f32 %v1038, 0.0
      %v2464 = vmax.f32 %v1109, 0.0
      %v2465 = vmax.f32 %v1180, 0.0
      %v2466 = vmax.f32 %v1251, 0.0
      %v2467 = vmax.f32 %v1322, 0.0
      %v2468 = vmax.f32 %v1393, 0.0
      %v2469 = vmax.f32 %v1464, 0.0
      %v2470 = vmax.f32 %v1535, 0.0
      %v2471 = vmax.f32 %v1606, 0.0
      %v2472 = vmax.f32 %v1677, 0.0
      %v2473 = vmax.f32 %v1748, 0.0
      %v2474 = vmax.f32 %v1819, 0.0
      %v2475 = vmax.f32 %v1890, 0.0
      %v2476 = vmax.f32 %v1961, 0.0
      %v2477 = vmax.f32 %v2032, 0.0
      %v2478 = vmax.f32 %v2103, 0.0
      %v2479 = vmax.f32 %v2174, 0.0
      %v2480 = vmax.f32 %v2245, 0.0
      %v2481 = vmax.f32 %v2316, 0.0
      %v2482 = vmax.f32 %v2387, 0.0
      %v2483 = vmax.f32 %v828, 0.0
      %v2484 = vmax.f32 %v899, 0.0
      %v2485 = vmax.f32 %v970, 0.0
      %v2486 = vmax.f32 %v1041, 0.0
      %v2487 = vmax.f32 %v1112, 0.0
      %v2488 = vmax.f32 %v1183, 0.0
      %v2489 = vmax.f32 %v1254, 0.0
      %v2490 = vmax.f32 %v1325, 0.0
      %v2491 = vmax.f32 %v1396, 0.0
      %v2492 = vmax.f32 %v1467, 0.0
      %v2493 = vmax.f32 %v1538, 0.0
      %v2494 = vmax.f32 %v1609, 0.0
      %v2495 = vmax.f32 %v1680, 0.0
      %v2496 = vmax.f32 %v1751, 0.0
      %v2497 = vmax.f32 %v1822, 0.0
      %v2498 = vmax.f32 %v1893, 0.0
      %v2499 = vmax.f32 %v1964, 0.0
      %v2500 = vmax.f32 %v2035, 0.0
      %v2501 = vmax.f32 %v2106, 0.0
      %v2502 = vmax.f32 %v2177, 0.0
      %v2503 = vmax.f32 %v2248, 0.0
      %v2504 = vmax.f32 %v2319, 0.0
      %v2505 = vmax.f32 %v2390, 0.0
      %v2506 = vmax.f32 %v831, 0.0
      %v2507 = vmax.f32 %v902, 0.0
      %v2508 = vmax.f32 %v973, 0.0
      %v2509 = vmax.f32 %v1044, 0.0
      %v2510 = vmax.f32 %v1115, 0.0
      %v2511 = vmax.f32 %v1186, 0.0
      %v2512 = vmax.f32 %v1257, 0.0
      %v2513 = vmax.f32 %v1328, 0.0
      %v2514 = vmax.f32 %v1399, 0.0
      %v2515 = vmax.f32 %v1470, 0.0
      %v2516 = vmax.f32 %v1541, 0.0
      %v2517 = vmax.f32 %v1612, 0.0
      %v2518 = vmax.f32 %v1683, 0.0
      %v2519 = vmax.f32 %v1754, 0.0
      %v2520 = vmax.f32 %v1825, 0.0
      %v2521 = vmax.f32 %v1896, 0.0
      %v2522 = vmax.f32 %v1967, 0.0
      %v2523 = vmax.f32 %v2038, 0.0
      %v2524 = vmax.f32 %v2109, 0.0
      %v2525 = vmax.f32 %v2180, 0.0
      %v2526 = vmax.f32 %v2251, 0.0
      %v2527 = vmax.f32 %v2322, 0.0
      %v2528 = vmax.f32 %v2393, 0.0
      %v2529 = vmax.f32 %v834, 0.0
      %v2530 = vmax.f32 %v905, 0.0
      %v2531 = vmax.f32 %v976, 0.0
      %v2532 = vmax.f32 %v1047, 0.0
      %v2533 = vmax.f32 %v1118, 0.0
      %v2534 = vmax.f32 %v1189, 0.0
      %v2535 = vmax.f32 %v1260, 0.0
      %v2536 = vmax.f32 %v1331, 0.0
      %v2537 = vmax.f32 %v1402, 0.0
      %v2538 = vmax.f32 %v1473, 0.0
      %v2539 = vmax.f32 %v1544, 0.0
      %v2540 = vmax.f32 %v1615, 0.0
      %v2541 = vmax.f32 %v1686, 0.0
      %v2542 = vmax.f32 %v1757, 0.0
      %v2543 = vmax.f32 %v1828, 0.0
      %v2544 = vmax.f32 %v1899, 0.0
      %v2545 = vmax.f32 %v1970, 0.0
      %v2546 = vmax.f32 %v2041, 0.0
      %v2547 = vmax.f32 %v2112, 0.0
      %v2548 = vmax.f32 %v2183, 0.0
      %v2549 = vmax.f32 %v2254, 0.0
      %v2550 = vmax.f32 %v2325, 0.0
      %v2551 = vmax.f32 %v2396, 0.0
      %v2552 = vmax.f32 %v837, 0.0
      %v2553 = vmax.f32 %v908, 0.0
      %v2554 = vmax.f32 %v979, 0.0
      %v2555 = vmax.f32 %v1050, 0.0
      %v2556 = vmax.f32 %v1121, 0.0
      %v2557 = vmax.f32 %v1192, 0.0
      %v2558 = vmax.f32 %v1263, 0.0
      %v2559 = vmax.f32 %v1334, 0.0
      %v2560 = vmax.f32 %v1405, 0.0
      %v2561 = vmax.f32 %v1476, 0.0
      %v2562 = vmax.f32 %v1547, 0.0
      %v2563 = vmax.f32 %v1618, 0.0
      %v2564 = vmax.f32 %v1689, 0.0
      %v2565 = vmax.f32 %v1760, 0.0
      %v2566 = vmax.f32 %v1831, 0.0
      %v2567 = vmax.f32 %v1902, 0.0
      %v2568 = vmax.f32 %v1973, 0.0
      %v2569 = vmax.f32 %v2044, 0.0
      %v2570 = vmax.f32 %v2115, 0.0
      %v2571 = vmax.f32 %v2186, 0.0
      %v2572 = vmax.f32 %v2257, 0.0
      %v2573 = vmax.f32 %v2328, 0.0
      %v2574 = vmax.f32 %v2399, 0.0
      %v2575 = vmax.f32 %v840, 0.0
      %v2576 = vmax.f32 %v911, 0.0
      %v2577 = vmax.f32 %v982, 0.0
      %v2578 = vmax.f32 %v1053, 0.0
      %v2579 = vmax.f32 %v1124, 0.0
      %v2580 = vmax.f32 %v1195, 0.0
      %v2581 = vmax.f32 %v1266, 0.0
      %v2582 = vmax.f32 %v1337, 0.0
      %v2583 = vmax.f32 %v1408, 0.0
      %v2584 = vmax.f32 %v1479, 0.0
      %v2585 = vmax.f32 %v1550, 0.0
      %v2586 = vmax.f32 %v1621, 0.0
      %v2587 = vmax.f32 %v1692, 0.0
      %v2588 = vmax.f32 %v1763, 0.0
      %v2589 = vmax.f32 %v1834, 0.0
      %v2590 = vmax.f32 %v1905, 0.0
      %v2591 = vmax.f32 %v1976, 0.0
      %v2592 = vmax.f32 %v2047, 0.0
      %v2593 = vmax.f32 %v2118, 0.0
      %v2594 = vmax.f32 %v2189, 0.0
      %v2595 = vmax.f32 %v2260, 0.0
      %v2596 = vmax.f32 %v2331, 0.0
      %v2597 = vmax.f32 %v2402, 0.0
      %v2598 = vmax.f32 %v843, 0.0
      %v2599 = vmax.f32 %v914, 0.0
      %v2600 = vmax.f32 %v985, 0.0
      %v2601 = vmax.f32 %v1056, 0.0
      %v2602 = vmax.f32 %v1127, 0.0
      %v2603 = vmax.f32 %v1198, 0.0
      %v2604 = vmax.f32 %v1269, 0.0
      %v2605 = vmax.f32 %v1340, 0.0
      %v2606 = vmax.f32 %v1411, 0.0
      %v2607 = vmax.f32 %v1482, 0.0
      %v2608 = vmax.f32 %v1553, 0.0
      %v2609 = vmax.f32 %v1624, 0.0
      %v2610 = vmax.f32 %v1695, 0.0
      %v2611 = vmax.f32 %v1766, 0.0
      %v2612 = vmax.f32 %v1837, 0.0
      %v2613 = vmax.f32 %v1908, 0.0
      %v2614 = vmax.f32 %v1979, 0.0
      %v2615 = vmax.f32 %v2050, 0.0
      %v2616 = vmax.f32 %v2121, 0.0
      %v2617 = vmax.f32 %v2192, 0.0
      %v2618 = vmax.f32 %v2263, 0.0
      %v2619 = vmax.f32 %v2334, 0.0
      %v2620 = vmax.f32 %v2405, 0.0
      %v2621 = vmax.f32 %v846, 0.0
      %v2622 = vmax.f32 %v917, 0.0
      %v2623 = vmax.f32 %v988, 0.0
      %v2624 = vmax.f32 %v1059, 0.0
      %v2625 = vmax.f32 %v1130, 0.0
      %v2626 = vmax.f32 %v1201, 0.0
      %v2627 = vmax.f32 %v1272, 0.0
      %v2628 = vmax.f32 %v1343, 0.0
      %v2629 = vmax.f32 %v1414, 0.0
      %v2630 = vmax.f32 %v1485, 0.0
      %v2631 = vmax.f32 %v1556, 0.0
      %v2632 = vmax.f32 %v1627, 0.0
      %v2633 = vmax.f32 %v1698, 0.0
      %v2634 = vmax.f32 %v1769, 0.0
      %v2635 = vmax.f32 %v1840, 0.0
      %v2636 = vmax.f32 %v1911, 0.0
      %v2637 = vmax.f32 %v1982, 0.0
      %v2638 = vmax.f32 %v2053, 0.0
      %v2639 = vmax.f32 %v2124, 0.0
      %v2640 = vmax.f32 %v2195, 0.0
      %v2641 = vmax.f32 %v2266, 0.0
      %v2642 = vmax.f32 %v2337, 0.0
      %v2643 = vmax.f32 %v2408, 0.0
      %v2644 = vmax.f32 %v849, 0.0
      %v2645 = vmax.f32 %v920, 0.0
      %v2646 = vmax.f32 %v991, 0.0
      %v2647 = vmax.f32 %v1062, 0.0
      %v2648 = vmax.f32 %v1133, 0.0
      %v2649 = vmax.f32 %v1204, 0.0
      %v2650 = vmax.f32 %v1275, 0.0
      %v2651 = vmax.f32 %v1346, 0.0
      %v2652 = vmax.f32 %v1417, 0.0
      %v2653 = vmax.f32 %v1488, 0.0
      %v2654 = vmax.f32 %v1559, 0.0
      %v2655 = vmax.f32 %v1630, 0.0
      %v2656 = vmax.f32 %v1701, 0.0
      %v2657 = vmax.f32 %v1772, 0.0
      %v2658 = vmax.f32 %v1843, 0.0
      %v2659 = vmax.f32 %v1914, 0.0
      %v2660 = vmax.f32 %v1985, 0.0
      %v2661 = vmax.f32 %v2056, 0.0
      %v2662 = vmax.f32 %v2127, 0.0
      %v2663 = vmax.f32 %v2198, 0.0
      %v2664 = vmax.f32 %v2269, 0.0
      %v2665 = vmax.f32 %v2340, 0.0
      %v2666 = vmax.f32 %v2411, 0.0
      %v2667 = vmax.f32 %v852, 0.0
      %v2668 = vmax.f32 %v923, 0.0
      %v2669 = vmax.f32 %v994, 0.0
      %v2670 = vmax.f32 %v1065, 0.0
      %v2671 = vmax.f32 %v1136, 0.0
      %v2672 = vmax.f32 %v1207, 0.0
      %v2673 = vmax.f32 %v1278, 0.0
      %v2674 = vmax.f32 %v1349, 0.0
      %v2675 = vmax.f32 %v1420, 0.0
      %v2676 = vmax.f32 %v1491, 0.0
      %v2677 = vmax.f32 %v1562, 0.0
      %v2678 = vmax.f32 %v1633, 0.0
      %v2679 = vmax.f32 %v1704, 0.0
      %v2680 = vmax.f32 %v1775, 0.0
      %v2681 = vmax.f32 %v1846, 0.0
      %v2682 = vmax.f32 %v1917, 0.0
      %v2683 = vmax.f32 %v1988, 0.0
      %v2684 = vmax.f32 %v2059, 0.0
      %v2685 = vmax.f32 %v2130, 0.0
      %v2686 = vmax.f32 %v2201, 0.0
      %v2687 = vmax.f32 %v2272, 0.0
      %v2688 = vmax.f32 %v2343, 0.0
      %v2689 = vmax.f32 %v2414, 0.0
      %v2690 = vmax.f32 %v855, 0.0
      %v2691 = vmax.f32 %v926, 0.0
      %v2692 = vmax.f32 %v997, 0.0
      %v2693 = vmax.f32 %v1068, 0.0
      %v2694 = vmax.f32 %v1139, 0.0
      %v2695 = vmax.f32 %v1210, 0.0
      %v2696 = vmax.f32 %v1281, 0.0
      %v2697 = vmax.f32 %v1352, 0.0
      %v2698 = vmax.f32 %v1423, 0.0
      %v2699 = vmax.f32 %v1494, 0.0
      %v2700 = vmax.f32 %v1565, 0.0
      %v2701 = vmax.f32 %v1636, 0.0
      %v2702 = vmax.f32 %v1707, 0.0
      %v2703 = vmax.f32 %v1778, 0.0
      %v2704 = vmax.f32 %v1849, 0.0
      %v2705 = vmax.f32 %v1920, 0.0
      %v2706 = vmax.f32 %v1991, 0.0
      %v2707 = vmax.f32 %v2062, 0.0
      %v2708 = vmax.f32 %v2133, 0.0
      %v2709 = vmax.f32 %v2204, 0.0
      %v2710 = vmax.f32 %v2275, 0.0
      %v2711 = vmax.f32 %v2346, 0.0
      %v2712 = vmax.f32 %v2417, 0.0
      %v2713 = vmax.f32 %v858, 0.0
      %v2714 = vmax.f32 %v929, 0.0
      %v2715 = vmax.f32 %v1000, 0.0
      %v2716 = vmax.f32 %v1071, 0.0
      %v2717 = vmax.f32 %v1142, 0.0
      %v2718 = vmax.f32 %v1213, 0.0
      %v2719 = vmax.f32 %v1284, 0.0
      %v2720 = vmax.f32 %v1355, 0.0
      %v2721 = vmax.f32 %v1426, 0.0
      %v2722 = vmax.f32 %v1497, 0.0
      %v2723 = vmax.f32 %v1568, 0.0
      %v2724 = vmax.f32 %v1639, 0.0
      %v2725 = vmax.f32 %v1710, 0.0
      %v2726 = vmax.f32 %v1781, 0.0
      %v2727 = vmax.f32 %v1852, 0.0
      %v2728 = vmax.f32 %v1923, 0.0
      %v2729 = vmax.f32 %v1994, 0.0
      %v2730 = vmax.f32 %v2065, 0.0
      %v2731 = vmax.f32 %v2136, 0.0
      %v2732 = vmax.f32 %v2207, 0.0
      %v2733 = vmax.f32 %v2278, 0.0
      %v2734 = vmax.f32 %v2349, 0.0
      %v2735 = vmax.f32 %v2420, 0.0
      %v2736 = vmax.f32 %v861, 0.0
      %v2737 = vmax.f32 %v932, 0.0
      %v2738 = vmax.f32 %v1003, 0.0
      %v2739 = vmax.f32 %v1074, 0.0
      %v2740 = vmax.f32 %v1145, 0.0
      %v2741 = vmax.f32 %v1216, 0.0
      %v2742 = vmax.f32 %v1287, 0.0
      %v2743 = vmax.f32 %v1358, 0.0
      %v2744 = vmax.f32 %v1429, 0.0
      %v2745 = vmax.f32 %v1500, 0.0
      %v2746 = vmax.f32 %v1571, 0.0
      %v2747 = vmax.f32 %v1642, 0.0
      %v2748 = vmax.f32 %v1713, 0.0
      %v2749 = vmax.f32 %v1784, 0.0
      %v2750 = vmax.f32 %v1855, 0.0
      %v2751 = vmax.f32 %v1926, 0.0
      %v2752 = vmax.f32 %v1997, 0.0
      %v2753 = vmax.f32 %v2068, 0.0
      %v2754 = vmax.f32 %v2139, 0.0
      %v2755 = vmax.f32 %v2210, 0.0
      %v2756 = vmax.f32 %v2281, 0.0
      %v2757 = vmax.f32 %v2352, 0.0
      %v2758 = vmax.f32 %v2423, 0.0
      %v2759 = vmax.f32 %v864, 0.0
      %v2760 = vmax.f32 %v935, 0.0
      %v2761 = vmax.f32 %v1006, 0.0
      %v2762 = vmax.f32 %v1077, 0.0
      %v2763 = vmax.f32 %v1148, 0.0
      %v2764 = vmax.f32 %v1219, 0.0
      %v2765 = vmax.f32 %v1290, 0.0
      %v2766 = vmax.f32 %v1361, 0.0
      %v2767 = vmax.f32 %v1432, 0.0
      %v2768 = vmax.f32 %v1503, 0.0
      %v2769 = vmax.f32 %v1574, 0.0
      %v2770 = vmax.f32 %v1645, 0.0
      %v2771 = vmax.f32 %v1716, 0.0
      %v2772 = vmax.f32 %v1787, 0.0
      %v2773 = vmax.f32 %v1858, 0.0
      %v2774 = vmax.f32 %v1929, 0.0
      %v2775 = vmax.f32 %v2000, 0.0
      %v2776 = vmax.f32 %v2071, 0.0
      %v2777 = vmax.f32 %v2142, 0.0
      %v2778 = vmax.f32 %v2213, 0.0
      %v2779 = vmax.f32 %v2284, 0.0
      %v2780 = vmax.f32 %v2355, 0.0
      %v2781 = vmax.f32 %v2426, 0.0
      %v2782 = vmax.f32 %v867, 0.0
      %v2783 = vmax.f32 %v938, 0.0
      %v2784 = vmax.f32 %v1009, 0.0
      %v2785 = vmax.f32 %v1080, 0.0
      %v2786 = vmax.f32 %v1151, 0.0
      %v2787 = vmax.f32 %v1222, 0.0
      %v2788 = vmax.f32 %v1293, 0.0
      %v2789 = vmax.f32 %v1364, 0.0
      %v2790 = vmax.f32 %v1435, 0.0
      %v2791 = vmax.f32 %v1506, 0.0
      %v2792 = vmax.f32 %v1577, 0.0
      %v2793 = vmax.f32 %v1648, 0.0
      %v2794 = vmax.f32 %v1719, 0.0
      %v2795 = vmax.f32 %v1790, 0.0
      %v2796 = vmax.f32 %v1861, 0.0
      %v2797 = vmax.f32 %v1932, 0.0
      %v2798 = vmax.f32 %v2003, 0.0
      %v2799 = vmax.f32 %v2074, 0.0
      %v2800 = vmax.f32 %v2145, 0.0
      %v2801 = vmax.f32 %v2216, 0.0
      %v2802 = vmax.f32 %v2287, 0.0
      %v2803 = vmax.f32 %v2358, 0.0
      %v2804 = vmax.f32 %v2429, 0.0
      %v2805 = vmax.f32 %v870, 0.0
      %v2806 = vmax.f32 %v941, 0.0
      %v2807 = vmax.f32 %v1012, 0.0
      %v2808 = vmax.f32 %v1083, 0.0
      %v2809 = vmax.f32 %v1154, 0.0
      %v2810 = vmax.f32 %v1225, 0.0
      %v2811 = vmax.f32 %v1296, 0.0
      %v2812 = vmax.f32 %v1367, 0.0
      %v2813 = vmax.f32 %v1438, 0.0
      %v2814 = vmax.f32 %v1509, 0.0
      %v2815 = vmax.f32 %v1580, 0.0
      %v2816 = vmax.f32 %v1651, 0.0
      %v2817 = vmax.f32 %v1722, 0.0
      %v2818 = vmax.f32 %v1793, 0.0
      %v2819 = vmax.f32 %v1864, 0.0
      %v2820 = vmax.f32 %v1935, 0.0
      %v2821 = vmax.f32 %v2006, 0.0
      %v2822 = vmax.f32 %v2077, 0.0
      %v2823 = vmax.f32 %v2148, 0.0
      %v2824 = vmax.f32 %v2219, 0.0
      %v2825 = vmax.f32 %v2290, 0.0
      %v2826 = vmax.f32 %v2361, 0.0
      %v2827 = vmax.f32 %v2432, 0.0
      %v2828 = vmax.f32 %v873, 0.0
      %v2829 = vmax.f32 %v944, 0.0
      %v2830 = vmax.f32 %v1015, 0.0
      %v2831 = vmax.f32 %v1086, 0.0
      %v2832 = vmax.f32 %v1157, 0.0
      %v2833 = vmax.f32 %v1228, 0.0
      %v2834 = vmax.f32 %v1299, 0.0
      %v2835 = vmax.f32 %v1370, 0.0
      %v2836 = vmax.f32 %v1441, 0.0
      %v2837 = vmax.f32 %v1512, 0.0
      %v2838 = vmax.f32 %v1583, 0.0
      %v2839 = vmax.f32 %v1654, 0.0
      %v2840 = vmax.f32 %v1725, 0.0
      %v2841 = vmax.f32 %v1796, 0.0
      %v2842 = vmax.f32 %v1867, 0.0
      %v2843 = vmax.f32 %v1938, 0.0
      %v2844 = vmax.f32 %v2009, 0.0
      %v2845 = vmax.f32 %v2080, 0.0
      %v2846 = vmax.f32 %v2151, 0.0
      %v2847 = vmax.f32 %v2222, 0.0
      %v2848 = vmax.f32 %v2293, 0.0
      %v2849 = vmax.f32 %v2364, 0.0
      %v2850 = vmax.f32 %v2435, 0.0
      %2851 = vst [vmem:[%s199] sm:$0xff] %v2437
      %2852 = vst [vmem:[%s199 + $0x8] sm:$0xff] %v2438
      %2853 = vst [vmem:[%s199 + $0x10] sm:$0xff] %v2439
      %2854 = vst [vmem:[%s199 + $0x18] sm:$0xff] %v2440
      %2855 = vst [vmem:[%s199 + $0x20] sm:$0xff] %v2441
      %2856 = vst [vmem:[%s199 + $0x28] sm:$0xff] %v2442
      %2857 = vst [vmem:[%s199 + $0x30] sm:$0xff] %v2443
      %2858 = vst [vmem:[%s199 + $0x38] sm:$0xff] %v2444
      %2859 = vst [vmem:[%s199 + $0x40] sm:$0xff] %v2445
      %2860 = vst [vmem:[%s199 + $0x48] sm:$0xff] %v2446
      %2861 = vst [vmem:[%s199 + $0x50] sm:$0xff] %v2447
      %2862 = vst [vmem:[%s199 + $0x58] sm:$0xff] %v2448
      %2863 = vst [vmem:[%s199 + $0x60] sm:$0xff] %v2449
      %2864 = vst [vmem:[%s199 + $0x68] sm:$0xff] %v2450
      %2865 = vst [vmem:[%s199 + $0x70] sm:$0xff] %v2451
      %2866 = vst [vmem:[%s199 + $0x78] sm:$0xff] %v2452
      %2867 = vst [vmem:[%s199 + $0x80] sm:$0xff] %v2453
      %2868 = vst [vmem:[%s199 + $0x88] sm:$0xff] %v2454
      %2869 = vst [vmem:[%s199 + $0x90] sm:$0xff] %v2455
      %2870 = vst [vmem:[%s199 + $0x98] sm:$0xff] %v2456
      %2871 = vst [vmem:[%s199 + $0xa0] sm:$0xff] %v2457
      %2872 = vst [vmem:[%s199 + $0xa8] sm:$0xff] %v2458
      %vm2873 = vcmask 818176
      %2874 = vst.msk [vmem:[%s199 + $0xb0] sm:$0xff] %vm2873, %v2459
      %2875 = vst [vmem:[%s199 + $0xb8] sm:$0xff] %v2460
      %2876 = vst [vmem:[%s199 + $0xc0] sm:$0xff] %v2461
      %2877 = vst [vmem:[%s199 + $0xc8] sm:$0xff] %v2462
      %2878 = vst [vmem:[%s199 + $0xd0] sm:$0xff] %v2463
      %2879 = vst [vmem:[%s199 + $0xd8] sm:$0xff] %v2464
      %2880 = vst [vmem:[%s199 + $0xe0] sm:$0xff] %v2465
      %2881 = vst [vmem:[%s199 + $0xe8] sm:$0xff] %v2466
      %2882 = vst [vmem:[%s199 + $0xf0] sm:$0xff] %v2467
      %2883 = vst [vmem:[%s199 + $0xf8] sm:$0xff] %v2468
      %2884 = vst [vmem:[%s199 + $0x100] sm:$0xff] %v2469
      %2885 = vst [vmem:[%s199 + $0x108] sm:$0xff] %v2470
      %2886 = vst [vmem:[%s199 + $0x110] sm:$0xff] %v2471
      %2887 = vst [vmem:[%s199 + $0x118] sm:$0xff] %v2472
      %2888 = vst [vmem:[%s199 + $0x120] sm:$0xff] %v2473
      %2889 = vst [vmem:[%s199 + $0x128] sm:$0xff] %v2474
      %2890 = vst [vmem:[%s199 + $0x130] sm:$0xff] %v2475
      %2891 = vst [vmem:[%s199 + $0x138] sm:$0xff] %v2476
      %2892 = vst [vmem:[%s199 + $0x140] sm:$0xff] %v2477
      %2893 = vst [vmem:[%s199 + $0x148] sm:$0xff] %v2478
      %2894 = vst [vmem:[%s199 + $0x150] sm:$0xff] %v2479
      %2895 = vst [vmem:[%s199 + $0x158] sm:$0xff] %v2480
      %2896 = vst [vmem:[%s199 + $0x160] sm:$0xff] %v2481
      %2897 = vst.msk [vmem:[%s199 + $0x168] sm:$0xff] %vm2873, %v2482
      %2898 = vst [vmem:[%s199 + $0x170] sm:$0xff] %v2483
      %2899 = vst [vmem:[%s199 + $0x178] sm:$0xff] %v2484
      %2900 = vst [vmem:[%s199 + $0x180] sm:$0xff] %v2485
      %2901 = vst [vmem:[%s199 + $0x188] sm:$0xff] %v2486
      %2902 = vst [vmem:[%s199 + $0x190] sm:$0xff] %v2487
      %2903 = vst [vmem:[%s199 + $0x198] sm:$0xff] %v2488
      %2904 = vst [vmem:[%s199 + $0x1a0] sm:$0xff] %v2489
      %2905 = vst [vmem:[%s199 + $0x1a8] sm:$0xff] %v2490
      %2906 = vst [vmem:[%s199 + $0x1b0] sm:$0xff] %v2491
      %2907 = vst [vmem:[%s199 + $0x1b8] sm:$0xff] %v2492
      %2908 = vst [vmem:[%s199 + $0x1c0] sm:$0xff] %v2493
      %2909 = vst [vmem:[%s199 + $0x1c8] sm:$0xff] %v2494
      %2910 = vst [vmem:[%s199 + $0x1d0] sm:$0xff] %v2495
      %2911 = vst [vmem:[%s199 + $0x1d8] sm:$0xff] %v2496
      %2912 = vst [vmem:[%s199 + $0x1e0] sm:$0xff] %v2497
      %2913 = vst [vmem:[%s199 + $0x1e8] sm:$0xff] %v2498
      %2914 = vst [vmem:[%s199 + $0x1f0] sm:$0xff] %v2499
      %2915 = vst [vmem:[%s199 + $0x1f8] sm:$0xff] %v2500
      %2916 = vst [vmem:[%s199 + $0x200] sm:$0xff] %v2501
      %2917 = vst [vmem:[%s199 + $0x208] sm:$0xff] %v2502
      %2918 = vst [vmem:[%s199 + $0x210] sm:$0xff] %v2503
      %2919 = vst [vmem:[%s199 + $0x218] sm:$0xff] %v2504
      %2920 = vst.msk [vmem:[%s199 + $0x220] sm:$0xff] %vm2873, %v2505
      %2921 = vst [vmem:[%s199 + $0x228] sm:$0xff] %v2506
      %2922 = vst [vmem:[%s199 + $0x230] sm:$0xff] %v2507
      %2923 = vst [vmem:[%s199 + $0x238] sm:$0xff] %v2508
      %2924 = vst [vmem:[%s199 + $0x240] sm:$0xff] %v2509
      %2925 = vst [vmem:[%s199 + $0x248] sm:$0xff] %v2510
      %2926 = vst [vmem:[%s199 + $0x250] sm:$0xff] %v2511
      %2927 = vst [vmem:[%s199 + $0x258] sm:$0xff] %v2512
      %2928 = vst [vmem:[%s199 + $0x260] sm:$0xff] %v2513
      %2929 = vst [vmem:[%s199 + $0x268] sm:$0xff] %v2514
      %2930 = vst [vmem:[%s199 + $0x270] sm:$0xff] %v2515
      %2931 = vst [vmem:[%s199 + $0x278] sm:$0xff] %v2516
      %2932 = vst [vmem:[%s199 + $0x280] sm:$0xff] %v2517
      %2933 = vst [vmem:[%s199 + $0x288] sm:$0xff] %v2518
      %2934 = vst [vmem:[%s199 + $0x290] sm:$0xff] %v2519
      %2935 = vst [vmem:[%s199 + $0x298] sm:$0xff] %v2520
      %2936 = vst [vmem:[%s199 + $0x2a0] sm:$0xff] %v2521
      %2937 = vst [vmem:[%s199 + $0x2a8] sm:$0xff] %v2522
      %2938 = vst [vmem:[%s199 + $0x2b0] sm:$0xff] %v2523
      %2939 = vst [vmem:[%s199 + $0x2b8] sm:$0xff] %v2524
      %2940 = vst [vmem:[%s199 + $0x2c0] sm:$0xff] %v2525
      %2941 = vst [vmem:[%s199 + $0x2c8] sm:$0xff] %v2526
      %2942 = vst [vmem:[%s199 + $0x2d0] sm:$0xff] %v2527
      %2943 = vst.msk [vmem:[%s199 + $0x2d8] sm:$0xff] %vm2873, %v2528
      %2944 = vst [vmem:[%s199 + $0x2e0] sm:$0xff] %v2529
      %2945 = vst [vmem:[%s199 + $0x2e8] sm:$0xff] %v2530
      %2946 = vst [vmem:[%s199 + $0x2f0] sm:$0xff] %v2531
      %2947 = vst [vmem:[%s199 + $0x2f8] sm:$0xff] %v2532
      %2948 = vst [vmem:[%s199 + $0x300] sm:$0xff] %v2533
      %2949 = vst [vmem:[%s199 + $0x308] sm:$0xff] %v2534
      %2950 = vst [vmem:[%s199 + $0x310] sm:$0xff] %v2535
      %2951 = vst [vmem:[%s199 + $0x318] sm:$0xff] %v2536
      %2952 = vst [vmem:[%s199 + $0x320] sm:$0xff] %v2537
      %2953 = vst [vmem:[%s199 + $0x328] sm:$0xff] %v2538
      %2954 = vst [vmem:[%s199 + $0x330] sm:$0xff] %v2539
      %2955 = vst [vmem:[%s199 + $0x338] sm:$0xff] %v2540
      %2956 = vst [vmem:[%s199 + $0x340] sm:$0xff] %v2541
      %2957 = vst [vmem:[%s199 + $0x348] sm:$0xff] %v2542
      %2958 = vst [vmem:[%s199 + $0x350] sm:$0xff] %v2543
      %2959 = vst [vmem:[%s199 + $0x358] sm:$0xff] %v2544
      %2960 = vst [vmem:[%s199 + $0x360] sm:$0xff] %v2545
      %2961 = vst [vmem:[%s199 + $0x368] sm:$0xff] %v2546
      %2962 = vst [vmem:[%s199 + $0x370] sm:$0xff] %v2547
      %2963 = vst [vmem:[%s199 + $0x378] sm:$0xff] %v2548
      %2964 = vst [vmem:[%s199 + $0x380] sm:$0xff] %v2549
      %2965 = vst [vmem:[%s199 + $0x388] sm:$0xff] %v2550
      %2966 = vst.msk [vmem:[%s199 + $0x390] sm:$0xff] %vm2873, %v2551
      %2967 = vst [vmem:[%s199 + $0x398] sm:$0xff] %v2552
      %2968 = vst [vmem:[%s199 + $0x3a0] sm:$0xff] %v2553
      %2969 = vst [vmem:[%s199 + $0x3a8] sm:$0xff] %v2554
      %2970 = vst [vmem:[%s199 + $0x3b0] sm:$0xff] %v2555
      %2971 = vst [vmem:[%s199 + $0x3b8] sm:$0xff] %v2556
      %2972 = vst [vmem:[%s199 + $0x3c0] sm:$0xff] %v2557
      %2973 = vst [vmem:[%s199 + $0x3c8] sm:$0xff] %v2558
      %2974 = vst [vmem:[%s199 + $0x3d0] sm:$0xff] %v2559
      %2975 = vst [vmem:[%s199 + $0x3d8] sm:$0xff] %v2560
      %2976 = vst [vmem:[%s199 + $0x3e0] sm:$0xff] %v2561
      %2977 = vst [vmem:[%s199 + $0x3e8] sm:$0xff] %v2562
      %2978 = vst [vmem:[%s199 + $0x3f0] sm:$0xff] %v2563
      %2979 = vst [vmem:[%s199 + $0x3f8] sm:$0xff] %v2564
      %2980 = vst [vmem:[%s199 + $0x400] sm:$0xff] %v2565
      %2981 = vst [vmem:[%s199 + $0x408] sm:$0xff] %v2566
      %2982 = vst [vmem:[%s199 + $0x410] sm:$0xff] %v2567
      %2983 = vst [vmem:[%s199 + $0x418] sm:$0xff] %v2568
      %2984 = vst [vmem:[%s199 + $0x420] sm:$0xff] %v2569
      %2985 = vst [vmem:[%s199 + $0x428] sm:$0xff] %v2570
      %2986 = vst [vmem:[%s199 + $0x430] sm:$0xff] %v2571
      %2987 = vst [vmem:[%s199 + $0x438] sm:$0xff] %v2572
      %2988 = vst [vmem:[%s199 + $0x440] sm:$0xff] %v2573
      %2989 = vst.msk [vmem:[%s199 + $0x448] sm:$0xff] %vm2873, %v2574
      %2990 = vst [vmem:[%s199 + $0x450] sm:$0xff] %v2575
      %2991 = vst [vmem:[%s199 + $0x458] sm:$0xff] %v2576
      %2992 = vst [vmem:[%s199 + $0x460] sm:$0xff] %v2577
      %2993 = vst [vmem:[%s199 + $0x468] sm:$0xff] %v2578
      %2994 = vst [vmem:[%s199 + $0x470] sm:$0xff] %v2579
      %2995 = vst [vmem:[%s199 + $0x478] sm:$0xff] %v2580
      %2996 = vst [vmem:[%s199 + $0x480] sm:$0xff] %v2581
      %2997 = vst [vmem:[%s199 + $0x488] sm:$0xff] %v2582
      %2998 = vst [vmem:[%s199 + $0x490] sm:$0xff] %v2583
      %2999 = vst [vmem:[%s199 + $0x498] sm:$0xff] %v2584
      %3000 = vst [vmem:[%s199 + $0x4a0] sm:$0xff] %v2585
      %3001 = vst [vmem:[%s199 + $0x4a8] sm:$0xff] %v2586
      %3002 = vst [vmem:[%s199 + $0x4b0] sm:$0xff] %v2587
      %3003 = vst [vmem:[%s199 + $0x4b8] sm:$0xff] %v2588
      %3004 = vst [vmem:[%s199 + $0x4c0] sm:$0xff] %v2589
      %3005 = vst [vmem:[%s199 + $0x4c8] sm:$0xff] %v2590
      %3006 = vst [vmem:[%s199 + $0x4d0] sm:$0xff] %v2591
      %3007 = vst [vmem:[%s199 + $0x4d8] sm:$0xff] %v2592
      %3008 = vst [vmem:[%s199 + $0x4e0] sm:$0xff] %v2593
      %3009 = vst [vmem:[%s199 + $0x4e8] sm:$0xff] %v2594
      %3010 = vst [vmem:[%s199 + $0x4f0] sm:$0xff] %v2595
      %3011 = vst [vmem:[%s199 + $0x4f8] sm:$0xff] %v2596
      %3012 = vst.msk [vmem:[%s199 + $0x500] sm:$0xff] %vm2873, %v2597
      %3013 = vst [vmem:[%s199 + $0x508] sm:$0xff] %v2598
      %3014 = vst [vmem:[%s199 + $0x510] sm:$0xff] %v2599
      %3015 = vst [vmem:[%s199 + $0x518] sm:$0xff] %v2600
      %3016 = vst [vmem:[%s199 + $0x520] sm:$0xff] %v2601
      %3017 = vst [vmem:[%s199 + $0x528] sm:$0xff] %v2602
      %3018 = vst [vmem:[%s199 + $0x530] sm:$0xff] %v2603
      %3019 = vst [vmem:[%s199 + $0x538] sm:$0xff] %v2604
      %3020 = vst [vmem:[%s199 + $0x540] sm:$0xff] %v2605
      %3021 = vst [vmem:[%s199 + $0x548] sm:$0xff] %v2606
      %3022 = vst [vmem:[%s199 + $0x550] sm:$0xff] %v2607
      %3023 = vst [vmem:[%s199 + $0x558] sm:$0xff] %v2608
      %3024 = vst [vmem:[%s199 + $0x560] sm:$0xff] %v2609
      %3025 = vst [vmem:[%s199 + $0x568] sm:$0xff] %v2610
      %3026 = vst [vmem:[%s199 + $0x570] sm:$0xff] %v2611
      %3027 = vst [vmem:[%s199 + $0x578] sm:$0xff] %v2612
      %3028 = vst [vmem:[%s199 + $0x580] sm:$0xff] %v2613
      %3029 = vst [vmem:[%s199 + $0x588] sm:$0xff] %v2614
      %3030 = vst [vmem:[%s199 + $0x590] sm:$0xff] %v2615
      %3031 = vst [vmem:[%s199 + $0x598] sm:$0xff] %v2616
      %3032 = vst [vmem:[%s199 + $0x5a0] sm:$0xff] %v2617
      %3033 = vst [vmem:[%s199 + $0x5a8] sm:$0xff] %v2618
      %3034 = vst [vmem:[%s199 + $0x5b0] sm:$0xff] %v2619
      %3035 = vst.msk [vmem:[%s199 + $0x5b8] sm:$0xff] %vm2873, %v2620
      %3036 = vst [vmem:[%s199 + $0x5c0] sm:$0xff] %v2621
      %3037 = vst [vmem:[%s199 + $0x5c8] sm:$0xff] %v2622
      %3038 = vst [vmem:[%s199 + $0x5d0] sm:$0xff] %v2623
      %3039 = vst [vmem:[%s199 + $0x5d8] sm:$0xff] %v2624
      %3040 = vst [vmem:[%s199 + $0x5e0] sm:$0xff] %v2625
      %3041 = vst [vmem:[%s199 + $0x5e8] sm:$0xff] %v2626
      %3042 = vst [vmem:[%s199 + $0x5f0] sm:$0xff] %v2627
      %3043 = vst [vmem:[%s199 + $0x5f8] sm:$0xff] %v2628
      %3044 = vst [vmem:[%s199 + $0x600] sm:$0xff] %v2629
      %3045 = vst [vmem:[%s199 + $0x608] sm:$0xff] %v2630
      %3046 = vst [vmem:[%s199 + $0x610] sm:$0xff] %v2631
      %3047 = vst [vmem:[%s199 + $0x618] sm:$0xff] %v2632
      %3048 = vst [vmem:[%s199 + $0x620] sm:$0xff] %v2633
      %3049 = vst [vmem:[%s199 + $0x628] sm:$0xff] %v2634
      %3050 = vst [vmem:[%s199 + $0x630] sm:$0xff] %v2635
      %3051 = vst [vmem:[%s199 + $0x638] sm:$0xff] %v2636
      %3052 = vst [vmem:[%s199 + $0x640] sm:$0xff] %v2637
      %3053 = vst [vmem:[%s199 + $0x648] sm:$0xff] %v2638
      %3054 = vst [vmem:[%s199 + $0x650] sm:$0xff] %v2639
      %3055 = vst [vmem:[%s199 + $0x658] sm:$0xff] %v2640
      %3056 = vst [vmem:[%s199 + $0x660] sm:$0xff] %v2641
      %3057 = vst [vmem:[%s199 + $0x668] sm:$0xff] %v2642
      %3058 = vst.msk [vmem:[%s199 + $0x670] sm:$0xff] %vm2873, %v2643
      %3059 = vst [vmem:[%s199 + $0x678] sm:$0xff] %v2644
      %3060 = vst [vmem:[%s199 + $0x680] sm:$0xff] %v2645
      %3061 = vst [vmem:[%s199 + $0x688] sm:$0xff] %v2646
      %3062 = vst [vmem:[%s199 + $0x690] sm:$0xff] %v2647
      %3063 = vst [vmem:[%s199 + $0x698] sm:$0xff] %v2648
      %3064 = vst [vmem:[%s199 + $0x6a0] sm:$0xff] %v2649
      %3065 = vst [vmem:[%s199 + $0x6a8] sm:$0xff] %v2650
      %3066 = vst [vmem:[%s199 + $0x6b0] sm:$0xff] %v2651
      %3067 = vst [vmem:[%s199 + $0x6b8] sm:$0xff] %v2652
      %3068 = vst [vmem:[%s199 + $0x6c0] sm:$0xff] %v2653
      %3069 = vst [vmem:[%s199 + $0x6c8] sm:$0xff] %v2654
      %3070 = vst [vmem:[%s199 + $0x6d0] sm:$0xff] %v2655
      %3071 = vst [vmem:[%s199 + $0x6d8] sm:$0xff] %v2656
      %3072 = vst [vmem:[%s199 + $0x6e0] sm:$0xff] %v2657
      %3073 = vst [vmem:[%s199 + $0x6e8] sm:$0xff] %v2658
      %3074 = vst [vmem:[%s199 + $0x6f0] sm:$0xff] %v2659
      %3075 = vst [vmem:[%s199 + $0x6f8] sm:$0xff] %v2660
      %3076 = vst [vmem:[%s199 + $0x700] sm:$0xff] %v2661
      %3077 = vst [vmem:[%s199 + $0x708] sm:$0xff] %v2662
      %3078 = vst [vmem:[%s199 + $0x710] sm:$0xff] %v2663
      %3079 = vst [vmem:[%s199 + $0x718] sm:$0xff] %v2664
      %3080 = vst [vmem:[%s199 + $0x720] sm:$0xff] %v2665
      %3081 = vst.msk [vmem:[%s199 + $0x728] sm:$0xff] %vm2873, %v2666
      %3082 = vst [vmem:[%s199 + $0x730] sm:$0xff] %v2667
      %3083 = vst [vmem:[%s199 + $0x738] sm:$0xff] %v2668
      %3084 = vst [vmem:[%s199 + $0x740] sm:$0xff] %v2669
      %3085 = vst [vmem:[%s199 + $0x748] sm:$0xff] %v2670
      %3086 = vst [vmem:[%s199 + $0x750] sm:$0xff] %v2671
      %3087 = vst [vmem:[%s199 + $0x758] sm:$0xff] %v2672
      %3088 = vst [vmem:[%s199 + $0x760] sm:$0xff] %v2673
      %3089 = vst [vmem:[%s199 + $0x768] sm:$0xff] %v2674
      %3090 = vst [vmem:[%s199 + $0x770] sm:$0xff] %v2675
      %3091 = vst [vmem:[%s199 + $0x778] sm:$0xff] %v2676
      %3092 = vst [vmem:[%s199 + $0x780] sm:$0xff] %v2677
      %3093 = vst [vmem:[%s199 + $0x788] sm:$0xff] %v2678
      %3094 = vst [vmem:[%s199 + $0x790] sm:$0xff] %v2679
      %3095 = vst [vmem:[%s199 + $0x798] sm:$0xff] %v2680
      %3096 = vst [vmem:[%s199 + $0x7a0] sm:$0xff] %v2681
      %3097 = vst [vmem:[%s199 + $0x7a8] sm:$0xff] %v2682
      %3098 = vst [vmem:[%s199 + $0x7b0] sm:$0xff] %v2683
      %3099 = vst [vmem:[%s199 + $0x7b8] sm:$0xff] %v2684
      %3100 = vst [vmem:[%s199 + $0x7c0] sm:$0xff] %v2685
      %3101 = vst [vmem:[%s199 + $0x7c8] sm:$0xff] %v2686
      %3102 = vst [vmem:[%s199 + $0x7d0] sm:$0xff] %v2687
      %3103 = vst [vmem:[%s199 + $0x7d8] sm:$0xff] %v2688
      %3104 = vst.msk [vmem:[%s199 + $0x7e0] sm:$0xff] %vm2873, %v2689
      %3105 = vst [vmem:[%s199 + $0x7e8] sm:$0xff] %v2690
      %3106 = vst [vmem:[%s199 + $0x7f0] sm:$0xff] %v2691
      %3107 = vst [vmem:[%s199 + $0x7f8] sm:$0xff] %v2692
      %3108 = vst [vmem:[%s199 + $0x800] sm:$0xff] %v2693
      %3109 = vst [vmem:[%s199 + $0x808] sm:$0xff] %v2694
      %3110 = vst [vmem:[%s199 + $0x810] sm:$0xff] %v2695
      %3111 = vst [vmem:[%s199 + $0x818] sm:$0xff] %v2696
      %3112 = vst [vmem:[%s199 + $0x820] sm:$0xff] %v2697
      %3113 = vst [vmem:[%s199 + $0x828] sm:$0xff] %v2698
      %3114 = vst [vmem:[%s199 + $0x830] sm:$0xff] %v2699
      %3115 = vst [vmem:[%s199 + $0x838] sm:$0xff] %v2700
      %3116 = vst [vmem:[%s199 + $0x840] sm:$0xff] %v2701
      %3117 = vst [vmem:[%s199 + $0x848] sm:$0xff] %v2702
      %3118 = vst [vmem:[%s199 + $0x850] sm:$0xff] %v2703
      %3119 = vst [vmem:[%s199 + $0x858] sm:$0xff] %v2704
      %3120 = vst [vmem:[%s199 + $0x860] sm:$0xff] %v2705
      %3121 = vst [vmem:[%s199 + $0x868] sm:$0xff] %v2706
      %3122 = vst [vmem:[%s199 + $0x870] sm:$0xff] %v2707
      %3123 = vst [vmem:[%s199 + $0x878] sm:$0xff] %v2708
      %3124 = vst [vmem:[%s199 + $0x880] sm:$0xff] %v2709
      %3125 = vst [vmem:[%s199 + $0x888] sm:$0xff] %v2710
      %3126 = vst [vmem:[%s199 + $0x890] sm:$0xff] %v2711
      %3127 = vst.msk [vmem:[%s199 + $0x898] sm:$0xff] %vm2873, %v2712
      %3128 = vst [vmem:[%s199 + $0x8a0] sm:$0xff] %v2713
      %3129 = vst [vmem:[%s199 + $0x8a8] sm:$0xff] %v2714
      %3130 = vst [vmem:[%s199 + $0x8b0] sm:$0xff] %v2715
      %3131 = vst [vmem:[%s199 + $0x8b8] sm:$0xff] %v2716
      %3132 = vst [vmem:[%s199 + $0x8c0] sm:$0xff] %v2717
      %3133 = vst [vmem:[%s199 + $0x8c8] sm:$0xff] %v2718
      %3134 = vst [vmem:[%s199 + $0x8d0] sm:$0xff] %v2719
      %3135 = vst [vmem:[%s199 + $0x8d8] sm:$0xff] %v2720
      %3136 = vst [vmem:[%s199 + $0x8e0] sm:$0xff] %v2721
      %3137 = vst [vmem:[%s199 + $0x8e8] sm:$0xff] %v2722
      %3138 = vst [vmem:[%s199 + $0x8f0] sm:$0xff] %v2723
      %3139 = vst [vmem:[%s199 + $0x8f8] sm:$0xff] %v2724
      %3140 = vst [vmem:[%s199 + $0x900] sm:$0xff] %v2725
      %3141 = vst [vmem:[%s199 + $0x908] sm:$0xff] %v2726
      %3142 = vst [vmem:[%s199 + $0x910] sm:$0xff] %v2727
      %3143 = vst [vmem:[%s199 + $0x918] sm:$0xff] %v2728
      %3144 = vst [vmem:[%s199 + $0x920] sm:$0xff] %v2729
      %3145 = vst [vmem:[%s199 + $0x928] sm:$0xff] %v2730
      %3146 = vst [vmem:[%s199 + $0x930] sm:$0xff] %v2731
      %3147 = vst [vmem:[%s199 + $0x938] sm:$0xff] %v2732
      %3148 = vst [vmem:[%s199 + $0x940] sm:$0xff] %v2733
      %3149 = vst [vmem:[%s199 + $0x948] sm:$0xff] %v2734
      %3150 = vst.msk [vmem:[%s199 + $0x950] sm:$0xff] %vm2873, %v2735
      %3151 = vst [vmem:[%s199 + $0x958] sm:$0xff] %v2736
      %3152 = vst [vmem:[%s199 + $0x960] sm:$0xff] %v2737
      %3153 = vst [vmem:[%s199 + $0x968] sm:$0xff] %v2738
      %3154 = vst [vmem:[%s199 + $0x970] sm:$0xff] %v2739
      %3155 = vst [vmem:[%s199 + $0x978] sm:$0xff] %v2740
      %3156 = vst [vmem:[%s199 + $0x980] sm:$0xff] %v2741
      %3157 = vst [vmem:[%s199 + $0x988] sm:$0xff] %v2742
      %3158 = vst [vmem:[%s199 + $0x990] sm:$0xff] %v2743
      %3159 = vst [vmem:[%s199 + $0x998] sm:$0xff] %v2744
      %3160 = vst [vmem:[%s199 + $0x9a0] sm:$0xff] %v2745
      %3161 = vst [vmem:[%s199 + $0x9a8] sm:$0xff] %v2746
      %3162 = vst [vmem:[%s199 + $0x9b0] sm:$0xff] %v2747
      %3163 = vst [vmem:[%s199 + $0x9b8] sm:$0xff] %v2748
      %3164 = vst [vmem:[%s199 + $0x9c0] sm:$0xff] %v2749
      %3165 = vst [vmem:[%s199 + $0x9c8] sm:$0xff] %v2750
      %3166 = vst [vmem:[%s199 + $0x9d0] sm:$0xff] %v2751
      %3167 = vst [vmem:[%s199 + $0x9d8] sm:$0xff] %v2752
      %3168 = vst [vmem:[%s199 + $0x9e0] sm:$0xff] %v2753
      %3169 = vst [vmem:[%s199 + $0x9e8] sm:$0xff] %v2754
      %3170 = vst [vmem:[%s199 + $0x9f0] sm:$0xff] %v2755
      %3171 = vst [vmem:[%s199 + $0x9f8] sm:$0xff] %v2756
      %3172 = vst [vmem:[%s199 + $0xa00] sm:$0xff] %v2757
      %3173 = vst.msk [vmem:[%s199 + $0xa08] sm:$0xff] %vm2873, %v2758
      %3174 = vst [vmem:[%s199 + $0xa10] sm:$0xff] %v2759
      %3175 = vst [vmem:[%s199 + $0xa18] sm:$0xff] %v2760
      %3176 = vst [vmem:[%s199 + $0xa20] sm:$0xff] %v2761
      %3177 = vst [vmem:[%s199 + $0xa28] sm:$0xff] %v2762
      %3178 = vst [vmem:[%s199 + $0xa30] sm:$0xff] %v2763
      %3179 = vst [vmem:[%s199 + $0xa38] sm:$0xff] %v2764
      %3180 = vst [vmem:[%s199 + $0xa40] sm:$0xff] %v2765
      %3181 = vst [vmem:[%s199 + $0xa48] sm:$0xff] %v2766
      %3182 = vst [vmem:[%s199 + $0xa50] sm:$0xff] %v2767
      %3183 = vst [vmem:[%s199 + $0xa58] sm:$0xff] %v2768
      %3184 = vst [vmem:[%s199 + $0xa60] sm:$0xff] %v2769
      %3185 = vst [vmem:[%s199 + $0xa68] sm:$0xff] %v2770
      %3186 = vst [vmem:[%s199 + $0xa70] sm:$0xff] %v2771
      %3187 = vst [vmem:[%s199 + $0xa78] sm:$0xff] %v2772
      %3188 = vst [vmem:[%s199 + $0xa80] sm:$0xff] %v2773
      %3189 = vst [vmem:[%s199 + $0xa88] sm:$0xff] %v2774
      %3190 = vst [vmem:[%s199 + $0xa90] sm:$0xff] %v2775
      %3191 = vst [vmem:[%s199 + $0xa98] sm:$0xff] %v2776
      %3192 = vst [vmem:[%s199 + $0xaa0] sm:$0xff] %v2777
      %3193 = vst [vmem:[%s199 + $0xaa8] sm:$0xff] %v2778
      %3194 = vst [vmem:[%s199 + $0xab0] sm:$0xff] %v2779
      %3195 = vst [vmem:[%s199 + $0xab8] sm:$0xff] %v2780
      %3196 = vst.msk [vmem:[%s199 + $0xac0] sm:$0xff] %vm2873, %v2781
      %3197 = vst [vmem:[%s199 + $0xac8] sm:$0xff] %v2782
      %3198 = vst [vmem:[%s199 + $0xad0] sm:$0xff] %v2783
      %3199 = vst [vmem:[%s199 + $0xad8] sm:$0xff] %v2784
      %3200 = vst [vmem:[%s199 + $0xae0] sm:$0xff] %v2785
      %3201 = vst [vmem:[%s199 + $0xae8] sm:$0xff] %v2786
      %3202 = vst [vmem:[%s199 + $0xaf0] sm:$0xff] %v2787
      %3203 = vst [vmem:[%s199 + $0xaf8] sm:$0xff] %v2788
      %3204 = vst [vmem:[%s199 + $0xb00] sm:$0xff] %v2789
      %3205 = vst [vmem:[%s199 + $0xb08] sm:$0xff] %v2790
      %3206 = vst [vmem:[%s199 + $0xb10] sm:$0xff] %v2791
      %3207 = vst [vmem:[%s199 + $0xb18] sm:$0xff] %v2792
      %3208 = vst [vmem:[%s199 + $0xb20] sm:$0xff] %v2793
      %3209 = vst [vmem:[%s199 + $0xb28] sm:$0xff] %v2794
      %3210 = vst [vmem:[%s199 + $0xb30] sm:$0xff] %v2795
      %3211 = vst [vmem:[%s199 + $0xb38] sm:$0xff] %v2796
      %3212 = vst [vmem:[%s199 + $0xb40] sm:$0xff] %v2797
      %3213 = vst [vmem:[%s199 + $0xb48] sm:$0xff] %v2798
      %3214 = vst [vmem:[%s199 + $0xb50] sm:$0xff] %v2799
      %3215 = vst [vmem:[%s199 + $0xb58] sm:$0xff] %v2800
      %3216 = vst [vmem:[%s199 + $0xb60] sm:$0xff] %v2801
      %3217 = vst [vmem:[%s199 + $0xb68] sm:$0xff] %v2802
      %3218 = vst [vmem:[%s199 + $0xb70] sm:$0xff] %v2803
      %3219 = vst.msk [vmem:[%s199 + $0xb78] sm:$0xff] %vm2873, %v2804
      %3220 = vst [vmem:[%s199 + $0xb80] sm:$0xff] %v2805
      %3221 = vst [vmem:[%s199 + $0xb88] sm:$0xff] %v2806
      %3222 = vst [vmem:[%s199 + $0xb90] sm:$0xff] %v2807
      %3223 = vst [vmem:[%s199 + $0xb98] sm:$0xff] %v2808
      %3224 = vst [vmem:[%s199 + $0xba0] sm:$0xff] %v2809
      %3225 = vst [vmem:[%s199 + $0xba8] sm:$0xff] %v2810
      %3226 = vst [vmem:[%s199 + $0xbb0] sm:$0xff] %v2811
      %3227 = vst [vmem:[%s199 + $0xbb8] sm:$0xff] %v2812
      %3228 = vst [vmem:[%s199 + $0xbc0] sm:$0xff] %v2813
      %3229 = vst [vmem:[%s199 + $0xbc8] sm:$0xff] %v2814
      %3230 = vst [vmem:[%s199 + $0xbd0] sm:$0xff] %v2815
      %3231 = vst [vmem:[%s199 + $0xbd8] sm:$0xff] %v2816
      %3232 = vst [vmem:[%s199 + $0xbe0] sm:$0xff] %v2817
      %3233 = vst [vmem:[%s199 + $0xbe8] sm:$0xff] %v2818
      %3234 = vst [vmem:[%s199 + $0xbf0] sm:$0xff] %v2819
      %3235 = vst [vmem:[%s199 + $0xbf8] sm:$0xff] %v2820
      %3236 = vst [vmem:[%s199 + $0xc00] sm:$0xff] %v2821
      %3237 = vst [vmem:[%s199 + $0xc08] sm:$0xff] %v2822
      %3238 = vst [vmem:[%s199 + $0xc10] sm:$0xff] %v2823
      %3239 = vst [vmem:[%s199 + $0xc18] sm:$0xff] %v2824
      %3240 = vst [vmem:[%s199 + $0xc20] sm:$0xff] %v2825
      %3241 = vst [vmem:[%s199 + $0xc28] sm:$0xff] %v2826
      %3242 = vst.msk [vmem:[%s199 + $0xc30] sm:$0xff] %vm2873, %v2827
      %3243 = vst [vmem:[%s199 + $0xc38] sm:$0xff] %v2828
      %3244 = vst [vmem:[%s199 + $0xc40] sm:$0xff] %v2829
      %3245 = vst [vmem:[%s199 + $0xc48] sm:$0xff] %v2830
      %3246 = vst [vmem:[%s199 + $0xc50] sm:$0xff] %v2831
      %3247 = vst [vmem:[%s199 + $0xc58] sm:$0xff] %v2832
      %3248 = vst [vmem:[%s199 + $0xc60] sm:$0xff] %v2833
      %3249 = vst [vmem:[%s199 + $0xc68] sm:$0xff] %v2834
      %3250 = vst [vmem:[%s199 + $0xc70] sm:$0xff] %v2835
      %3251 = vst [vmem:[%s199 + $0xc78] sm:$0xff] %v2836
      %3252 = vst [vmem:[%s199 + $0xc80] sm:$0xff] %v2837
      %3253 = vst [vmem:[%s199 + $0xc88] sm:$0xff] %v2838
      %3254 = vst [vmem:[%s199 + $0xc90] sm:$0xff] %v2839
      %3255 = vst [vmem:[%s199 + $0xc98] sm:$0xff] %v2840
      %3256 = vst [vmem:[%s199 + $0xca0] sm:$0xff] %v2841
      %3257 = vst [vmem:[%s199 + $0xca8] sm:$0xff] %v2842
      %3258 = vst [vmem:[%s199 + $0xcb0] sm:$0xff] %v2843
      %3259 = vst [vmem:[%s199 + $0xcb8] sm:$0xff] %v2844
      %3260 = vst [vmem:[%s199 + $0xcc0] sm:$0xff] %v2845
      %3261 = vst [vmem:[%s199 + $0xcc8] sm:$0xff] %v2846
      %3262 = vst [vmem:[%s199 + $0xcd0] sm:$0xff] %v2847
      %3263 = vst [vmem:[%s199 + $0xcd8] sm:$0xff] %v2848
      %3264 = vst [vmem:[%s199 + $0xce0] sm:$0xff] %v2849
      %3265 = vst.msk [vmem:[%s199 + $0xce8] sm:$0xff] %vm2873, %v2850
      %s3266 = smul.u32 18, %s14
      %p3267 = scmp.lt.s32.totalorder %s3266, 35
      %s3268 = scalar_select %p3267, %s3266, 35
      %s3269 = smul.addr %s3268, 23
      %s3270 = smul.addr %s3269, 8
      %s3271 = scalar_lea.vmem %s3, %s3270
      // Predicated region
      $region33: #{model_forward.1} parent=31 // pred_check
        %p3272 = pneg %p105
      $region34: #{model_forward.1} parent=31 // pred_check_branch
        %3274 = sbr.rel (%p3272) target = $region36
      $region35: #{model_forward.1} parent=31 // pred_region
        %s3275 = smul.u32 18, %s14
      $region36: #{model_forward.1} parent=31 // pred_fallthru
        _
    $region32: #{model_forward.1} parent=5 // pred_fallthru
      _
    %p3276 = scmp.le.s32.totalorder 2, %s9
    // Predicated region
    $region37: #{model_forward.1} parent=5 // pred_check
      %p3277 = pneg %p3276
    $region38: #{model_forward.1} parent=5 // pred_check_branch
      %3279 = sbr.rel (%p3277) target = $region40
    $region39: #{model_forward.1} parent=5 // pred_region
      %s3280 = ssub.s32 %s9, 2
      // Predicated region
      $region41: #{model_forward.1} parent=39 // pred_check
        %p3281 = pneg %p111
      $region42: #{model_forward.1} parent=39 // pred_check_branch
        %3283 = sbr.rel (%p3281) target = $region44
      $region43: #{model_forward.1} parent=39 // pred_region
        %s3284 = smul.u32 18, %s15
        %p3285 = scmp.lt.s32.totalorder %s3284, 35
        %s3286 = scalar_select %p3285, %s3284, 35
        %s3287 = smul.addr %s3286, 23
        %s3288 = smul.addr %s3287, 8
        %s3289 = scalar_lea.vmem %s3, %s3288
      $region44: #{model_forward.1} parent=39 // pred_fallthru
        _
    $region40: #{model_forward.1} parent=5 // pred_fallthru
      _
  $region6: #{model_forward.1} parent=0 // loop_footer
    %s13 = sadd.s32 1, %s9
  $region7: #{model_forward.1} parent=0 // loop_footer_branch
    %8 = sbr.rel target = $region3
  $region8: #{model_forward.1} parent=0 // loop_exit
    _

</llo_original>
